<compile_context>
chip_gen: v6e
topology: v6e:2x2x1
jax: 0.10.0
libtpu: 0.0.40
codegen_flags: <defaults>
</compile_context>

<pallas_src>
import functools

import jax
import jax.numpy as jnp
from jax import lax
from jax.experimental import pallas as pl
from jax.experimental.pallas import tpu as pltpu


INPUT_SHAPE = (70, 70)
NUM_DIRECTIONS = 4
_CONV_CFG = [(5, 2), (3, 2), (3, 2)]   # (kernel, stride) for conv1..conv3


# ----------------------------------------------------------------------------
# Pallas kernels
# ----------------------------------------------------------------------------
def _gemm_bias_relu_kernel(x_ref, w_ref, b_ref, o_ref):
    """One row-tile of relu(x @ w + b); bf16 inputs, f32 accumulate, bf16 out."""
    y = jnp.dot(x_ref[...], w_ref[...], preferred_element_type=jnp.float32)
    y = jnp.maximum(y + b_ref[...], 0.0)
    o_ref[...] = y.astype(o_ref.dtype)


def _pick_tm(m, tm_max=512):
    """Row tile: as large as tm_max, but keep >= 2 grid steps (v7x megacore)
    and align to 16 sublanes (bf16 packing)."""
    half = (((m + 1) // 2) + 15) // 16 * 16
    return max(16, min(tm_max, half))


def pallas_matmul_bias_relu(x, w, b, *, out_dtype=jnp.bfloat16, tm_max=512):
    """relu(x @ w + b); grid over row tiles; ragged last tile masked by Pallas."""
    m, k = x.shape
    k2, n = w.shape
    assert k == k2
    tm = _pick_tm(m, tm_max)
    return pl.pallas_call(
        _gemm_bias_relu_kernel,
        out_shape=jax.ShapeDtypeStruct((m, n), out_dtype),
        grid_spec=pltpu.PrefetchScalarGridSpec(
            num_scalar_prefetch=0,
            grid=(pl.cdiv(m, tm),),
            in_specs=[
                pl.BlockSpec((tm, k), lambda i: (i, 0)),   # row tile of patches
                pl.BlockSpec((k, n), lambda i: (0, 0)),    # full weight (stays resident)
                pl.BlockSpec((1, n), lambda i: (0, 0)),    # bias
            ],
            out_specs=pl.BlockSpec((tm, n), lambda i: (i, 0)),
        ),
        compiler_params=pltpu.CompilerParams(dimension_semantics=("parallel",)),
    )(x, w, b)


def _fc_heads_kernel(x_ref, wf_ref, bf_ref, wh_ref, bh_ref, o_ref, *, nd):
    """Fused FC(+ReLU) and all three heads (one concatenated head matrix).
    The two softmaxes are done with lane masks over the padded logit lanes:
      lanes [0, nd)        -> direction probabilities
      lanes [nd, nd+2)     -> mode probabilities
      lane  nd+2           -> critic value
      remaining lanes      -> zero padding
    """
    f = jnp.dot(x_ref[...], wf_ref[...], preferred_element_type=jnp.float32)
    f = jnp.maximum(f + bf_ref[...], 0.0)
    logits = jnp.dot(f.astype(wh_ref.dtype), wh_ref[...],
                     preferred_element_type=jnp.float32) + bh_ref[...]

    lane = lax.broadcasted_iota(jnp.int32, logits.shape, 1)
    is_dir = lane < nd
    is_mode = (lane >= nd) & (lane < nd + 2)
    is_val = lane == nd + 2
    neg = jnp.float32(-1e30)

    def masked_softmax(mask):
        z = jnp.where(mask, logits, neg)
        z = z - jnp.max(z, axis=-1, keepdims=True)
        e = jnp.where(mask, jnp.exp(z), 0.0)
        return e / jnp.sum(e, axis=-1, keepdims=True)   # exact division (sum-to-1)

    out = jnp.where(is_dir, masked_softmax(is_dir),
          jnp.where(is_mode, masked_softmax(is_mode),
          jnp.where(is_val, logits, 0.0)))
    o_ref[...] = out


def pallas_fc_heads(flat, fc_w, fc_b, heads_w, heads_b, *, nd):
    b = flat.shape[0]
    nc = heads_w.shape[1]
    vmem = pl.BlockSpec(memory_space=pltpu.MemorySpace.VMEM)
    return pl.pallas_call(
        functools.partial(_fc_heads_kernel, nd=nd),
        out_shape=jax.ShapeDtypeStruct((b, nc), jnp.float32),
        in_specs=[vmem] * 5,
        out_specs=vmem,
    )(flat, fc_w, fc_b, heads_w, heads_b)


# ----------------------------------------------------------------------------
# Conv layer = plain-JAX im2col (NHWC, no transposes) + Pallas GEMM
# ----------------------------------------------------------------------------
def _im2col_nhwc(x, k, stride):
    """(B,H,W,C) -> patch matrix (B*OH*OW, k*k*C); feature order (kh, kw, C)."""
    B, H, W, C = x.shape
    oh = (H - k) // stride + 1
    ow = (W - k) // stride + 1
    cols = []
    for i in range(k):
        for j in range(k):
            cols.append(x[:, i:i + stride * oh:stride, j:j + stride * ow:stride, :])
    p = jnp.concatenate(cols, axis=-1)               # (B, oh, ow, k*k*C)
    return p.reshape(B * oh * ow, k * k * C), oh, ow


def conv2d_relu_nhwc(x_nhwc, w_ko, b_1n, *, k, stride):
    """relu(conv2d(x)) in NHWC; weight already reshaped to (kh*kw*C_in, C_out)."""
    B = x_nhwc.shape[0]
    patches, oh, ow = _im2col_nhwc(x_nhwc, k, stride)
    y = pallas_matmul_bias_relu(patches, w_ko, b_1n)  # (B*oh*ow, C_out) bf16
    return y.reshape(B, oh, ow, w_ko.shape[1])


# ----------------------------------------------------------------------------
# Parameters (PyTorch-style layout) + one-time inference prep
# ----------------------------------------------------------------------------
def _conv_out_hw(input_shape):
    h, w = input_shape
    for (k, s) in _CONV_CFG:
        h = (h - k) // s + 1
        w = (w - k) // s + 1
    return h, w


def conv_out_size(input_shape):
    h, w = _conv_out_hw(input_shape)
    return 64 * h * w


def init_params(key, input_shape=INPUT_SHAPE, num_directions=NUM_DIRECTIONS):
    """PyTorch-layout params: conv weights OIHW, fc/head weights stored (in, out),
    fc rows in NCHW-flatten order (like torch's x.view(B, -1))."""
    co = conv_out_size(input_shape)
    keys = jax.random.split(key, 14)

    def u(k, shape, fan_in):
        bound = 1.0 / jnp.sqrt(float(fan_in))
        return jax.random.uniform(k, shape, jnp.float32, -bound, bound)

    return {
        "conv1_w": u(keys[0], (16, 5, 5, 5), 5 * 5 * 5),
        "conv1_b": u(keys[1], (16,), 5 * 5 * 5),
        "conv2_w": u(keys[2], (32, 16, 3, 3), 16 * 3 * 3),
        "conv2_b": u(keys[3], (32,), 16 * 3 * 3),
        "conv3_w": u(keys[4], (64, 32, 3, 3), 32 * 3 * 3),
        "conv3_b": u(keys[5], (64,), 32 * 3 * 3),
        "fc_w":    u(keys[6], (co, 256), co),
        "fc_b":    u(keys[7], (256,), co),
        "dir_w":   u(keys[8], (256, num_directions), 256),
        "dir_b":   u(keys[9], (num_directions,), 256),
        "mode_w":  u(keys[10], (256, 2), 256),
        "mode_b":  u(keys[11], (2,), 256),
        "crit_w":  u(keys[12], (256, 1), 256),
        "crit_b":  u(keys[13], (1,), 256),
    }


def prepare_params(params, input_shape=INPUT_SHAPE, num_directions=NUM_DIRECTIONS):
    """One-time layout/dtype plumbing (free at init; removes per-call transposes):
      * conv weights OIHW -> (kh*kw*C_in, C_out) bf16 (matches im2col patch order),
      * fc weight rows permuted from NCHW-flatten to NHWC-flatten order, bf16,
      * three head weights concatenated (+ zero lane padding) into one matrix.
    """
    def conv_w(w_oihw):
        o, i, kh, kw = w_oihw.shape
        return (jnp.transpose(w_oihw, (2, 3, 1, 0))
                .reshape(kh * kw * i, o).astype(jnp.bfloat16))

    oh, ow = _conv_out_hw(input_shape)
    c_out = 64
    # row index c*oh*ow + h*ow + w  ->  h*ow*c_out + w*c_out + c
    fc_w = params["fc_w"].reshape(c_out, oh, ow, 256)
    fc_w = jnp.transpose(fc_w, (1, 2, 0, 3)).reshape(c_out * oh * ow, 256)

    nc = ((num_directions + 3) + 7) // 8 * 8            # head lanes, padded to mult. of 8
    pad = nc - (num_directions + 3)
    heads_w = jnp.concatenate(
        [params["dir_w"], params["mode_w"], params["crit_w"],
         jnp.zeros((256, pad), jnp.float32)], axis=1)
    heads_b = jnp.concatenate(
        [params["dir_b"], params["mode_b"], params["crit_b"],
         jnp.zeros((pad,), jnp.float32)])

    return {
        "conv1_w": conv_w(params["conv1_w"]),
        "conv1_b": params["conv1_b"].reshape(1, -1).astype(jnp.float32),
        "conv2_w": conv_w(params["conv2_w"]),
        "conv2_b": params["conv2_b"].reshape(1, -1).astype(jnp.float32),
        "conv3_w": conv_w(params["conv3_w"]),
        "conv3_b": params["conv3_b"].reshape(1, -1).astype(jnp.float32),
        "fc_w": fc_w.astype(jnp.bfloat16),
        "fc_b": params["fc_b"].reshape(1, -1).astype(jnp.float32),
        "heads_w": heads_w.astype(jnp.bfloat16),
        "heads_b": heads_b.reshape(1, -1).astype(jnp.float32),
    }


# ----------------------------------------------------------------------------
# Forward pass
# ----------------------------------------------------------------------------
@jax.jit
def actor_critic_forward(prep, x_nchw):
    nd = NUM_DIRECTIONS
    x = jnp.transpose(x_nchw, (0, 2, 3, 1)).astype(jnp.bfloat16)   # NHWC, once
    x = conv2d_relu_nhwc(x, prep["conv1_w"], prep["conv1_b"], k=5, stride=2)
    x = conv2d_relu_nhwc(x, prep["conv2_w"], prep["conv2_b"], k=3, stride=2)
    x = conv2d_relu_nhwc(x, prep["conv3_w"], prep["conv3_b"], k=3, stride=2)
    B = x.shape[0]
    flat = x.reshape(B, -1)          # NHWC flatten; fc_w rows were permuted to match
    out = pallas_fc_heads(flat, prep["fc_w"], prep["fc_b"],
                          prep["heads_w"], prep["heads_b"], nd=nd)
    direction_probs = out[:, :nd]
    mode_probs = out[:, nd:nd + 2]
    value = out[:, nd + 2:nd + 3]
    return direction_probs, mode_probs, value


@jax.jit
def reference_forward(params, x_nchw):
    """Plain-JAX/XLA reference following the original PyTorch (NCHW) layout and
    the same bf16-input / f32-accumulate dtype plan, for a numerical cross-check."""
    def conv(x, w, b, stride):
        y = lax.conv_general_dilated(
            x, w.astype(jnp.bfloat16), window_strides=(stride, stride),
            padding="VALID", dimension_numbers=("NCHW", "OIHW", "NCHW"),
            preferred_element_type=jnp.float32)
        return jnp.maximum(y + b.reshape(1, -1, 1, 1), 0.0).astype(jnp.bfloat16)

    x = x_nchw.astype(jnp.bfloat16)
    x = conv(x, params["conv1_w"], params["conv1_b"], 2)
    x = conv(x, params["conv2_w"], params["conv2_b"], 2)
    x = conv(x, params["conv3_w"], params["conv3_b"], 2)
    flat = x.reshape(x.shape[0], -1)                                 # NCHW flatten
    f = jnp.dot(flat, params["fc_w"].astype(jnp.bfloat16),
                preferred_element_type=jnp.float32) + params["fc_b"]
    f = jnp.maximum(f, 0.0).astype(jnp.bfloat16)

    def head(w, b):
        return jnp.dot(f, w.astype(jnp.bfloat16),
                       preferred_element_type=jnp.float32) + b

    return (jax.nn.softmax(head(params["dir_w"], params["dir_b"]), axis=-1),
            jax.nn.softmax(head(params["mode_w"], params["mode_b"]), axis=-1),
            head(params["crit_w"], params["crit_b"]))


# ----------------------------------------------------------------------------
if __name__ == "__main__":
    key = jax.random.PRNGKey(0)
    pkey, xkey = jax.random.split(key)

    params = init_params(pkey)
    prep = prepare_params(params)

    batch = 2
    x = jax.random.normal(xkey, (batch, 5, *INPUT_SHAPE), dtype=jnp.float32)

    direction_probs, mode_probs, value = actor_critic_forward(prep, x)
    jax.block_until_ready((direction_probs, mode_probs, value))

    assert direction_probs.shape == (batch, NUM_DIRECTIONS)
    assert mode_probs.shape == (batch, 2)
    assert value.shape == (batch, 1)
    assert jnp.allclose(jnp.sum(direction_probs, axis=-1), 1.0, atol=1e-5)
    assert jnp.allclose(jnp.sum(mode_probs, axis=-1), 1.0, atol=1e-5)

    # Cross-check against the plain-JAX reference (original PyTorch layout);
    # differences come only from bf16 rounding / accumulation order.
    ref_d, ref_m, ref_v = reference_forward(params, x)
    assert jnp.allclose(direction_probs, ref_d, atol=2e-2), "direction mismatch"
    assert jnp.allclose(mode_probs, ref_m, atol=2e-2), "mode mismatch"
    assert jnp.allclose(value, ref_v, atol=2e-2), "value mismatch"

    print("KERNEL_OK")
</pallas_src>

<mosaic_0001>
module attributes {stable_mosaic.version = 11 : i64} {
  func.func @_gemm_bias_relu_kernel(%arg0: i32, %arg1: memref<512x125xbf16, #tpu.memory_space<vmem>>, %arg2: memref<125x16xbf16, #tpu.memory_space<vmem>>, %arg3: memref<1x16xf32, #tpu.memory_space<vmem>>, %arg4: memref<512x16xbf16, #tpu.memory_space<vmem>>) attributes {dimension_semantics = [#tpu.dimension_semantics<parallel>], iteration_bounds = array<i64: 5>, scalar_prefetch = 0 : i64, scratch_operands = 0 : i64, tpu.core_type = #tpu.core_type<tc>, window_params = [{transform_indices = @transform_0, window_bounds = array<i64: 512, 125>}, {pipeline_mode = #tpu.pipeline_mode<synchronous>, transform_indices = @transform_1, window_bounds = array<i64: 125, 16>}, {pipeline_mode = #tpu.pipeline_mode<synchronous>, transform_indices = @transform_2, window_bounds = array<i64: 1, 16>}, {transform_indices = @transform_3, window_bounds = array<i64: 512, 16>}]} {
    %c0 = arith.constant 0 : index
    %c0_0 = arith.constant 0 : index
    %0 = vector.load %arg1[%c0, %c0_0] : memref<512x125xbf16, #tpu.memory_space<vmem>>, vector<512x125xbf16>
    %c0_1 = arith.constant 0 : index
    %c0_2 = arith.constant 0 : index
    %1 = vector.load %arg2[%c0_1, %c0_2] : memref<125x16xbf16, #tpu.memory_space<vmem>>, vector<125x16xbf16>
    %cst = arith.constant dense<0.000000e+00> : vector<512x16xf32>
    %2 = tpu.matmul %0, %1, %cst {dimension_numbers = #tpu.dot_dimension_numbers<[1], [0], [0], [1], [0, 0, 1, 1], [], []>} : vector<512x125xbf16>, vector<125x16xbf16>, vector<512x16xf32> -> vector<512x16xf32>
    %c0_3 = arith.constant 0 : index
    %c0_4 = arith.constant 0 : index
    %3 = vector.load %arg3[%c0_3, %c0_4] : memref<1x16xf32, #tpu.memory_space<vmem>>, vector<1x16xf32>
    %4 = vector.broadcast %3 : vector<1x16xf32> to vector<512x16xf32>
    %5 = arith.addf %2, %4 : vector<512x16xf32>
    %cst_5 = arith.constant 0.000000e+00 : f32
    %6 = vector.broadcast %cst_5 : f32 to vector<512x16xf32>
    %7 = arith.maximumf %5, %6 : vector<512x16xf32>
    %8 = arith.truncf %7 : vector<512x16xf32> to vector<512x16xbf16>
    %c0_6 = arith.constant 0 : index
    %c0_7 = arith.constant 0 : index
    %9 = vector.load %arg4[%c0_6, %c0_7] : memref<512x16xbf16, #tpu.memory_space<vmem>>, vector<512x16xbf16>
    tpu.vector_store %arg4[%c0_6, %c0_7], %8 {strides = array<i32>} : memref<512x16xbf16, #tpu.memory_space<vmem>>, vector<512x16xbf16>,
    return
  }
  func.func @transform_0(%arg0: i32) -> (i32, i32) {
    %c0_i32 = arith.constant 0 : i32
    %c0_i32_0 = arith.constant 0 : i32
    return %arg0, %c0_i32 : i32, i32
  }
  func.func @transform_1(%arg0: i32) -> (i32, i32) {
    %c0_i32 = arith.constant 0 : i32
    %c0_i32_0 = arith.constant 0 : i32
    %c0_i32_1 = arith.constant 0 : i32
    return %c0_i32, %c0_i32_0 : i32, i32
  }
  func.func @transform_2(%arg0: i32) -> (i32, i32) {
    %c0_i32 = arith.constant 0 : i32
    %c0_i32_0 = arith.constant 0 : i32
    %c0_i32_1 = arith.constant 0 : i32
    return %c0_i32, %c0_i32_0 : i32, i32
  }
  func.func @transform_3(%arg0: i32) -> (i32, i32) {
    %c0_i32 = arith.constant 0 : i32
    %c0_i32_0 = arith.constant 0 : i32
    return %arg0, %c0_i32 : i32, i32
  }
}

module attributes {stable_mosaic.version = 11 : i64} {
  func.func @_gemm_bias_relu_kernel(%arg0: i32, %arg1: memref<256x144xbf16, #tpu.memory_space<vmem>>, %arg2: memref<144x32xbf16, #tpu.memory_space<vmem>>, %arg3: memref<1x32xf32, #tpu.memory_space<vmem>>, %arg4: memref<256x32xbf16, #tpu.memory_space<vmem>>) attributes {dimension_semantics = [#tpu.dimension_semantics<parallel>], iteration_bounds = array<i64: 2>, scalar_prefetch = 0 : i64, scratch_operands = 0 : i64, tpu.core_type = #tpu.core_type<tc>, window_params = [{transform_indices = @transform_0, window_bounds = array<i64: 256, 144>}, {pipeline_mode = #tpu.pipeline_mode<synchronous>, transform_indices = @transform_1, window_bounds = array<i64: 144, 32>}, {pipeline_mode = #tpu.pipeline_mode<synchronous>, transform_indices = @transform_2, window_bounds = array<i64: 1, 32>}, {transform_indices = @transform_3, window_bounds = array<i64: 256, 32>}]} {
    %c0 = arith.constant 0 : index
    %c0_0 = arith.constant 0 : index
    %0 = vector.load %arg1[%c0, %c0_0] : memref<256x144xbf16, #tpu.memory_space<vmem>>, vector<256x144xbf16>
    %c0_1 = arith.constant 0 : index
    %c0_2 = arith.constant 0 : index
    %1 = vector.load %arg2[%c0_1, %c0_2] : memref<144x32xbf16, #tpu.memory_space<vmem>>, vector<144x32xbf16>
    %cst = arith.constant dense<0.000000e+00> : vector<256x32xf32>
    %2 = tpu.matmul %0, %1, %cst {dimension_numbers = #tpu.dot_dimension_numbers<[1], [0], [0], [1], [0, 0, 1, 1], [], []>} : vector<256x144xbf16>, vector<144x32xbf16>, vector<256x32xf32> -> vector<256x32xf32>
    %c0_3 = arith.constant 0 : index
    %c0_4 = arith.constant 0 : index
    %3 = vector.load %arg3[%c0_3, %c0_4] : memref<1x32xf32, #tpu.memory_space<vmem>>, vector<1x32xf32>
    %4 = vector.broadcast %3 : vector<1x32xf32> to vector<256x32xf32>
    %5 = arith.addf %2, %4 : vector<256x32xf32>
    %cst_5 = arith.constant 0.000000e+00 : f32
    %6 = vector.broadcast %cst_5 : f32 to vector<256x32xf32>
    %7 = arith.maximumf %5, %6 : vector<256x32xf32>
    %8 = arith.truncf %7 : vector<256x32xf32> to vector<256x32xbf16>
    %c0_6 = arith.constant 0 : index
    %c0_7 = arith.constant 0 : index
    %9 = vector.load %arg4[%c0_6, %c0_7] : memref<256x32xbf16, #tpu.memory_space<vmem>>, vector<256x32xbf16>
    tpu.vector_store %arg4[%c0_6, %c0_7], %8 {strides = array<i32>} : memref<256x32xbf16, #tpu.memory_space<vmem>>, vector<256x32xbf16>,
    return
  }
  func.func @transform_0(%arg0: i32) -> (i32, i32) {
    %c0_i32 = arith.constant 0 : i32
    %c0_i32_0 = arith.constant 0 : i32
    return %arg0, %c0_i32 : i32, i32
  }
  func.func @transform_1(%arg0: i32) -> (i32, i32) {
    %c0_i32 = arith.constant 0 : i32
    %c0_i32_0 = arith.constant 0 : i32
    %c0_i32_1 = arith.constant 0 : i32
    return %c0_i32, %c0_i32_0 : i32, i32
  }
  func.func @transform_2(%arg0: i32) -> (i32, i32) {
    %c0_i32 = arith.constant 0 : i32
    %c0_i32_0 = arith.constant 0 : i32
    %c0_i32_1 = arith.constant 0 : i32
    return %c0_i32, %c0_i32_0 : i32, i32
  }
  func.func @transform_3(%arg0: i32) -> (i32, i32) {
    %c0_i32 = arith.constant 0 : i32
    %c0_i32_0 = arith.constant 0 : i32
    return %arg0, %c0_i32 : i32, i32
  }
}

module attributes {stable_mosaic.version = 11 : i64} {
  func.func @_gemm_bias_relu_kernel(%arg0: i32, %arg1: memref<64x288xbf16, #tpu.memory_space<vmem>>, %arg2: memref<288x64xbf16, #tpu.memory_space<vmem>>, %arg3: memref<1x64xf32, #tpu.memory_space<vmem>>, %arg4: memref<64x64xbf16, #tpu.memory_space<vmem>>) attributes {dimension_semantics = [#tpu.dimension_semantics<parallel>], iteration_bounds = array<i64: 2>, scalar_prefetch = 0 : i64, scratch_operands = 0 : i64, tpu.core_type = #tpu.core_type<tc>, window_params = [{transform_indices = @transform_0, window_bounds = array<i64: 64, 288>}, {pipeline_mode = #tpu.pipeline_mode<synchronous>, transform_indices = @transform_1, window_bounds = array<i64: 288, 64>}, {pipeline_mode = #tpu.pipeline_mode<synchronous>, transform_indices = @transform_2, window_bounds = array<i64: 1, 64>}, {transform_indices = @transform_3, window_bounds = array<i64: 64, 64>}]} {
    %c0 = arith.constant 0 : index
    %c0_0 = arith.constant 0 : index
    %0 = vector.load %arg1[%c0, %c0_0] : memref<64x288xbf16, #tpu.memory_space<vmem>>, vector<64x288xbf16>
    %c0_1 = arith.constant 0 : index
    %c0_2 = arith.constant 0 : index
    %1 = vector.load %arg2[%c0_1, %c0_2] : memref<288x64xbf16, #tpu.memory_space<vmem>>, vector<288x64xbf16>
    %cst = arith.constant dense<0.000000e+00> : vector<64x64xf32>
    %2 = tpu.matmul %0, %1, %cst {dimension_numbers = #tpu.dot_dimension_numbers<[1], [0], [0], [1], [0, 0, 1, 1], [], []>} : vector<64x288xbf16>, vector<288x64xbf16>, vector<64x64xf32> -> vector<64x64xf32>
    %c0_3 = arith.constant 0 : index
    %c0_4 = arith.constant 0 : index
    %3 = vector.load %arg3[%c0_3, %c0_4] : memref<1x64xf32, #tpu.memory_space<vmem>>, vector<1x64xf32>
    %4 = vector.broadcast %3 : vector<1x64xf32> to vector<64x64xf32>
    %5 = arith.addf %2, %4 : vector<64x64xf32>
    %cst_5 = arith.constant 0.000000e+00 : f32
    %6 = vector.broadcast %cst_5 : f32 to vector<64x64xf32>
    %7 = arith.maximumf %5, %6 : vector<64x64xf32>
    %8 = arith.truncf %7 : vector<64x64xf32> to vector<64x64xbf16>
    %c0_6 = arith.constant 0 : index
    %c0_7 = arith.constant 0 : index
    %9 = vector.load %arg4[%c0_6, %c0_7] : memref<64x64xbf16, #tpu.memory_space<vmem>>, vector<64x64xbf16>
    tpu.vector_store %arg4[%c0_6, %c0_7], %8 {strides = array<i32>} : memref<64x64xbf16, #tpu.memory_space<vmem>>, vector<64x64xbf16>,
    return
  }
  func.func @transform_0(%arg0: i32) -> (i32, i32) {
    %c0_i32 = arith.constant 0 : i32
    %c0_i32_0 = arith.constant 0 : i32
    return %arg0, %c0_i32 : i32, i32
  }
  func.func @transform_1(%arg0: i32) -> (i32, i32) {
    %c0_i32 = arith.constant 0 : i32
    %c0_i32_0 = arith.constant 0 : i32
    %c0_i32_1 = arith.constant 0 : i32
    return %c0_i32, %c0_i32_0 : i32, i32
  }
  func.func @transform_2(%arg0: i32) -> (i32, i32) {
    %c0_i32 = arith.constant 0 : i32
    %c0_i32_0 = arith.constant 0 : i32
    %c0_i32_1 = arith.constant 0 : i32
    return %c0_i32, %c0_i32_0 : i32, i32
  }
  func.func @transform_3(%arg0: i32) -> (i32, i32) {
    %c0_i32 = arith.constant 0 : i32
    %c0_i32_0 = arith.constant 0 : i32
    return %arg0, %c0_i32 : i32, i32
  }
}

module attributes {stable_mosaic.version = 11 : i64} {
  func.func @_fc_heads_kernel(%arg0: memref<2x3136xbf16, #tpu.memory_space<vmem>>, %arg1: memref<3136x256xbf16, #tpu.memory_space<vmem>>, %arg2: memref<1x256xf32, #tpu.memory_space<vmem>>, %arg3: memref<256x8xbf16, #tpu.memory_space<vmem>>, %arg4: memref<1x8xf32, #tpu.memory_space<vmem>>, %arg5: memref<2x8xf32, #tpu.memory_space<vmem>>) attributes {dimension_semantics = [], scalar_prefetch = 0 : i64, scratch_operands = 0 : i64, tpu.core_type = #tpu.core_type<tc>} {
    %c0 = arith.constant 0 : index
    %c0_0 = arith.constant 0 : index
    %0 = vector.load %arg0[%c0, %c0_0] : memref<2x3136xbf16, #tpu.memory_space<vmem>>, vector<2x3136xbf16>
    %c0_1 = arith.constant 0 : index
    %c0_2 = arith.constant 0 : index
    %1 = vector.load %arg1[%c0_1, %c0_2] : memref<3136x256xbf16, #tpu.memory_space<vmem>>, vector<3136x256xbf16>
    %cst = arith.constant dense<0.000000e+00> : vector<2x256xf32>
    %2 = tpu.matmul %0, %1, %cst {dimension_numbers = #tpu.dot_dimension_numbers<[1], [0], [0], [1], [0, 0, 1, 1], [], []>} : vector<2x3136xbf16>, vector<3136x256xbf16>, vector<2x256xf32> -> vector<2x256xf32>
    %c0_3 = arith.constant 0 : index
    %c0_4 = arith.constant 0 : index
    %3 = vector.load %arg2[%c0_3, %c0_4] : memref<1x256xf32, #tpu.memory_space<vmem>>, vector<1x256xf32>
    %4 = vector.broadcast %3 : vector<1x256xf32> to vector<2x256xf32>
    %5 = arith.addf %2, %4 : vector<2x256xf32>
    %cst_5 = arith.constant 0.000000e+00 : f32
    %6 = vector.broadcast %cst_5 : f32 to vector<2x256xf32>
    %7 = arith.maximumf %5, %6 : vector<2x256xf32>
    %8 = arith.truncf %7 : vector<2x256xf32> to vector<2x256xbf16>
    %c0_6 = arith.constant 0 : index
    %c0_7 = arith.constant 0 : index
    %9 = vector.load %arg3[%c0_6, %c0_7] : memref<256x8xbf16, #tpu.memory_space<vmem>>, vector<256x8xbf16>
    %cst_8 = arith.constant dense<0.000000e+00> : vector<2x8xf32>
    %10 = tpu.matmul %8, %9, %cst_8 {dimension_numbers = #tpu.dot_dimension_numbers<[1], [0], [0], [1], [0, 0, 1, 1], [], []>} : vector<2x256xbf16>, vector<256x8xbf16>, vector<2x8xf32> -> vector<2x8xf32>
    %c0_9 = arith.constant 0 : index
    %c0_10 = arith.constant 0 : index
    %11 = vector.load %arg4[%c0_9, %c0_10] : memref<1x8xf32, #tpu.memory_space<vmem>>, vector<1x8xf32>
    %12 = vector.broadcast %11 : vector<1x8xf32> to vector<2x8xf32>
    %13 = arith.addf %10, %12 : vector<2x8xf32>
    %14 = tpu.iota {dimensions = array<i32: 1>} : vector<2x8xi32>
    %c4_i32 = arith.constant 4 : i32
    %15 = vector.broadcast %c4_i32 : i32 to vector<2x8xi32>
    %16 = arith.cmpi slt, %14, %15 : vector<2x8xi32>
    %c4_i32_11 = arith.constant 4 : i32
    %17 = vector.broadcast %c4_i32_11 : i32 to vector<2x8xi32>
    %18 = arith.cmpi sge, %14, %17 : vector<2x8xi32>
    %c6_i32 = arith.constant 6 : i32
    %19 = vector.broadcast %c6_i32 : i32 to vector<2x8xi32>
    %20 = arith.cmpi slt, %14, %19 : vector<2x8xi32>
    %21 = arith.andi %18, %20 : vector<2x8xi1>
    %c6_i32_12 = arith.constant 6 : i32
    %22 = vector.broadcast %c6_i32_12 : i32 to vector<2x8xi32>
    %23 = arith.cmpi eq, %14, %22 : vector<2x8xi32>
    %cst_13 = arith.constant -1.000000e+30 : f32
    %24 = vector.broadcast %cst_13 : f32 to vector<2x8xf32>
    %25 = arith.select %16, %13, %24 : vector<2x8xi1>, vector<2x8xf32>
    %cst_14 = arith.constant dense<0xFF800000> : vector<2xf32>
    %26 = vector.multi_reduction <maximumf>, %25, %cst_14 [1] : vector<2x8xf32> to vector<2xf32>
    %27 = vector.shape_cast %26 : vector<2xf32> to vector<2x1xf32>
    %28 = vector.broadcast %27 : vector<2x1xf32> to vector<2x8xf32>
    %29 = arith.subf %25, %28 : vector<2x8xf32>
    %30 = math.exp %29 : vector<2x8xf32>
    %cst_15 = arith.constant 0.000000e+00 : f32
    %31 = vector.broadcast %cst_15 : f32 to vector<2x8xf32>
    %32 = arith.select %16, %30, %31 : vector<2x8xi1>, vector<2x8xf32>
    %cst_16 = arith.constant dense<0.000000e+00> : vector<2xf32>
    %33 = vector.multi_reduction <add>, %32, %cst_16 [1] : vector<2x8xf32> to vector<2xf32>
    %34 = vector.shape_cast %33 : vector<2xf32> to vector<2x1xf32>
    %35 = vector.broadcast %34 : vector<2x1xf32> to vector<2x8xf32>
    %36 = arith.divf %32, %35 : vector<2x8xf32>
    %cst_17 = arith.constant -1.000000e+30 : f32
    %37 = vector.broadcast %cst_17 : f32 to vector<2x8xf32>
    %38 = arith.select %21, %13, %37 : vector<2x8xi1>, vector<2x8xf32>
    %cst_18 = arith.constant dense<0xFF800000> : vector<2xf32>
    %39 = vector.multi_reduction <maximumf>, %38, %cst_18 [1] : vector<2x8xf32> to vector<2xf32>
    %40 = vector.shape_cast %39 : vector<2xf32> to vector<2x1xf32>
    %41 = vector.broadcast %40 : vector<2x1xf32> to vector<2x8xf32>
    %42 = arith.subf %38, %41 : vector<2x8xf32>
    %43 = math.exp %42 : vector<2x8xf32>
    %cst_19 = arith.constant 0.000000e+00 : f32
    %44 = vector.broadcast %cst_19 : f32 to vector<2x8xf32>
    %45 = arith.select %21, %43, %44 : vector<2x8xi1>, vector<2x8xf32>
    %cst_20 = arith.constant dense<0.000000e+00> : vector<2xf32>
    %46 = vector.multi_reduction <add>, %45, %cst_20 [1] : vector<2x8xf32> to vector<2xf32>
    %47 = vector.shape_cast %46 : vector<2xf32> to vector<2x1xf32>
    %48 = vector.broadcast %47 : vector<2x1xf32> to vector<2x8xf32>
    %49 = arith.divf %45, %48 : vector<2x8xf32>
    %cst_21 = arith.constant 0.000000e+00 : f32
    %50 = vector.broadcast %cst_21 : f32 to vector<2x8xf32>
    %51 = arith.select %23, %13, %50 : vector<2x8xi1>, vector<2x8xf32>
    %52 = arith.select %21, %49, %51 : vector<2x8xi1>, vector<2x8xf32>
    %53 = arith.select %16, %36, %52 : vector<2x8xi1>, vector<2x8xf32>
    %c0_22 = arith.constant 0 : index
    %c0_23 = arith.constant 0 : index
    %54 = vector.load %arg5[%c0_22, %c0_23] : memref<2x8xf32, #tpu.memory_space<vmem>>, vector<2x8xf32>
    tpu.vector_store %arg5[%c0_22, %c0_23], %53 {strides = array<i32>} : memref<2x8xf32, #tpu.memory_space<vmem>>, vector<2x8xf32>,
    return
  }
}

</mosaic_0001>

<llo_original>
// kernel: actor_critic_forward.4
$region0: #{actor_critic_forward.4}
  #allocation0 [shape = 'u32[]', space=smem, size = 0x4, offset = 0x4, fixed_abs, tag = 'smem constant byte address 0x4 - core index']
  #allocation1 [shape = 'u32[144,128]{1,0:T(1,128)}', space=vmem, size = 0x12000, scoped, tag = 'internal scratch']
  %s0 = inlined_call_operand.vmem [shape: bf16[2178,125], index: 0, kind: input, shape index: {}]
  %s1 = inlined_call_operand.vmem [shape: bf16[125,16], index: 1, kind: input, shape index: {}]
  %s2 = inlined_call_operand.vmem [shape: f32[1,16], index: 2, kind: input, shape index: {}]
  %s3 = inlined_call_operand.vmem [shape: bf16[2178,16], index: 3, kind: output, shape index: {}]
  %s4 = sld [smem:[#allocation0]]
  $region89: #{actor_critic_forward.4} parent=0
    _
  %s6 = ssub.s32 1, %s4
  %s7 = scalar_select 0, %s6, %s4
  $region1: #{actor_critic_forward.4} parent=0
    #allocation2 [shape = 'u8[262144]{0}', space=vmem, size = 0x40000, scoped, tag = 'output window, operand 0']
    loop: start=0, step=1, limit=7
    $region2: #{actor_critic_forward.4} parent=1 // loop_pre_header
      _
    $region3: #{actor_critic_forward.4} parent=1 // loop_header
      %s9 = sphi 0, %s13
      %p10 = scmp.ge.s32.totalorder %s9, 7
      %s19 = sphi 0, %s21
      %s22 = sphi 0, %s19
      %s23 = sphi 0, %s22
      %s39 = sphi 0, %s23
      %s43 = sphi 0, %s43
      %s45 = sphi 0, %s43
      %s46 = sphi 0, %s45
      %s60 = sphi 0, %s46
      %s64 = sphi 0, %s64
      %s66 = sphi 0, %s64
      %s67 = sphi 0, %s66
      %s81 = sphi 0, %s67
      %s87 = sphi 0, %s89
      %s90 = sphi 0, %s87
      %s91 = sphi 0, %s90
      %s107 = sphi 0, %s91
    $region4: #{actor_critic_forward.4} parent=1 // loop_header_branch
      %12 = sbr.rel (%p10) target = $region8
    $region5: #{actor_critic_forward.4} parent=1 // loop_body
      %s14 = ssub.s32 %s9, 1
      %s15 = ssub.s32 %s9, 2
      %s16 = sadd.s32 %s9, 1
      %s17 = ssub.s32 %s9, %s16
      %p18 = scmp.eq.s32.totalorder %s17, 0
      %s20 = sadd.s32 %s19, 1
      %s21 = scalar_select %p18, %s19, %s20
      %p24 = pneg %p18
      %p25 = scmp.eq.s32.totalorder %s9, 4
      %p26 = por %p24, %p25
      %p27 = scmp.ne.s32.totalorder %s19, %s22
      %p28 = scmp.eq.s32.totalorder %s9, 0
      %p29 = por %p27, %p28
      %p30 = scmp.ne.s32.totalorder %s19, %s22
      %p31 = scmp.eq.s32.totalorder %s14, 4
      %p32 = por %p30, %p31
      %p33 = scmp.ne.s32.totalorder %s22, %s23
      %p34 = scmp.eq.s32.totalorder %s14, 0
      %p35 = por %p33, %p34
      %p36 = scmp.ne.s32.totalorder %s22, %s23
      %p37 = scmp.eq.s32.totalorder %s15, 4
      %p38 = por %p36, %p37
      %p40 = scmp.ne.s32.totalorder %s23, %s39
      %p41 = scmp.eq.s32.totalorder %s15, 0
      %p42 = por %p40, %p41
      %s44 = sadd.s32 %s43, 1
      %p47 = scmp.eq.s32.totalorder %s9, 4
      %p48 = scmp.ne.s32.totalorder %s43, %s45
      %p49 = scmp.eq.s32.totalorder %s9, 0
      %p50 = por %p48, %p49
      %p51 = scmp.ne.s32.totalorder %s43, %s45
      %p52 = scmp.eq.s32.totalorder %s14, 4
      %p53 = por %p51, %p52
      %p54 = scmp.ne.s32.totalorder %s45, %s46
      %p55 = scmp.eq.s32.totalorder %s14, 0
      %p56 = por %p54, %p55
      %p57 = scmp.ne.s32.totalorder %s45, %s46
      %p58 = scmp.eq.s32.totalorder %s15, 4
      %p59 = por %p57, %p58
      %p61 = scmp.ne.s32.totalorder %s46, %s60
      %p62 = scmp.eq.s32.totalorder %s15, 0
      %p63 = por %p61, %p62
      %s65 = sadd.s32 %s64, 1
      %p68 = scmp.eq.s32.totalorder %s9, 4
      %p69 = scmp.ne.s32.totalorder %s64, %s66
      %p70 = scmp.eq.s32.totalorder %s9, 0
      %p71 = por %p69, %p70
      %p72 = scmp.ne.s32.totalorder %s64, %s66
      %p73 = scmp.eq.s32.totalorder %s14, 4
      %p74 = por %p72, %p73
      %p75 = scmp.ne.s32.totalorder %s66, %s67
      %p76 = scmp.eq.s32.totalorder %s14, 0
      %p77 = por %p75, %p76
      %p78 = scmp.ne.s32.totalorder %s66, %s67
      %p79 = scmp.eq.s32.totalorder %s15, 4
      %p80 = por %p78, %p79
      %p82 = scmp.ne.s32.totalorder %s67, %s81
      %p83 = scmp.eq.s32.totalorder %s15, 0
      %p84 = por %p82, %p83
      %s85 = ssub.s32 %s9, %s16
      %p86 = scmp.eq.s32.totalorder %s85, 0
      %s88 = sadd.s32 %s87, 1
      %s89 = scalar_select %p86, %s87, %s88
      %p92 = pneg %p86
      %p93 = scmp.eq.s32.totalorder %s9, 4
      %p94 = por %p92, %p93
      %p95 = scmp.ne.s32.totalorder %s87, %s90
      %p96 = scmp.eq.s32.totalorder %s9, 0
      %p97 = por %p95, %p96
      %p98 = scmp.ne.s32.totalorder %s87, %s90
      %p99 = scmp.eq.s32.totalorder %s14, 4
      %p100 = por %p98, %p99
      %p101 = scmp.ne.s32.totalorder %s90, %s91
      %p102 = scmp.eq.s32.totalorder %s14, 0
      %p103 = por %p101, %p102
      %p104 = scmp.ne.s32.totalorder %s90, %s91
      %p105 = scmp.eq.s32.totalorder %s15, 4
      %p106 = por %p104, %p105
      %p108 = scmp.ne.s32.totalorder %s91, %s107
      %p109 = scmp.eq.s32.totalorder %s15, 0
      %p110 = por %p108, %p109
      %p111 = scmp.le.s32.totalorder 1, %s9
      %p112 = scmp.lt.s32.totalorder %s9, 6
      %p113 = pnand %p111, %p112
      %p114 = pneg %p113
      // Predicated region
      $region9: #{actor_critic_forward.4} parent=5 // pred_check
        _
      $region10: #{actor_critic_forward.4} parent=5 // pred_check_branch
        %116 = sbr.rel (%p113) target = $region12
      $region11: #{actor_critic_forward.4} parent=5 // pred_region
        %s117 = ssub.s32 %s9, 1
        // Predicated region
        $region13: #{actor_critic_forward.4} parent=11 // pred_check
          %p118 = pneg %p56
        $region14: #{actor_critic_forward.4} parent=11 // pred_check_branch
          %120 = sbr.rel (%p118) target = $region16
        $region15: #{actor_critic_forward.4} parent=11 // pred_region
          _
        $region16: #{actor_critic_forward.4} parent=11 // pred_fallthru
          _
        // Predicated region
        $region17: #{actor_critic_forward.4} parent=11 // pred_check
          %p121 = pneg %p77
        $region18: #{actor_critic_forward.4} parent=11 // pred_check_branch
          %123 = sbr.rel (%p121) target = $region20
        $region19: #{actor_critic_forward.4} parent=11 // pred_region
          _
        $region20: #{actor_critic_forward.4} parent=11 // pred_fallthru
          _
      $region12: #{actor_critic_forward.4} parent=5 // pred_fallthru
        _
      %p124 = scmp.lt.s32.totalorder %s9, 5
      // Predicated region
      $region21: #{actor_critic_forward.4} parent=5 // pred_check
        %p125 = pneg %p124
      $region22: #{actor_critic_forward.4} parent=5 // pred_check_branch
        %127 = sbr.rel (%p125) target = $region24
      $region23: #{actor_critic_forward.4} parent=5 // pred_region
        // Predicated region
        $region25: #{actor_critic_forward.4} parent=23 // pred_check
          %p128 = pneg %p29
        $region26: #{actor_critic_forward.4} parent=23 // pred_check_branch
          %130 = sbr.rel (%p128) target = $region28
        $region27: #{actor_critic_forward.4} parent=23 // pred_region
          %s131 = smul.u32 64, %s9
          %s132 = ssub.s32 273, %s131
          %p133 = scmp.lt.s32.totalorder %s132, 64
          %s134 = scalar_select %p133, %s132, 64
          %s135 = smul.u32 64, %s134
          %p136 = scmp.lt.s32.totalorder %s131, 272
          %s137 = scalar_select %p136, %s131, 272
          %s138 = smul.addr %s137, 4
          %s139 = scalar_lea.vmem %s0, %s138
          %s140 = smul.u32 64, %s9
          %s141 = ssub.s32 273, %s140
          %p142 = scmp.lt.s32.totalorder %s141, 64
          %s143 = scalar_select %p142, %s141, 64
          %s144 = smul.u32 64, %s143
        $region28: #{actor_critic_forward.4} parent=23 // pred_fallthru
          _
      $region24: #{actor_critic_forward.4} parent=5 // pred_fallthru
        _
      %p145 = scmp.le.s32.totalorder 1, %s9
      %p146 = scmp.lt.s32.totalorder %s9, 6
      %p147 = pnand %p145, %p146
      %p148 = pneg %p147
      // Predicated region
      $region29: #{actor_critic_forward.4} parent=5 // pred_check
        _
      $region30: #{actor_critic_forward.4} parent=5 // pred_check_branch
        %150 = sbr.rel (%p147) target = $region32
      $region31: #{actor_critic_forward.4} parent=5 // pred_region
        %s151 = ssub.s32 %s9, 1
        %s152 = smul.u32 64, %s14
        %s153 = ssub.s32 273, %s152
        %p154 = scmp.lt.s32.totalorder %s153, 64
        %s155 = scalar_select %p154, %s153, 64
        %s156 = smul.u32 64, %s155
        %p157 = scmp.lt.s32.totalorder %s152, 272
        %s158 = scalar_select %p157, %s152, 272
        %s159 = smul.addr %s158, 4
        %s160 = scalar_lea.vmem %s0, %s159
        %p161 = pneg %p35
        %p162 = pneg %p32
        %p163 = pneg %p56
        %p164 = pneg %p53
        %p165 = pneg %p77
        %p166 = pneg %p74
        %p167 = pneg %p103
        %p168 = pneg %p100
        %s169 = sand.u32 %s90, 1
        %s170 = sand.u32 %s90, 1
        %s171 = smul.addr %s170, 256
        %s172 = scalar_lea.vmem [#allocation2], %s171
        %s173 = smul.u32 64, %s14
        %s174 = ssub.s32 273, %s173
        %p175 = scmp.lt.s32.totalorder %s174, 64
        %s176 = scalar_select %p175, %s174, 64
        %s177 = smul.u32 64, %s176
        %p178 = scmp.lt.s32.totalorder %s173, 272
        %s179 = scalar_select %p178, %s173, 272
        %s180 = smul.addr %s179, 4
        %s181 = scalar_lea.vmem %s0, %s180
        %s182 = smul.u32 64, %s14
        %s183 = ssub.s32 273, %s182
        %p184 = scmp.lt.s32.totalorder %s183, 64
        %s185 = scalar_select %p184, %s183, 64
        %s186 = smul.u32 64, %s185
        %s187 = smul.u32 64, %s14
        %s188 = ssub.s32 273, %s187
        %p189 = scmp.lt.s32.totalorder %s188, 64
        %s190 = scalar_select %p189, %s188, 64
        %s191 = smul.u32 64, %s190
        %v193 = vld [vmem:[%s181] sm:$0xf]
        %v194 = vld [vmem:[%s181 + $0x4] sm:$0xf]
        %v195 = vld [vmem:[%s181 + $0x8] sm:$0xf]
        %v196 = vld [vmem:[%s181 + $0xc] sm:$0xf]
        %v197 = vld [vmem:[%s181 + $0x10] sm:$0xf]
        %v198 = vld [vmem:[%s181 + $0x14] sm:$0xf]
        %v199 = vld [vmem:[%s181 + $0x18] sm:$0xf]
        %v200 = vld [vmem:[%s181 + $0x1c] sm:$0xf]
        %v201 = vld [vmem:[%s181 + $0x20] sm:$0xf]
        %v202 = vld [vmem:[%s181 + $0x24] sm:$0xf]
        %v203 = vld [vmem:[%s181 + $0x28] sm:$0xf]
        %v204 = vld [vmem:[%s181 + $0x2c] sm:$0xf]
        %v205 = vld [vmem:[%s181 + $0x30] sm:$0xf]
        %v206 = vld [vmem:[%s181 + $0x34] sm:$0xf]
        %v207 = vld [vmem:[%s181 + $0x38] sm:$0xf]
        %v208 = vld [vmem:[%s181 + $0x3c] sm:$0xf]
        %v209 = vld [vmem:[%s181 + $0x40] sm:$0xf]
        %v210 = vld [vmem:[%s181 + $0x44] sm:$0xf]
        %v211 = vld [vmem:[%s181 + $0x48] sm:$0xf]
        %v212 = vld [vmem:[%s181 + $0x4c] sm:$0xf]
        %v213 = vld [vmem:[%s181 + $0x50] sm:$0xf]
        %v214 = vld [vmem:[%s181 + $0x54] sm:$0xf]
        %v215 = vld [vmem:[%s181 + $0x58] sm:$0xf]
        %v216 = vld [vmem:[%s181 + $0x5c] sm:$0xf]
        %v217 = vld [vmem:[%s181 + $0x60] sm:$0xf]
        %v218 = vld [vmem:[%s181 + $0x64] sm:$0xf]
        %v219 = vld [vmem:[%s181 + $0x68] sm:$0xf]
        %v220 = vld [vmem:[%s181 + $0x6c] sm:$0xf]
        %v221 = vld [vmem:[%s181 + $0x70] sm:$0xf]
        %v222 = vld [vmem:[%s181 + $0x74] sm:$0xf]
        %v223 = vld [vmem:[%s181 + $0x78] sm:$0xf]
        %v224 = vld [vmem:[%s181 + $0x7c] sm:$0xf]
        %v225 = vld [vmem:[%s181 + $0x80] sm:$0xf]
        %v226 = vld [vmem:[%s181 + $0x84] sm:$0xf]
        %v227 = vld [vmem:[%s181 + $0x88] sm:$0xf]
        %v228 = vld [vmem:[%s181 + $0x8c] sm:$0xf]
        %v229 = vld [vmem:[%s181 + $0x90] sm:$0xf]
        %v230 = vld [vmem:[%s181 + $0x94] sm:$0xf]
        %v231 = vld [vmem:[%s181 + $0x98] sm:$0xf]
        %v232 = vld [vmem:[%s181 + $0x9c] sm:$0xf]
        %v233 = vld [vmem:[%s181 + $0xa0] sm:$0xf]
        %v234 = vld [vmem:[%s181 + $0xa4] sm:$0xf]
        %v235 = vld [vmem:[%s181 + $0xa8] sm:$0xf]
        %v236 = vld [vmem:[%s181 + $0xac] sm:$0xf]
        %v237 = vld [vmem:[%s181 + $0xb0] sm:$0xf]
        %v238 = vld [vmem:[%s181 + $0xb4] sm:$0xf]
        %v239 = vld [vmem:[%s181 + $0xb8] sm:$0xf]
        %v240 = vld [vmem:[%s181 + $0xbc] sm:$0xf]
        %v241 = vld [vmem:[%s181 + $0xc0] sm:$0xf]
        %v242 = vld [vmem:[%s181 + $0xc4] sm:$0xf]
        %v243 = vld [vmem:[%s181 + $0xc8] sm:$0xf]
        %v244 = vld [vmem:[%s181 + $0xcc] sm:$0xf]
        %v245 = vld [vmem:[%s181 + $0xd0] sm:$0xf]
        %v246 = vld [vmem:[%s181 + $0xd4] sm:$0xf]
        %v247 = vld [vmem:[%s181 + $0xd8] sm:$0xf]
        %v248 = vld [vmem:[%s181 + $0xdc] sm:$0xf]
        %v249 = vld [vmem:[%s181 + $0xe0] sm:$0xf]
        %v250 = vld [vmem:[%s181 + $0xe4] sm:$0xf]
        %v251 = vld [vmem:[%s181 + $0xe8] sm:$0xf]
        %v252 = vld [vmem:[%s181 + $0xec] sm:$0xf]
        %v253 = vld [vmem:[%s181 + $0xf0] sm:$0xf]
        %v254 = vld [vmem:[%s181 + $0xf4] sm:$0xf]
        %v255 = vld [vmem:[%s181 + $0xf8] sm:$0xf]
        %v256 = vld [vmem:[%s181 + $0xfc] sm:$0xf]
        %v257 = vld [vmem:[%s1] sm:$0xf]
        %v258 = vld [vmem:[%s1 + $0x4] sm:$0xf]
        %v259 = vld [vmem:[%s1 + $0x8] sm:$0xf]
        %v260 = vld [vmem:[%s1 + $0xc] sm:$0xf]
        %v261 = vld [vmem:[%s1 + $0x10] sm:$0xf]
        %v262 = vld [vmem:[%s1 + $0x14] sm:$0xf]
        %v263 = vld [vmem:[%s1 + $0x18] sm:$0xf]
        %v264 = vld [vmem:[%s1 + $0x1c] sm:$0xf]
        %v265 = vld [vmem:[%s1 + $0x20] sm:$0xf]
        %v266 = vld [vmem:[%s1 + $0x24] sm:$0xf]
        %v267 = vld [vmem:[%s1 + $0x28] sm:$0xf]
        %v268 = vld [vmem:[%s1 + $0x2c] sm:$0xf]
        %v269 = vld [vmem:[%s1 + $0x30] sm:$0xf]
        %v270 = vld [vmem:[%s1 + $0x34] sm:$0xf]
        %v271 = vld [vmem:[%s1 + $0x38] sm:$0xf]
        %v272 = vld [vmem:[%s1 + $0x3c] sm:$0x7]
        %v273 = vld [vmem:[%s2] sm:$0x1]
        %v275 = vlaneseq
        %v276 = vshrl.u32 %v275, 7
        %v277 = vsub.s32 0, %v276
        %v278 = vrot.slane %v273, %v277
        %v344 = vunpack.c.l.b16 %v193
        %v345 = vunpack.c.l.b16 %v194
        %v346 = vunpack.c.l.b16 %v195
        %v347 = vunpack.c.l.b16 %v196
        %v348 = vunpack.c.l.b16 %v197
        %v349 = vunpack.c.l.b16 %v198
        %v350 = vunpack.c.l.b16 %v199
        %v351 = vunpack.c.l.b16 %v200
        %v352 = vunpack.c.l.b16 %v201
        %v353 = vunpack.c.l.b16 %v202
        %v354 = vunpack.c.l.b16 %v203
        %v355 = vunpack.c.l.b16 %v204
        %v356 = vunpack.c.l.b16 %v205
        %v357 = vunpack.c.l.b16 %v206
        %v358 = vunpack.c.l.b16 %v207
        %v359 = vunpack.c.l.b16 %v208
        %v360 = vunpack.c.l.b16 %v209
        %v361 = vunpack.c.l.b16 %v210
        %v362 = vunpack.c.l.b16 %v211
        %v363 = vunpack.c.l.b16 %v212
        %v364 = vunpack.c.l.b16 %v213
        %v365 = vunpack.c.l.b16 %v214
        %v366 = vunpack.c.l.b16 %v215
        %v367 = vunpack.c.l.b16 %v216
        %v368 = vunpack.c.l.b16 %v217
        %v369 = vunpack.c.l.b16 %v218
        %v370 = vunpack.c.l.b16 %v219
        %v371 = vunpack.c.l.b16 %v220
        %v372 = vunpack.c.l.b16 %v221
        %v373 = vunpack.c.l.b16 %v222
        %v374 = vunpack.c.l.b16 %v223
        %v375 = vunpack.c.l.b16 %v224
        %v376 = vunpack.c.l.b16 %v225
        %v377 = vunpack.c.l.b16 %v226
        %v378 = vunpack.c.l.b16 %v227
        %v379 = vunpack.c.l.b16 %v228
        %v380 = vunpack.c.l.b16 %v229
        %v381 = vunpack.c.l.b16 %v230
        %v382 = vunpack.c.l.b16 %v231
        %v383 = vunpack.c.l.b16 %v232
        %v384 = vunpack.c.l.b16 %v233
        %v385 = vunpack.c.l.b16 %v234
        %v386 = vunpack.c.l.b16 %v235
        %v387 = vunpack.c.l.b16 %v236
        %v388 = vunpack.c.l.b16 %v237
        %v389 = vunpack.c.l.b16 %v238
        %v390 = vunpack.c.l.b16 %v239
        %v391 = vunpack.c.l.b16 %v240
        %v392 = vunpack.c.l.b16 %v241
        %v393 = vunpack.c.l.b16 %v242
        %v394 = vunpack.c.l.b16 %v243
        %v395 = vunpack.c.l.b16 %v244
        %v396 = vunpack.c.l.b16 %v245
        %v397 = vunpack.c.l.b16 %v246
        %v398 = vunpack.c.l.b16 %v247
        %v399 = vunpack.c.l.b16 %v248
        %v400 = vunpack.c.l.b16 %v249
        %v401 = vunpack.c.l.b16 %v250
        %v402 = vunpack.c.l.b16 %v251
        %v403 = vunpack.c.l.b16 %v252
        %v404 = vunpack.c.l.b16 %v253
        %v405 = vunpack.c.l.b16 %v254
        %v406 = vunpack.c.l.b16 %v255
        %v407 = vunpack.c.l.b16 %v256
        %v408 = vpack.c.b16 %v345, %v344
        %v409 = vpack.c.b16 %v347, %v346
        %v410 = vpack.c.b16 %v349, %v348
        %v411 = vpack.c.b16 %v351, %v350
        %v412 = vpack.c.b16 %v353, %v352
        %v413 = vpack.c.b16 %v355, %v354
        %v414 = vpack.c.b16 %v357, %v356
        %v415 = vpack.c.b16 %v359, %v358
        %v416 = vpack.c.b16 %v361, %v360
        %v417 = vpack.c.b16 %v363, %v362
        %v418 = vpack.c.b16 %v365, %v364
        %v419 = vpack.c.b16 %v367, %v366
        %v420 = vpack.c.b16 %v369, %v368
        %v421 = vpack.c.b16 %v371, %v370
        %v422 = vpack.c.b16 %v373, %v372
        %v423 = vpack.c.b16 %v375, %v374
        %v424 = vpack.c.b16 %v377, %v376
        %v425 = vpack.c.b16 %v379, %v378
        %v426 = vpack.c.b16 %v381, %v380
        %v427 = vpack.c.b16 %v383, %v382
        %v428 = vpack.c.b16 %v385, %v384
        %v429 = vpack.c.b16 %v387, %v386
        %v430 = vpack.c.b16 %v389, %v388
        %v431 = vpack.c.b16 %v391, %v390
        %v432 = vpack.c.b16 %v393, %v392
        %v433 = vpack.c.b16 %v395, %v394
        %v434 = vpack.c.b16 %v397, %v396
        %v435 = vpack.c.b16 %v399, %v398
        %v436 = vpack.c.b16 %v401, %v400
        %v437 = vpack.c.b16 %v403, %v402
        %v438 = vpack.c.b16 %v405, %v404
        %v439 = vpack.c.b16 %v407, %v406
        %v456 = vunpack.c.l.b16 %v257
        %v457 = vunpack.c.l.b16 %v258
        %v458 = vunpack.c.l.b16 %v259
        %v459 = vunpack.c.l.b16 %v260
        %v460 = vunpack.c.l.b16 %v261
        %v461 = vunpack.c.l.b16 %v262
        %v462 = vunpack.c.l.b16 %v263
        %v463 = vunpack.c.l.b16 %v264
        %v464 = vunpack.c.l.b16 %v265
        %v465 = vunpack.c.l.b16 %v266
        %v466 = vunpack.c.l.b16 %v267
        %v467 = vunpack.c.l.b16 %v268
        %v468 = vunpack.c.l.b16 %v269
        %v469 = vunpack.c.l.b16 %v270
        %v470 = vunpack.c.l.b16 %v271
        %v471 = vunpack.c.l.b16 %v272
        %v472 = vpack.c.b16 %v457, %v456
        %v473 = vpack.c.b16 %v459, %v458
        %v474 = vpack.c.b16 %v461, %v460
        %v475 = vpack.c.b16 %v463, %v462
        %v476 = vpack.c.b16 %v465, %v464
        %v477 = vpack.c.b16 %v467, %v466
        %v478 = vpack.c.b16 %v469, %v468
        %v479 = vpack.c.b16 %v471, %v470
        %vm487 = vcmask 1022976
        %v489 = vsel %vm487, %v408, 0
        %v492 = vsel %vm487, %v409, 0
        %v495 = vsel %vm487, %v410, 0
        %v498 = vsel %vm487, %v411, 0
        %v501 = vsel %vm487, %v412, 0
        %v504 = vsel %vm487, %v413, 0
        %v507 = vsel %vm487, %v414, 0
        %v510 = vsel %vm487, %v415, 0
        %v513 = vsel %vm487, %v416, 0
        %v516 = vsel %vm487, %v417, 0
        %v519 = vsel %vm487, %v418, 0
        %v522 = vsel %vm487, %v419, 0
        %v525 = vsel %vm487, %v420, 0
        %v528 = vsel %vm487, %v421, 0
        %v531 = vsel %vm487, %v422, 0
        %v534 = vsel %vm487, %v423, 0
        %v537 = vsel %vm487, %v424, 0
        %v540 = vsel %vm487, %v425, 0
        %v543 = vsel %vm487, %v426, 0
        %v546 = vsel %vm487, %v427, 0
        %v549 = vsel %vm487, %v428, 0
        %v552 = vsel %vm487, %v429, 0
        %v555 = vsel %vm487, %v430, 0
        %v558 = vsel %vm487, %v431, 0
        %v561 = vsel %vm487, %v432, 0
        %v564 = vsel %vm487, %v433, 0
        %v567 = vsel %vm487, %v434, 0
        %v570 = vsel %vm487, %v435, 0
        %v573 = vsel %vm487, %v436, 0
        %v576 = vsel %vm487, %v437, 0
        %v579 = vsel %vm487, %v438, 0
        %v582 = vsel %vm487, %v439, 0
        %vm584 = vcmask 1045504
        %vm585 = vcmask 1046528
        %v586 = vsel %vm584, 4294967295, 65535
        %v587 = vsel %vm585, %v586, 0
        %v589 = vand.u32 %v479, %v587
        %591 = vmatprep.subr.bf16.mxu0 0
        %592 = vmatpush1.bf16.msra.mxu0 %v589
        %593 = vmatprep.subr.bf16.mxu0 0
        %594 = vmatpush1.bf16.msra.mxu0 %v478
        %595 = vmatprep.subr.bf16.mxu0 0
        %596 = vmatpush1.bf16.msra.mxu0 %v477
        %597 = vmatprep.subr.bf16.mxu0 0
        %598 = vmatpush1.bf16.msra.mxu0 %v476
        %599 = vmatprep.subr.bf16.mxu0 0
        %600 = vmatpush1.bf16.msra.mxu0 %v475
        %601 = vmatprep.subr.bf16.mxu0 0
        %602 = vmatpush1.bf16.msra.mxu0 %v474
        %603 = vmatprep.subr.bf16.mxu0 0
        %604 = vmatpush1.bf16.msra.mxu0 %v473
        %605 = vmatprep.subr.bf16.mxu0 0
        %606 = vmatpush1.bf16.msra.mxu0 %v472
        %607 = vmatprep.subr.bf16.mxu0 0
        %608 = vmatpush2.bf16.msra.mxu0 0
        %609 = vmatprep.subr.bf16.mxu0 0
        %610 = vmatpush2.bf16.msra.mxu0 0
        %611 = vmatprep.subr.bf16.mxu0 0
        %612 = vmatpush2.bf16.msra.mxu0 0
        %613 = vmatprep.subr.bf16.mxu0 0
        %614 = vmatpush2.bf16.msra.mxu0 0
        %615 = vmatprep.subr.bf16.mxu0 0
        %616 = vmatpush2.bf16.msra.mxu0 0
        %617 = vmatprep.subr.bf16.mxu0 0
        %618 = vmatpush2.bf16.msra.mxu0 0
        %619 = vmatprep.subr.bf16.mxu0 0
        %620 = vmatpush2.bf16.msra.mxu0 0
        %621 = vmatprep.subr.bf16.mxu0 0
        %622 = vmatpush2.bf16.msra.mxu0 0
        %623 = vmatprep.mubr.bf16.mxu0 0
        %624 = vmatmul.mubr.bf16.gmra.mxu0 %v489
        %v625 = vpop.f32.mrf.mxu0
        %v626 = vadd.f32 %v278, %v625
        %v627 = vpop.f32.mrf.mxu0
        %v628 = vpop.f32.mrf.mxu0
        %v629 = vadd.f32 %v278, %v628
        %v630 = vpop.f32.mrf.mxu0
        %631 = vmatprep.mubr.bf16.mxu0 0
        %632 = vmatmul.mubr.bf16.gmra.mxu0 %v492
        %v633 = vpop.f32.mrf.mxu0
        %v634 = vadd.f32 %v278, %v633
        %v635 = vpop.f32.mrf.mxu0
        %v636 = vpop.f32.mrf.mxu0
        %v637 = vadd.f32 %v278, %v636
        %v638 = vpop.f32.mrf.mxu0
        %639 = vmatprep.mubr.bf16.mxu0 0
        %640 = vmatmul.mubr.bf16.gmra.mxu0 %v495
        %v641 = vpop.f32.mrf.mxu0
        %v642 = vadd.f32 %v278, %v641
        %v643 = vpop.f32.mrf.mxu0
        %v644 = vpop.f32.mrf.mxu0
        %v645 = vadd.f32 %v278, %v644
        %v646 = vpop.f32.mrf.mxu0
        %647 = vmatprep.mubr.bf16.mxu0 0
        %648 = vmatmul.mubr.bf16.gmra.mxu0 %v498
        %v649 = vpop.f32.mrf.mxu0
        %v650 = vadd.f32 %v278, %v649
        %v651 = vpop.f32.mrf.mxu0
        %v652 = vpop.f32.mrf.mxu0
        %v653 = vadd.f32 %v278, %v652
        %v654 = vpop.f32.mrf.mxu0
        %655 = vmatprep.mubr.bf16.mxu0 0
        %656 = vmatmul.mubr.bf16.gmra.mxu0 %v501
        %v657 = vpop.f32.mrf.mxu0
        %v658 = vadd.f32 %v278, %v657
        %v659 = vpop.f32.mrf.mxu0
        %v660 = vpop.f32.mrf.mxu0
        %v661 = vadd.f32 %v278, %v660
        %v662 = vpop.f32.mrf.mxu0
        %663 = vmatprep.mubr.bf16.mxu0 0
        %664 = vmatmul.mubr.bf16.gmra.mxu0 %v504
        %v665 = vpop.f32.mrf.mxu0
        %v666 = vadd.f32 %v278, %v665
        %v667 = vpop.f32.mrf.mxu0
        %v668 = vpop.f32.mrf.mxu0
        %v669 = vadd.f32 %v278, %v668
        %v670 = vpop.f32.mrf.mxu0
        %671 = vmatprep.mubr.bf16.mxu0 0
        %672 = vmatmul.mubr.bf16.gmra.mxu0 %v507
        %v673 = vpop.f32.mrf.mxu0
        %v674 = vadd.f32 %v278, %v673
        %v675 = vpop.f32.mrf.mxu0
        %v676 = vpop.f32.mrf.mxu0
        %v677 = vadd.f32 %v278, %v676
        %v678 = vpop.f32.mrf.mxu0
        %679 = vmatprep.mubr.bf16.mxu0 0
        %680 = vmatmul.mubr.bf16.gmra.mxu0 %v510
        %v681 = vpop.f32.mrf.mxu0
        %v682 = vadd.f32 %v278, %v681
        %v683 = vpop.f32.mrf.mxu0
        %v684 = vpop.f32.mrf.mxu0
        %v685 = vadd.f32 %v278, %v684
        %v686 = vpop.f32.mrf.mxu0
        %687 = vmatprep.mubr.bf16.mxu0 0
        %688 = vmatmul.mubr.bf16.gmra.mxu0 %v513
        %v689 = vpop.f32.mrf.mxu0
        %v690 = vadd.f32 %v278, %v689
        %v691 = vpop.f32.mrf.mxu0
        %v692 = vpop.f32.mrf.mxu0
        %v693 = vadd.f32 %v278, %v692
        %v694 = vpop.f32.mrf.mxu0
        %695 = vmatprep.mubr.bf16.mxu0 0
        %696 = vmatmul.mubr.bf16.gmra.mxu0 %v516
        %v697 = vpop.f32.mrf.mxu0
        %v698 = vadd.f32 %v278, %v697
        %v699 = vpop.f32.mrf.mxu0
        %v700 = vpop.f32.mrf.mxu0
        %v701 = vadd.f32 %v278, %v700
        %v702 = vpop.f32.mrf.mxu0
        %703 = vmatprep.mubr.bf16.mxu0 0
        %704 = vmatmul.mubr.bf16.gmra.mxu0 %v519
        %v705 = vpop.f32.mrf.mxu0
        %v706 = vadd.f32 %v278, %v705
        %v707 = vpop.f32.mrf.mxu0
        %v708 = vpop.f32.mrf.mxu0
        %v709 = vadd.f32 %v278, %v708
        %v710 = vpop.f32.mrf.mxu0
        %711 = vmatprep.mubr.bf16.mxu0 0
        %712 = vmatmul.mubr.bf16.gmra.mxu0 %v522
        %v713 = vpop.f32.mrf.mxu0
        %v714 = vadd.f32 %v278, %v713
        %v715 = vpop.f32.mrf.mxu0
        %v716 = vpop.f32.mrf.mxu0
        %v717 = vadd.f32 %v278, %v716
        %v718 = vpop.f32.mrf.mxu0
        %719 = vmatprep.mubr.bf16.mxu0 0
        %720 = vmatmul.mubr.bf16.gmra.mxu0 %v525
        %v721 = vpop.f32.mrf.mxu0
        %v722 = vadd.f32 %v278, %v721
        %v723 = vpop.f32.mrf.mxu0
        %v724 = vpop.f32.mrf.mxu0
        %v725 = vadd.f32 %v278, %v724
        %v726 = vpop.f32.mrf.mxu0
        %727 = vmatprep.mubr.bf16.mxu0 0
        %728 = vmatmul.mubr.bf16.gmra.mxu0 %v528
        %v729 = vpop.f32.mrf.mxu0
        %v730 = vadd.f32 %v278, %v729
        %v731 = vpop.f32.mrf.mxu0
        %v732 = vpop.f32.mrf.mxu0
        %v733 = vadd.f32 %v278, %v732
        %v734 = vpop.f32.mrf.mxu0
        %735 = vmatprep.mubr.bf16.mxu0 0
        %736 = vmatmul.mubr.bf16.gmra.mxu0 %v531
        %v737 = vpop.f32.mrf.mxu0
        %v738 = vadd.f32 %v278, %v737
        %v739 = vpop.f32.mrf.mxu0
        %v740 = vpop.f32.mrf.mxu0
        %v741 = vadd.f32 %v278, %v740
        %v742 = vpop.f32.mrf.mxu0
        %743 = vmatprep.mubr.bf16.mxu0 0
        %744 = vmatmul.mubr.bf16.gmra.mxu0 %v534
        %v745 = vpop.f32.mrf.mxu0
        %v746 = vadd.f32 %v278, %v745
        %v747 = vpop.f32.mrf.mxu0
        %v748 = vpop.f32.mrf.mxu0
        %v749 = vadd.f32 %v278, %v748
        %v750 = vpop.f32.mrf.mxu0
        %751 = vmatprep.mubr.bf16.mxu0 0
        %752 = vmatmul.mubr.bf16.gmra.mxu0 %v537
        %v753 = vpop.f32.mrf.mxu0
        %v754 = vadd.f32 %v278, %v753
        %v755 = vpop.f32.mrf.mxu0
        %v756 = vpop.f32.mrf.mxu0
        %v757 = vadd.f32 %v278, %v756
        %v758 = vpop.f32.mrf.mxu0
        %759 = vmatprep.mubr.bf16.mxu0 0
        %760 = vmatmul.mubr.bf16.gmra.mxu0 %v540
        %v761 = vpop.f32.mrf.mxu0
        %v762 = vadd.f32 %v278, %v761
        %v763 = vpop.f32.mrf.mxu0
        %v764 = vpop.f32.mrf.mxu0
        %v765 = vadd.f32 %v278, %v764
        %v766 = vpop.f32.mrf.mxu0
        %767 = vmatprep.mubr.bf16.mxu0 0
        %768 = vmatmul.mubr.bf16.gmra.mxu0 %v543
        %v769 = vpop.f32.mrf.mxu0
        %v770 = vadd.f32 %v278, %v769
        %v771 = vpop.f32.mrf.mxu0
        %v772 = vpop.f32.mrf.mxu0
        %v773 = vadd.f32 %v278, %v772
        %v774 = vpop.f32.mrf.mxu0
        %775 = vmatprep.mubr.bf16.mxu0 0
        %776 = vmatmul.mubr.bf16.gmra.mxu0 %v546
        %v777 = vpop.f32.mrf.mxu0
        %v778 = vadd.f32 %v278, %v777
        %v779 = vpop.f32.mrf.mxu0
        %v780 = vpop.f32.mrf.mxu0
        %v781 = vadd.f32 %v278, %v780
        %v782 = vpop.f32.mrf.mxu0
        %783 = vmatprep.mubr.bf16.mxu0 0
        %784 = vmatmul.mubr.bf16.gmra.mxu0 %v549
        %v785 = vpop.f32.mrf.mxu0
        %v786 = vadd.f32 %v278, %v785
        %v787 = vpop.f32.mrf.mxu0
        %v788 = vpop.f32.mrf.mxu0
        %v789 = vadd.f32 %v278, %v788
        %v790 = vpop.f32.mrf.mxu0
        %791 = vmatprep.mubr.bf16.mxu0 0
        %792 = vmatmul.mubr.bf16.gmra.mxu0 %v552
        %v793 = vpop.f32.mrf.mxu0
        %v794 = vadd.f32 %v278, %v793
        %v795 = vpop.f32.mrf.mxu0
        %v796 = vpop.f32.mrf.mxu0
        %v797 = vadd.f32 %v278, %v796
        %v798 = vpop.f32.mrf.mxu0
        %799 = vmatprep.mubr.bf16.mxu0 0
        %800 = vmatmul.mubr.bf16.gmra.mxu0 %v555
        %v801 = vpop.f32.mrf.mxu0
        %v802 = vadd.f32 %v278, %v801
        %v803 = vpop.f32.mrf.mxu0
        %v804 = vpop.f32.mrf.mxu0
        %v805 = vadd.f32 %v278, %v804
        %v806 = vpop.f32.mrf.mxu0
        %807 = vmatprep.mubr.bf16.mxu0 0
        %808 = vmatmul.mubr.bf16.gmra.mxu0 %v558
        %v809 = vpop.f32.mrf.mxu0
        %v810 = vadd.f32 %v278, %v809
        %v811 = vpop.f32.mrf.mxu0
        %v812 = vpop.f32.mrf.mxu0
        %v813 = vadd.f32 %v278, %v812
        %v814 = vpop.f32.mrf.mxu0
        %815 = vmatprep.mubr.bf16.mxu0 0
        %816 = vmatmul.mubr.bf16.gmra.mxu0 %v561
        %v817 = vpop.f32.mrf.mxu0
        %v818 = vadd.f32 %v278, %v817
        %v819 = vpop.f32.mrf.mxu0
        %v820 = vpop.f32.mrf.mxu0
        %v821 = vadd.f32 %v278, %v820
        %v822 = vpop.f32.mrf.mxu0
        %823 = vmatprep.mubr.bf16.mxu0 0
        %824 = vmatmul.mubr.bf16.gmra.mxu0 %v564
        %v825 = vpop.f32.mrf.mxu0
        %v826 = vadd.f32 %v278, %v825
        %v827 = vpop.f32.mrf.mxu0
        %v828 = vpop.f32.mrf.mxu0
        %v829 = vadd.f32 %v278, %v828
        %v830 = vpop.f32.mrf.mxu0
        %831 = vmatprep.mubr.bf16.mxu0 0
        %832 = vmatmul.mubr.bf16.gmra.mxu0 %v567
        %v833 = vpop.f32.mrf.mxu0
        %v834 = vadd.f32 %v278, %v833
        %v835 = vpop.f32.mrf.mxu0
        %v836 = vpop.f32.mrf.mxu0
        %v837 = vadd.f32 %v278, %v836
        %v838 = vpop.f32.mrf.mxu0
        %839 = vmatprep.mubr.bf16.mxu0 0
        %840 = vmatmul.mubr.bf16.gmra.mxu0 %v570
        %v841 = vpop.f32.mrf.mxu0
        %v842 = vadd.f32 %v278, %v841
        %v843 = vpop.f32.mrf.mxu0
        %v844 = vpop.f32.mrf.mxu0
        %v845 = vadd.f32 %v278, %v844
        %v846 = vpop.f32.mrf.mxu0
        %847 = vmatprep.mubr.bf16.mxu0 0
        %848 = vmatmul.mubr.bf16.gmra.mxu0 %v573
        %v849 = vpop.f32.mrf.mxu0
        %v850 = vadd.f32 %v278, %v849
        %v851 = vpop.f32.mrf.mxu0
        %v852 = vpop.f32.mrf.mxu0
        %v853 = vadd.f32 %v278, %v852
        %v854 = vpop.f32.mrf.mxu0
        %855 = vmatprep.mubr.bf16.mxu0 0
        %856 = vmatmul.mubr.bf16.gmra.mxu0 %v576
        %v857 = vpop.f32.mrf.mxu0
        %v858 = vadd.f32 %v278, %v857
        %v859 = vpop.f32.mrf.mxu0
        %v860 = vpop.f32.mrf.mxu0
        %v861 = vadd.f32 %v278, %v860
        %v862 = vpop.f32.mrf.mxu0
        %863 = vmatprep.mubr.bf16.mxu0 0
        %864 = vmatmul.mubr.bf16.gmra.mxu0 %v579
        %v865 = vpop.f32.mrf.mxu0
        %v866 = vadd.f32 %v278, %v865
        %v867 = vpop.f32.mrf.mxu0
        %v868 = vpop.f32.mrf.mxu0
        %v869 = vadd.f32 %v278, %v868
        %v870 = vpop.f32.mrf.mxu0
        %871 = vmatprep.mubr.bf16.mxu0 0
        %872 = vmatmul.mubr.bf16.gmra.mxu0 %v582
        %v873 = vpop.f32.mrf.mxu0
        %v874 = vadd.f32 %v278, %v873
        %v875 = vpop.f32.mrf.mxu0
        %v876 = vpop.f32.mrf.mxu0
        %v877 = vadd.f32 %v278, %v876
        %v878 = vpop.f32.mrf.mxu0
        %879 = vdwg.mxu0
        %v880 = vmax.f32 %v626, 0.0
        %v881 = vmax.f32 %v629, 0.0
        %v882 = vmax.f32 %v634, 0.0
        %v883 = vmax.f32 %v637, 0.0
        %v884 = vmax.f32 %v642, 0.0
        %v885 = vmax.f32 %v645, 0.0
        %v886 = vmax.f32 %v650, 0.0
        %v887 = vmax.f32 %v653, 0.0
        %v888 = vmax.f32 %v658, 0.0
        %v889 = vmax.f32 %v661, 0.0
        %v890 = vmax.f32 %v666, 0.0
        %v891 = vmax.f32 %v669, 0.0
        %v892 = vmax.f32 %v674, 0.0
        %v893 = vmax.f32 %v677, 0.0
        %v894 = vmax.f32 %v682, 0.0
        %v895 = vmax.f32 %v685, 0.0
        %v896 = vmax.f32 %v690, 0.0
        %v897 = vmax.f32 %v693, 0.0
        %v898 = vmax.f32 %v698, 0.0
        %v899 = vmax.f32 %v701, 0.0
        %v900 = vmax.f32 %v706, 0.0
        %v901 = vmax.f32 %v709, 0.0
        %v902 = vmax.f32 %v714, 0.0
        %v903 = vmax.f32 %v717, 0.0
        %v904 = vmax.f32 %v722, 0.0
        %v905 = vmax.f32 %v725, 0.0
        %v906 = vmax.f32 %v730, 0.0
        %v907 = vmax.f32 %v733, 0.0
        %v908 = vmax.f32 %v738, 0.0
        %v909 = vmax.f32 %v741, 0.0
        %v910 = vmax.f32 %v746, 0.0
        %v911 = vmax.f32 %v749, 0.0
        %v912 = vmax.f32 %v754, 0.0
        %v913 = vmax.f32 %v757, 0.0
        %v914 = vmax.f32 %v762, 0.0
        %v915 = vmax.f32 %v765, 0.0
        %v916 = vmax.f32 %v770, 0.0
        %v917 = vmax.f32 %v773, 0.0
        %v918 = vmax.f32 %v778, 0.0
        %v919 = vmax.f32 %v781, 0.0
        %v920 = vmax.f32 %v786, 0.0
        %v921 = vmax.f32 %v789, 0.0
        %v922 = vmax.f32 %v794, 0.0
        %v923 = vmax.f32 %v797, 0.0
        %v924 = vmax.f32 %v802, 0.0
        %v925 = vmax.f32 %v805, 0.0
        %v926 = vmax.f32 %v810, 0.0
        %v927 = vmax.f32 %v813, 0.0
        %v928 = vmax.f32 %v818, 0.0
        %v929 = vmax.f32 %v821, 0.0
        %v930 = vmax.f32 %v826, 0.0
        %v931 = vmax.f32 %v829, 0.0
        %v932 = vmax.f32 %v834, 0.0
        %v933 = vmax.f32 %v837, 0.0
        %v934 = vmax.f32 %v842, 0.0
        %v935 = vmax.f32 %v845, 0.0
        %v936 = vmax.f32 %v850, 0.0
        %v937 = vmax.f32 %v853, 0.0
        %v938 = vmax.f32 %v858, 0.0
        %v939 = vmax.f32 %v861, 0.0
        %v940 = vmax.f32 %v866, 0.0
        %v941 = vmax.f32 %v869, 0.0
        %v942 = vmax.f32 %v874, 0.0
        %v943 = vmax.f32 %v877, 0.0
        %v944 = vpack.c.bf16 %v881, %v880
        %v945 = vpack.c.bf16 %v883, %v882
        %v946 = vpack.c.bf16 %v885, %v884
        %v947 = vpack.c.bf16 %v887, %v886
        %v948 = vpack.c.bf16 %v889, %v888
        %v949 = vpack.c.bf16 %v891, %v890
        %v950 = vpack.c.bf16 %v893, %v892
        %v951 = vpack.c.bf16 %v895, %v894
        %v952 = vpack.c.bf16 %v897, %v896
        %v953 = vpack.c.bf16 %v899, %v898
        %v954 = vpack.c.bf16 %v901, %v900
        %v955 = vpack.c.bf16 %v903, %v902
        %v956 = vpack.c.bf16 %v905, %v904
        %v957 = vpack.c.bf16 %v907, %v906
        %v958 = vpack.c.bf16 %v909, %v908
        %v959 = vpack.c.bf16 %v911, %v910
        %v960 = vpack.c.bf16 %v913, %v912
        %v961 = vpack.c.bf16 %v915, %v914
        %v962 = vpack.c.bf16 %v917, %v916
        %v963 = vpack.c.bf16 %v919, %v918
        %v964 = vpack.c.bf16 %v921, %v920
        %v965 = vpack.c.bf16 %v923, %v922
        %v966 = vpack.c.bf16 %v925, %v924
        %v967 = vpack.c.bf16 %v927, %v926
        %v968 = vpack.c.bf16 %v929, %v928
        %v969 = vpack.c.bf16 %v931, %v930
        %v970 = vpack.c.bf16 %v933, %v932
        %v971 = vpack.c.bf16 %v935, %v934
        %v972 = vpack.c.bf16 %v937, %v936
        %v973 = vpack.c.bf16 %v939, %v938
        %v974 = vpack.c.bf16 %v941, %v940
        %v975 = vpack.c.bf16 %v943, %v942
        %v1008 = vunpack.c.l.b16 %v944
        %v1009 = vunpack.c.h.b16 %v944
        %v1010 = vunpack.c.l.b16 %v945
        %v1011 = vunpack.c.h.b16 %v945
        %v1012 = vunpack.c.l.b16 %v946
        %v1013 = vunpack.c.h.b16 %v946
        %v1014 = vunpack.c.l.b16 %v947
        %v1015 = vunpack.c.h.b16 %v947
        %v1016 = vunpack.c.l.b16 %v948
        %v1017 = vunpack.c.h.b16 %v948
        %v1018 = vunpack.c.l.b16 %v949
        %v1019 = vunpack.c.h.b16 %v949
        %v1020 = vunpack.c.l.b16 %v950
        %v1021 = vunpack.c.h.b16 %v950
        %v1022 = vunpack.c.l.b16 %v951
        %v1023 = vunpack.c.h.b16 %v951
        %v1024 = vunpack.c.l.b16 %v952
        %v1025 = vunpack.c.h.b16 %v952
        %v1026 = vunpack.c.l.b16 %v953
        %v1027 = vunpack.c.h.b16 %v953
        %v1028 = vunpack.c.l.b16 %v954
        %v1029 = vunpack.c.h.b16 %v954
        %v1030 = vunpack.c.l.b16 %v955
        %v1031 = vunpack.c.h.b16 %v955
        %v1032 = vunpack.c.l.b16 %v956
        %v1033 = vunpack.c.h.b16 %v956
        %v1034 = vunpack.c.l.b16 %v957
        %v1035 = vunpack.c.h.b16 %v957
        %v1036 = vunpack.c.l.b16 %v958
        %v1037 = vunpack.c.h.b16 %v958
        %v1038 = vunpack.c.l.b16 %v959
        %v1039 = vunpack.c.h.b16 %v959
        %v1040 = vunpack.c.l.b16 %v960
        %v1041 = vunpack.c.h.b16 %v960
        %v1042 = vunpack.c.l.b16 %v961
        %v1043 = vunpack.c.h.b16 %v961
        %v1044 = vunpack.c.l.b16 %v962
        %v1045 = vunpack.c.h.b16 %v962
        %v1046 = vunpack.c.l.b16 %v963
        %v1047 = vunpack.c.h.b16 %v963
        %v1048 = vunpack.c.l.b16 %v964
        %v1049 = vunpack.c.h.b16 %v964
        %v1050 = vunpack.c.l.b16 %v965
        %v1051 = vunpack.c.h.b16 %v965
        %v1052 = vunpack.c.l.b16 %v966
        %v1053 = vunpack.c.h.b16 %v966
        %v1054 = vunpack.c.l.b16 %v967
        %v1055 = vunpack.c.h.b16 %v967
        %v1056 = vunpack.c.l.b16 %v968
        %v1057 = vunpack.c.h.b16 %v968
        %v1058 = vunpack.c.l.b16 %v969
        %v1059 = vunpack.c.h.b16 %v969
        %v1060 = vunpack.c.l.b16 %v970
        %v1061 = vunpack.c.h.b16 %v970
        %v1062 = vunpack.c.l.b16 %v971
        %v1063 = vunpack.c.h.b16 %v971
        %v1064 = vunpack.c.l.b16 %v972
        %v1065 = vunpack.c.h.b16 %v972
        %v1066 = vunpack.c.l.b16 %v973
        %v1067 = vunpack.c.h.b16 %v973
        %v1068 = vunpack.c.l.b16 %v974
        %v1069 = vunpack.c.h.b16 %v974
        %v1070 = vunpack.c.l.b16 %v975
        %v1071 = vunpack.c.h.b16 %v975
        %v1072 = vpack.c.b16 %v1008, %v1008
        %v1073 = vpack.c.b16 %v1009, %v1009
        %v1074 = vpack.c.b16 %v1010, %v1010
        %v1075 = vpack.c.b16 %v1011, %v1011
        %v1076 = vpack.c.b16 %v1012, %v1012
        %v1077 = vpack.c.b16 %v1013, %v1013
        %v1078 = vpack.c.b16 %v1014, %v1014
        %v1079 = vpack.c.b16 %v1015, %v1015
        %v1080 = vpack.c.b16 %v1016, %v1016
        %v1081 = vpack.c.b16 %v1017, %v1017
        %v1082 = vpack.c.b16 %v1018, %v1018
        %v1083 = vpack.c.b16 %v1019, %v1019
        %v1084 = vpack.c.b16 %v1020, %v1020
        %v1085 = vpack.c.b16 %v1021, %v1021
        %v1086 = vpack.c.b16 %v1022, %v1022
        %v1087 = vpack.c.b16 %v1023, %v1023
        %v1088 = vpack.c.b16 %v1024, %v1024
        %v1089 = vpack.c.b16 %v1025, %v1025
        %v1090 = vpack.c.b16 %v1026, %v1026
        %v1091 = vpack.c.b16 %v1027, %v1027
        %v1092 = vpack.c.b16 %v1028, %v1028
        %v1093 = vpack.c.b16 %v1029, %v1029
        %v1094 = vpack.c.b16 %v1030, %v1030
        %v1095 = vpack.c.b16 %v1031, %v1031
        %v1096 = vpack.c.b16 %v1032, %v1032
        %v1097 = vpack.c.b16 %v1033, %v1033
        %v1098 = vpack.c.b16 %v1034, %v1034
        %v1099 = vpack.c.b16 %v1035, %v1035
        %v1100 = vpack.c.b16 %v1036, %v1036
        %v1101 = vpack.c.b16 %v1037, %v1037
        %v1102 = vpack.c.b16 %v1038, %v1038
        %v1103 = vpack.c.b16 %v1039, %v1039
        %v1104 = vpack.c.b16 %v1040, %v1040
        %v1105 = vpack.c.b16 %v1041, %v1041
        %v1106 = vpack.c.b16 %v1042, %v1042
        %v1107 = vpack.c.b16 %v1043, %v1043
        %v1108 = vpack.c.b16 %v1044, %v1044
        %v1109 = vpack.c.b16 %v1045, %v1045
        %v1110 = vpack.c.b16 %v1046, %v1046
        %v1111 = vpack.c.b16 %v1047, %v1047
        %v1112 = vpack.c.b16 %v1048, %v1048
        %v1113 = vpack.c.b16 %v1049, %v1049
        %v1114 = vpack.c.b16 %v1050, %v1050
        %v1115 = vpack.c.b16 %v1051, %v1051
        %v1116 = vpack.c.b16 %v1052, %v1052
        %v1117 = vpack.c.b16 %v1053, %v1053
        %v1118 = vpack.c.b16 %v1054, %v1054
        %v1119 = vpack.c.b16 %v1055, %v1055
        %v1120 = vpack.c.b16 %v1056, %v1056
        %v1121 = vpack.c.b16 %v1057, %v1057
        %v1122 = vpack.c.b16 %v1058, %v1058
        %v1123 = vpack.c.b16 %v1059, %v1059
        %v1124 = vpack.c.b16 %v1060, %v1060
        %v1125 = vpack.c.b16 %v1061, %v1061
        %v1126 = vpack.c.b16 %v1062, %v1062
        %v1127 = vpack.c.b16 %v1063, %v1063
        %v1128 = vpack.c.b16 %v1064, %v1064
        %v1129 = vpack.c.b16 %v1065, %v1065
        %v1130 = vpack.c.b16 %v1066, %v1066
        %v1131 = vpack.c.b16 %v1067, %v1067
        %v1132 = vpack.c.b16 %v1068, %v1068
        %v1133 = vpack.c.b16 %v1069, %v1069
        %v1134 = vpack.c.b16 %v1070, %v1070
        %v1135 = vpack.c.b16 %v1071, %v1071
        %vm1200 = vcmask 125952
        %1201 = vst.msk [vmem:[%s172] sm:$0xf] %vm1200, %v1072
        %1202 = vst.msk [vmem:[%s172 + $0x4] sm:$0xf] %vm1200, %v1073
        %1203 = vst.msk [vmem:[%s172 + $0x8] sm:$0xf] %vm1200, %v1074
        %1204 = vst.msk [vmem:[%s172 + $0xc] sm:$0xf] %vm1200, %v1075
        %1205 = vst.msk [vmem:[%s172 + $0x10] sm:$0xf] %vm1200, %v1076
        %1206 = vst.msk [vmem:[%s172 + $0x14] sm:$0xf] %vm1200, %v1077
        %1207 = vst.msk [vmem:[%s172 + $0x18] sm:$0xf] %vm1200, %v1078
        %1208 = vst.msk [vmem:[%s172 + $0x1c] sm:$0xf] %vm1200, %v1079
        %1209 = vst.msk [vmem:[%s172 + $0x20] sm:$0xf] %vm1200, %v1080
        %1210 = vst.msk [vmem:[%s172 + $0x24] sm:$0xf] %vm1200, %v1081
        %1211 = vst.msk [vmem:[%s172 + $0x28] sm:$0xf] %vm1200, %v1082
        %1212 = vst.msk [vmem:[%s172 + $0x2c] sm:$0xf] %vm1200, %v1083
        %1213 = vst.msk [vmem:[%s172 + $0x30] sm:$0xf] %vm1200, %v1084
        %1214 = vst.msk [vmem:[%s172 + $0x34] sm:$0xf] %vm1200, %v1085
        %1215 = vst.msk [vmem:[%s172 + $0x38] sm:$0xf] %vm1200, %v1086
        %1216 = vst.msk [vmem:[%s172 + $0x3c] sm:$0xf] %vm1200, %v1087
        %1217 = vst.msk [vmem:[%s172 + $0x40] sm:$0xf] %vm1200, %v1088
        %1218 = vst.msk [vmem:[%s172 + $0x44] sm:$0xf] %vm1200, %v1089
        %1219 = vst.msk [vmem:[%s172 + $0x48] sm:$0xf] %vm1200, %v1090
        %1220 = vst.msk [vmem:[%s172 + $0x4c] sm:$0xf] %vm1200, %v1091
        %1221 = vst.msk [vmem:[%s172 + $0x50] sm:$0xf] %vm1200, %v1092
        %1222 = vst.msk [vmem:[%s172 + $0x54] sm:$0xf] %vm1200, %v1093
        %1223 = vst.msk [vmem:[%s172 + $0x58] sm:$0xf] %vm1200, %v1094
        %1224 = vst.msk [vmem:[%s172 + $0x5c] sm:$0xf] %vm1200, %v1095
        %1225 = vst.msk [vmem:[%s172 + $0x60] sm:$0xf] %vm1200, %v1096
        %1226 = vst.msk [vmem:[%s172 + $0x64] sm:$0xf] %vm1200, %v1097
        %1227 = vst.msk [vmem:[%s172 + $0x68] sm:$0xf] %vm1200, %v1098
        %1228 = vst.msk [vmem:[%s172 + $0x6c] sm:$0xf] %vm1200, %v1099
        %1229 = vst.msk [vmem:[%s172 + $0x70] sm:$0xf] %vm1200, %v1100
        %1230 = vst.msk [vmem:[%s172 + $0x74] sm:$0xf] %vm1200, %v1101
        %1231 = vst.msk [vmem:[%s172 + $0x78] sm:$0xf] %vm1200, %v1102
        %1232 = vst.msk [vmem:[%s172 + $0x7c] sm:$0xf] %vm1200, %v1103
        %1233 = vst.msk [vmem:[%s172 + $0x80] sm:$0xf] %vm1200, %v1104
        %1234 = vst.msk [vmem:[%s172 + $0x84] sm:$0xf] %vm1200, %v1105
        %1235 = vst.msk [vmem:[%s172 + $0x88] sm:$0xf] %vm1200, %v1106
        %1236 = vst.msk [vmem:[%s172 + $0x8c] sm:$0xf] %vm1200, %v1107
        %1237 = vst.msk [vmem:[%s172 + $0x90] sm:$0xf] %vm1200, %v1108
        %1238 = vst.msk [vmem:[%s172 + $0x94] sm:$0xf] %vm1200, %v1109
        %1239 = vst.msk [vmem:[%s172 + $0x98] sm:$0xf] %vm1200, %v1110
        %1240 = vst.msk [vmem:[%s172 + $0x9c] sm:$0xf] %vm1200, %v1111
        %1241 = vst.msk [vmem:[%s172 + $0xa0] sm:$0xf] %vm1200, %v1112
        %1242 = vst.msk [vmem:[%s172 + $0xa4] sm:$0xf] %vm1200, %v1113
        %1243 = vst.msk [vmem:[%s172 + $0xa8] sm:$0xf] %vm1200, %v1114
        %1244 = vst.msk [vmem:[%s172 + $0xac] sm:$0xf] %vm1200, %v1115
        %1245 = vst.msk [vmem:[%s172 + $0xb0] sm:$0xf] %vm1200, %v1116
        %1246 = vst.msk [vmem:[%s172 + $0xb4] sm:$0xf] %vm1200, %v1117
        %1247 = vst.msk [vmem:[%s172 + $0xb8] sm:$0xf] %vm1200, %v1118
        %1248 = vst.msk [vmem:[%s172 + $0xbc] sm:$0xf] %vm1200, %v1119
        %1249 = vst.msk [vmem:[%s172 + $0xc0] sm:$0xf] %vm1200, %v1120
        %1250 = vst.msk [vmem:[%s172 + $0xc4] sm:$0xf] %vm1200, %v1121
        %1251 = vst.msk [vmem:[%s172 + $0xc8] sm:$0xf] %vm1200, %v1122
        %1252 = vst.msk [vmem:[%s172 + $0xcc] sm:$0xf] %vm1200, %v1123
        %1253 = vst.msk [vmem:[%s172 + $0xd0] sm:$0xf] %vm1200, %v1124
        %1254 = vst.msk [vmem:[%s172 + $0xd4] sm:$0xf] %vm1200, %v1125
        %1255 = vst.msk [vmem:[%s172 + $0xd8] sm:$0xf] %vm1200, %v1126
        %1256 = vst.msk [vmem:[%s172 + $0xdc] sm:$0xf] %vm1200, %v1127
        %1257 = vst.msk [vmem:[%s172 + $0xe0] sm:$0xf] %vm1200, %v1128
        %1258 = vst.msk [vmem:[%s172 + $0xe4] sm:$0xf] %vm1200, %v1129
        %1259 = vst.msk [vmem:[%s172 + $0xe8] sm:$0xf] %vm1200, %v1130
        %1260 = vst.msk [vmem:[%s172 + $0xec] sm:$0xf] %vm1200, %v1131
        %1261 = vst.msk [vmem:[%s172 + $0xf0] sm:$0xf] %vm1200, %v1132
        %1262 = vst.msk [vmem:[%s172 + $0xf4] sm:$0xf] %vm1200, %v1133
        %1263 = vst.msk [vmem:[%s172 + $0xf8] sm:$0xf] %vm1200, %v1134
        %1264 = vst.msk [vmem:[%s172 + $0xfc] sm:$0xf] %vm1200, %v1135
        %s1265 = sand.u32 %s90, 1
        %s1266 = sand.u32 %s90, 1
        %s1267 = smul.addr %s1266, 256
        %s1268 = scalar_lea.vmem [#allocation2], %s1267
        // Predicated region
        $region33: #{actor_critic_forward.4} parent=31 // pred_check
          %p1269 = pneg %p100
        $region34: #{actor_critic_forward.4} parent=31 // pred_check_branch
          %1271 = sbr.rel (%p1269) target = $region36
        $region35: #{actor_critic_forward.4} parent=31 // pred_region
          %s1272 = smul.u32 64, %s14
          %s1273 = ssub.s32 273, %s1272
          %p1274 = scmp.lt.s32.totalorder %s1273, 64
          %s1275 = scalar_select %p1274, %s1273, 64
          %s1276 = smul.u32 64, %s1275
          %p1277 = scmp.ne.s32.totalorder 0, %s1276
          %s1278 = smul.addr %s1272, 4
          %s1279 = scalar_lea.vmem %s3, %s1278
          // Predicated region
          $region37: #{actor_critic_forward.4} parent=35 // pred_check
            %p1280 = pneg %p1277
          $region38: #{actor_critic_forward.4} parent=35 // pred_check_branch
            %1282 = sbr.rel (%p1280) target = $region40
          $region39: #{actor_critic_forward.4} parent=35 // pred_region
            // Predicated region
            $region41: #{actor_critic_forward.4} parent=39 // pred_check
              _
            $region42: #{actor_critic_forward.4} parent=39 // pred_check_branch
              %1284 = sbr.rel target = $region44
            $region43: #{actor_critic_forward.4} parent=39 // pred_region
              // Predicated region
              $region63: #{actor_critic_forward.4} parent=43 // pred_check
                _
              $region64: #{actor_critic_forward.4} parent=43 // pred_check_branch
                %1460 = sbr.rel (0) target = $region66
              $region65: #{actor_critic_forward.4} parent=43 // pred_region
                %s1462 = ssub.s32 16, 1
                %s1463 = sshrl.u32 %s1275, 6
                // While loop
                $region67: #{actor_critic_forward.4} parent=65 // loop_pre_header
                  _
                $region68: #{actor_critic_forward.4} parent=65 // loop_header
                  %s1465 = sphi 0, %s1467
                  %p1466 = scmp.ge.s32.totalorder %s1465, %s1463
                  %s1470 = sphi 0, %s1603
                  %s1471 = sphi %s1268, %s1606
                  %s1472 = sphi %s1279, %s1607
                $region69: #{actor_critic_forward.4} parent=65 // loop_header_branch
                  %1469 = sbr.rel (%p1466) target = $region73
                $region70: #{actor_critic_forward.4} parent=65 // loop_body
                  %v1473 = vld [vmem:[%s1471] sm:%s1462]
                  %1474 = vst [vmem:[%s1472] sm:%s1462] %v1473
                  %v1475 = vld [vmem:[%s1471 + $0x4] sm:%s1462]
                  %1476 = vst [vmem:[%s1472 + $0x4] sm:%s1462] %v1475
                  %v1477 = vld [vmem:[%s1471 + $0x8] sm:%s1462]
                  %1478 = vst [vmem:[%s1472 + $0x8] sm:%s1462] %v1477
                  %v1479 = vld [vmem:[%s1471 + $0xc] sm:%s1462]
                  %1480 = vst [vmem:[%s1472 + $0xc] sm:%s1462] %v1479
                  %v1481 = vld [vmem:[%s1471 + $0x10] sm:%s1462]
                  %1482 = vst [vmem:[%s1472 + $0x10] sm:%s1462] %v1481
                  %v1483 = vld [vmem:[%s1471 + $0x14] sm:%s1462]
                  %1484 = vst [vmem:[%s1472 + $0x14] sm:%s1462] %v1483
                  %v1485 = vld [vmem:[%s1471 + $0x18] sm:%s1462]
                  %1486 = vst [vmem:[%s1472 + $0x18] sm:%s1462] %v1485
                  %v1487 = vld [vmem:[%s1471 + $0x1c] sm:%s1462]
                  %1488 = vst [vmem:[%s1472 + $0x1c] sm:%s1462] %v1487
                  %v1489 = vld [vmem:[%s1471 + $0x20] sm:%s1462]
                  %1490 = vst [vmem:[%s1472 + $0x20] sm:%s1462] %v1489
                  %v1491 = vld [vmem:[%s1471 + $0x24] sm:%s1462]
                  %1492 = vst [vmem:[%s1472 + $0x24] sm:%s1462] %v1491
                  %v1493 = vld [vmem:[%s1471 + $0x28] sm:%s1462]
                  %1494 = vst [vmem:[%s1472 + $0x28] sm:%s1462] %v1493
                  %v1495 = vld [vmem:[%s1471 + $0x2c] sm:%s1462]
                  %1496 = vst [vmem:[%s1472 + $0x2c] sm:%s1462] %v1495
                  %v1497 = vld [vmem:[%s1471 + $0x30] sm:%s1462]
                  %1498 = vst [vmem:[%s1472 + $0x30] sm:%s1462] %v1497
                  %v1499 = vld [vmem:[%s1471 + $0x34] sm:%s1462]
                  %1500 = vst [vmem:[%s1472 + $0x34] sm:%s1462] %v1499
                  %v1501 = vld [vmem:[%s1471 + $0x38] sm:%s1462]
                  %1502 = vst [vmem:[%s1472 + $0x38] sm:%s1462] %v1501
                  %v1503 = vld [vmem:[%s1471 + $0x3c] sm:%s1462]
                  %1504 = vst [vmem:[%s1472 + $0x3c] sm:%s1462] %v1503
                  %v1505 = vld [vmem:[%s1471 + $0x40] sm:%s1462]
                  %1506 = vst [vmem:[%s1472 + $0x40] sm:%s1462] %v1505
                  %v1507 = vld [vmem:[%s1471 + $0x44] sm:%s1462]
                  %1508 = vst [vmem:[%s1472 + $0x44] sm:%s1462] %v1507
                  %v1509 = vld [vmem:[%s1471 + $0x48] sm:%s1462]
                  %1510 = vst [vmem:[%s1472 + $0x48] sm:%s1462] %v1509
                  %v1511 = vld [vmem:[%s1471 + $0x4c] sm:%s1462]
                  %1512 = vst [vmem:[%s1472 + $0x4c] sm:%s1462] %v1511
                  %v1513 = vld [vmem:[%s1471 + $0x50] sm:%s1462]
                  %1514 = vst [vmem:[%s1472 + $0x50] sm:%s1462] %v1513
                  %v1515 = vld [vmem:[%s1471 + $0x54] sm:%s1462]
                  %1516 = vst [vmem:[%s1472 + $0x54] sm:%s1462] %v1515
                  %v1517 = vld [vmem:[%s1471 + $0x58] sm:%s1462]
                  %1518 = vst [vmem:[%s1472 + $0x58] sm:%s1462] %v1517
                  %v1519 = vld [vmem:[%s1471 + $0x5c] sm:%s1462]
                  %1520 = vst [vmem:[%s1472 + $0x5c] sm:%s1462] %v1519
                  %v1521 = vld [vmem:[%s1471 + $0x60] sm:%s1462]
                  %1522 = vst [vmem:[%s1472 + $0x60] sm:%s1462] %v1521
                  %v1523 = vld [vmem:[%s1471 + $0x64] sm:%s1462]
                  %1524 = vst [vmem:[%s1472 + $0x64] sm:%s1462] %v1523
                  %v1525 = vld [vmem:[%s1471 + $0x68] sm:%s1462]
                  %1526 = vst [vmem:[%s1472 + $0x68] sm:%s1462] %v1525
                  %v1527 = vld [vmem:[%s1471 + $0x6c] sm:%s1462]
                  %1528 = vst [vmem:[%s1472 + $0x6c] sm:%s1462] %v1527
                  %v1529 = vld [vmem:[%s1471 + $0x70] sm:%s1462]
                  %1530 = vst [vmem:[%s1472 + $0x70] sm:%s1462] %v1529
                  %v1531 = vld [vmem:[%s1471 + $0x74] sm:%s1462]
                  %1532 = vst [vmem:[%s1472 + $0x74] sm:%s1462] %v1531
                  %v1533 = vld [vmem:[%s1471 + $0x78] sm:%s1462]
                  %1534 = vst [vmem:[%s1472 + $0x78] sm:%s1462] %v1533
                  %v1535 = vld [vmem:[%s1471 + $0x7c] sm:%s1462]
                  %1536 = vst [vmem:[%s1472 + $0x7c] sm:%s1462] %v1535
                  %v1537 = vld [vmem:[%s1471 + $0x80] sm:%s1462]
                  %1538 = vst [vmem:[%s1472 + $0x80] sm:%s1462] %v1537
                  %v1539 = vld [vmem:[%s1471 + $0x84] sm:%s1462]
                  %1540 = vst [vmem:[%s1472 + $0x84] sm:%s1462] %v1539
                  %v1541 = vld [vmem:[%s1471 + $0x88] sm:%s1462]
                  %1542 = vst [vmem:[%s1472 + $0x88] sm:%s1462] %v1541
                  %v1543 = vld [vmem:[%s1471 + $0x8c] sm:%s1462]
                  %1544 = vst [vmem:[%s1472 + $0x8c] sm:%s1462] %v1543
                  %v1545 = vld [vmem:[%s1471 + $0x90] sm:%s1462]
                  %1546 = vst [vmem:[%s1472 + $0x90] sm:%s1462] %v1545
                  %v1547 = vld [vmem:[%s1471 + $0x94] sm:%s1462]
                  %1548 = vst [vmem:[%s1472 + $0x94] sm:%s1462] %v1547
                  %v1549 = vld [vmem:[%s1471 + $0x98] sm:%s1462]
                  %1550 = vst [vmem:[%s1472 + $0x98] sm:%s1462] %v1549
                  %v1551 = vld [vmem:[%s1471 + $0x9c] sm:%s1462]
                  %1552 = vst [vmem:[%s1472 + $0x9c] sm:%s1462] %v1551
                  %v1553 = vld [vmem:[%s1471 + $0xa0] sm:%s1462]
                  %1554 = vst [vmem:[%s1472 + $0xa0] sm:%s1462] %v1553
                  %v1555 = vld [vmem:[%s1471 + $0xa4] sm:%s1462]
                  %1556 = vst [vmem:[%s1472 + $0xa4] sm:%s1462] %v1555
                  %v1557 = vld [vmem:[%s1471 + $0xa8] sm:%s1462]
                  %1558 = vst [vmem:[%s1472 + $0xa8] sm:%s1462] %v1557
                  %v1559 = vld [vmem:[%s1471 + $0xac] sm:%s1462]
                  %1560 = vst [vmem:[%s1472 + $0xac] sm:%s1462] %v1559
                  %v1561 = vld [vmem:[%s1471 + $0xb0] sm:%s1462]
                  %1562 = vst [vmem:[%s1472 + $0xb0] sm:%s1462] %v1561
                  %v1563 = vld [vmem:[%s1471 + $0xb4] sm:%s1462]
                  %1564 = vst [vmem:[%s1472 + $0xb4] sm:%s1462] %v1563
                  %v1565 = vld [vmem:[%s1471 + $0xb8] sm:%s1462]
                  %1566 = vst [vmem:[%s1472 + $0xb8] sm:%s1462] %v1565
                  %v1567 = vld [vmem:[%s1471 + $0xbc] sm:%s1462]
                  %1568 = vst [vmem:[%s1472 + $0xbc] sm:%s1462] %v1567
                  %v1569 = vld [vmem:[%s1471 + $0xc0] sm:%s1462]
                  %1570 = vst [vmem:[%s1472 + $0xc0] sm:%s1462] %v1569
                  %v1571 = vld [vmem:[%s1471 + $0xc4] sm:%s1462]
                  %1572 = vst [vmem:[%s1472 + $0xc4] sm:%s1462] %v1571
                  %v1573 = vld [vmem:[%s1471 + $0xc8] sm:%s1462]
                  %1574 = vst [vmem:[%s1472 + $0xc8] sm:%s1462] %v1573
                  %v1575 = vld [vmem:[%s1471 + $0xcc] sm:%s1462]
                  %1576 = vst [vmem:[%s1472 + $0xcc] sm:%s1462] %v1575
                  %v1577 = vld [vmem:[%s1471 + $0xd0] sm:%s1462]
                  %1578 = vst [vmem:[%s1472 + $0xd0] sm:%s1462] %v1577
                  %v1579 = vld [vmem:[%s1471 + $0xd4] sm:%s1462]
                  %1580 = vst [vmem:[%s1472 + $0xd4] sm:%s1462] %v1579
                  %v1581 = vld [vmem:[%s1471 + $0xd8] sm:%s1462]
                  %1582 = vst [vmem:[%s1472 + $0xd8] sm:%s1462] %v1581
                  %v1583 = vld [vmem:[%s1471 + $0xdc] sm:%s1462]
                  %1584 = vst [vmem:[%s1472 + $0xdc] sm:%s1462] %v1583
                  %v1585 = vld [vmem:[%s1471 + $0xe0] sm:%s1462]
                  %1586 = vst [vmem:[%s1472 + $0xe0] sm:%s1462] %v1585
                  %v1587 = vld [vmem:[%s1471 + $0xe4] sm:%s1462]
                  %1588 = vst [vmem:[%s1472 + $0xe4] sm:%s1462] %v1587
                  %v1589 = vld [vmem:[%s1471 + $0xe8] sm:%s1462]
                  %1590 = vst [vmem:[%s1472 + $0xe8] sm:%s1462] %v1589
                  %v1591 = vld [vmem:[%s1471 + $0xec] sm:%s1462]
                  %1592 = vst [vmem:[%s1472 + $0xec] sm:%s1462] %v1591
                  %v1593 = vld [vmem:[%s1471 + $0xf0] sm:%s1462]
                  %1594 = vst [vmem:[%s1472 + $0xf0] sm:%s1462] %v1593
                  %v1595 = vld [vmem:[%s1471 + $0xf4] sm:%s1462]
                  %1596 = vst [vmem:[%s1472 + $0xf4] sm:%s1462] %v1595
                  %v1597 = vld [vmem:[%s1471 + $0xf8] sm:%s1462]
                  %1598 = vst [vmem:[%s1472 + $0xf8] sm:%s1462] %v1597
                  %v1599 = vld [vmem:[%s1471 + $0xfc] sm:%s1462]
                  %1600 = vst [vmem:[%s1472 + $0xfc] sm:%s1462] %v1599
                  %s1601 = sadd.s32 1, %s1470
                  %p1602 = scmp.ge.s32.totalorder %s1601, %s1463
                  %s1603 = scalar_select %p1602, 0, %s1601
                  %s1604 = smul.u32 %s1603, 256
                  %s1605 = smul.u32 %s1603, 256
                  %s1606 = scalar_lea.vmem %s1268, %s1604 [#allocation2]
                  %s1607 = scalar_lea.vmem %s1279, %s1605
                $region71: #{actor_critic_forward.4} parent=65 // loop_footer
                  %s1467 = sadd.s32 %s1465, 1
                $region72: #{actor_critic_forward.4} parent=65 // loop_footer_branch
                  %1464 = sbr.rel target = $region68
                $region73: #{actor_critic_forward.4} parent=65 // loop_exit
                  _
                %s1608 = sshrl.u32 %s1275, 6
                %s1609 = sand.u32 %s1275, 63
                %s1610 = smul.u32 %s1608, 64
                %s1611 = smul.u32 4, %s1610
                %s1612 = scalar_lea.vmem %s1268, %s1611 [#allocation2]
                %s1613 = smul.u32 4, %s1610
                %s1614 = scalar_lea.vmem %s1279, %s1613
                // While loop
                $region74: #{actor_critic_forward.4} parent=65 // loop_pre_header
                  _
                $region75: #{actor_critic_forward.4} parent=65 // loop_header
                  %s1616 = sphi 0, %s1618
                  %p1617 = scmp.ge.s32.totalorder %s1616, %s1609
                  %s1621 = sphi 0, %s1628
                  %s1622 = sphi %s1612, %s1631
                  %s1623 = sphi %s1614, %s1632
                $region76: #{actor_critic_forward.4} parent=65 // loop_header_branch
                  %1620 = sbr.rel (%p1617) target = $region80
                $region77: #{actor_critic_forward.4} parent=65 // loop_body
                  %v1624 = vld [vmem:[%s1622] sm:%s1462]
                  %1625 = vst [vmem:[%s1623] sm:%s1462] %v1624
                  %s1626 = sadd.s32 1, %s1621
                  %p1627 = scmp.ge.s32.totalorder %s1626, %s1609
                  %s1628 = scalar_select %p1627, 0, %s1626
                  %s1629 = smul.u32 %s1628, 4
                  %s1630 = smul.u32 %s1628, 4
                  %s1631 = scalar_lea.vmem %s1612, %s1629 [#allocation2]
                  %s1632 = scalar_lea.vmem %s1614, %s1630
                $region78: #{actor_critic_forward.4} parent=65 // loop_footer
                  %s1618 = sadd.s32 %s1616, 1
                $region79: #{actor_critic_forward.4} parent=65 // loop_footer_branch
                  %1615 = sbr.rel target = $region75
                $region80: #{actor_critic_forward.4} parent=65 // loop_exit
                  _
              $region66: #{actor_critic_forward.4} parent=43 // pred_fallthru
                _
            $region44: #{actor_critic_forward.4} parent=39 // pred_fallthru
              _
            // Predicated region
            $region45: #{actor_critic_forward.4} parent=39 // pred_check
              _
            $region46: #{actor_critic_forward.4} parent=39 // pred_check_branch
              %1286 = sbr.rel (0) target = $region48
            $region47: #{actor_critic_forward.4} parent=39 // pred_region
              %s1288 = ssub.s32 16, 1
              %s1289 = sshrl.u32 %s1275, 6
              // While loop
              $region49: #{actor_critic_forward.4} parent=47 // loop_pre_header
                _
              $region50: #{actor_critic_forward.4} parent=47 // loop_header
                %s1291 = sphi 0, %s1293
                %p1292 = scmp.ge.s32.totalorder %s1291, %s1289
                %s1296 = sphi 0, %s1429
                %s1297 = sphi %s1268, %s1432
                %s1298 = sphi %s1279, %s1433
              $region51: #{actor_critic_forward.4} parent=47 // loop_header_branch
                %1295 = sbr.rel (%p1292) target = $region55
              $region52: #{actor_critic_forward.4} parent=47 // loop_body
                %v1299 = vld [vmem:[%s1297] sm:%s1288]
                %1300 = vst [vmem:[%s1298] sm:%s1288] %v1299
                %v1301 = vld [vmem:[%s1297 + $0x4] sm:%s1288]
                %1302 = vst [vmem:[%s1298 + $0x4] sm:%s1288] %v1301
                %v1303 = vld [vmem:[%s1297 + $0x8] sm:%s1288]
                %1304 = vst [vmem:[%s1298 + $0x8] sm:%s1288] %v1303
                %v1305 = vld [vmem:[%s1297 + $0xc] sm:%s1288]
                %1306 = vst [vmem:[%s1298 + $0xc] sm:%s1288] %v1305
                %v1307 = vld [vmem:[%s1297 + $0x10] sm:%s1288]
                %1308 = vst [vmem:[%s1298 + $0x10] sm:%s1288] %v1307
                %v1309 = vld [vmem:[%s1297 + $0x14] sm:%s1288]
                %1310 = vst [vmem:[%s1298 + $0x14] sm:%s1288] %v1309
                %v1311 = vld [vmem:[%s1297 + $0x18] sm:%s1288]
                %1312 = vst [vmem:[%s1298 + $0x18] sm:%s1288] %v1311
                %v1313 = vld [vmem:[%s1297 + $0x1c] sm:%s1288]
                %1314 = vst [vmem:[%s1298 + $0x1c] sm:%s1288] %v1313
                %v1315 = vld [vmem:[%s1297 + $0x20] sm:%s1288]
                %1316 = vst [vmem:[%s1298 + $0x20] sm:%s1288] %v1315
                %v1317 = vld [vmem:[%s1297 + $0x24] sm:%s1288]
                %1318 = vst [vmem:[%s1298 + $0x24] sm:%s1288] %v1317
                %v1319 = vld [vmem:[%s1297 + $0x28] sm:%s1288]
                %1320 = vst [vmem:[%s1298 + $0x28] sm:%s1288] %v1319
                %v1321 = vld [vmem:[%s1297 + $0x2c] sm:%s1288]
                %1322 = vst [vmem:[%s1298 + $0x2c] sm:%s1288] %v1321
                %v1323 = vld [vmem:[%s1297 + $0x30] sm:%s1288]
                %1324 = vst [vmem:[%s1298 + $0x30] sm:%s1288] %v1323
                %v1325 = vld [vmem:[%s1297 + $0x34] sm:%s1288]
                %1326 = vst [vmem:[%s1298 + $0x34] sm:%s1288] %v1325
                %v1327 = vld [vmem:[%s1297 + $0x38] sm:%s1288]
                %1328 = vst [vmem:[%s1298 + $0x38] sm:%s1288] %v1327
                %v1329 = vld [vmem:[%s1297 + $0x3c] sm:%s1288]
                %1330 = vst [vmem:[%s1298 + $0x3c] sm:%s1288] %v1329
                %v1331 = vld [vmem:[%s1297 + $0x40] sm:%s1288]
                %1332 = vst [vmem:[%s1298 + $0x40] sm:%s1288] %v1331
                %v1333 = vld [vmem:[%s1297 + $0x44] sm:%s1288]
                %1334 = vst [vmem:[%s1298 + $0x44] sm:%s1288] %v1333
                %v1335 = vld [vmem:[%s1297 + $0x48] sm:%s1288]
                %1336 = vst [vmem:[%s1298 + $0x48] sm:%s1288] %v1335
                %v1337 = vld [vmem:[%s1297 + $0x4c] sm:%s1288]
                %1338 = vst [vmem:[%s1298 + $0x4c] sm:%s1288] %v1337
                %v1339 = vld [vmem:[%s1297 + $0x50] sm:%s1288]
                %1340 = vst [vmem:[%s1298 + $0x50] sm:%s1288] %v1339
                %v1341 = vld [vmem:[%s1297 + $0x54] sm:%s1288]
                %1342 = vst [vmem:[%s1298 + $0x54] sm:%s1288] %v1341
                %v1343 = vld [vmem:[%s1297 + $0x58] sm:%s1288]
                %1344 = vst [vmem:[%s1298 + $0x58] sm:%s1288] %v1343
                %v1345 = vld [vmem:[%s1297 + $0x5c] sm:%s1288]
                %1346 = vst [vmem:[%s1298 + $0x5c] sm:%s1288] %v1345
                %v1347 = vld [vmem:[%s1297 + $0x60] sm:%s1288]
                %1348 = vst [vmem:[%s1298 + $0x60] sm:%s1288] %v1347
                %v1349 = vld [vmem:[%s1297 + $0x64] sm:%s1288]
                %1350 = vst [vmem:[%s1298 + $0x64] sm:%s1288] %v1349
                %v1351 = vld [vmem:[%s1297 + $0x68] sm:%s1288]
                %1352 = vst [vmem:[%s1298 + $0x68] sm:%s1288] %v1351
                %v1353 = vld [vmem:[%s1297 + $0x6c] sm:%s1288]
                %1354 = vst [vmem:[%s1298 + $0x6c] sm:%s1288] %v1353
                %v1355 = vld [vmem:[%s1297 + $0x70] sm:%s1288]
                %1356 = vst [vmem:[%s1298 + $0x70] sm:%s1288] %v1355
                %v1357 = vld [vmem:[%s1297 + $0x74] sm:%s1288]
                %1358 = vst [vmem:[%s1298 + $0x74] sm:%s1288] %v1357
                %v1359 = vld [vmem:[%s1297 + $0x78] sm:%s1288]
                %1360 = vst [vmem:[%s1298 + $0x78] sm:%s1288] %v1359
                %v1361 = vld [vmem:[%s1297 + $0x7c] sm:%s1288]
                %1362 = vst [vmem:[%s1298 + $0x7c] sm:%s1288] %v1361
                %v1363 = vld [vmem:[%s1297 + $0x80] sm:%s1288]
                %1364 = vst [vmem:[%s1298 + $0x80] sm:%s1288] %v1363
                %v1365 = vld [vmem:[%s1297 + $0x84] sm:%s1288]
                %1366 = vst [vmem:[%s1298 + $0x84] sm:%s1288] %v1365
                %v1367 = vld [vmem:[%s1297 + $0x88] sm:%s1288]
                %1368 = vst [vmem:[%s1298 + $0x88] sm:%s1288] %v1367
                %v1369 = vld [vmem:[%s1297 + $0x8c] sm:%s1288]
                %1370 = vst [vmem:[%s1298 + $0x8c] sm:%s1288] %v1369
                %v1371 = vld [vmem:[%s1297 + $0x90] sm:%s1288]
                %1372 = vst [vmem:[%s1298 + $0x90] sm:%s1288] %v1371
                %v1373 = vld [vmem:[%s1297 + $0x94] sm:%s1288]
                %1374 = vst [vmem:[%s1298 + $0x94] sm:%s1288] %v1373
                %v1375 = vld [vmem:[%s1297 + $0x98] sm:%s1288]
                %1376 = vst [vmem:[%s1298 + $0x98] sm:%s1288] %v1375
                %v1377 = vld [vmem:[%s1297 + $0x9c] sm:%s1288]
                %1378 = vst [vmem:[%s1298 + $0x9c] sm:%s1288] %v1377
                %v1379 = vld [vmem:[%s1297 + $0xa0] sm:%s1288]
                %1380 = vst [vmem:[%s1298 + $0xa0] sm:%s1288] %v1379
                %v1381 = vld [vmem:[%s1297 + $0xa4] sm:%s1288]
                %1382 = vst [vmem:[%s1298 + $0xa4] sm:%s1288] %v1381
                %v1383 = vld [vmem:[%s1297 + $0xa8] sm:%s1288]
                %1384 = vst [vmem:[%s1298 + $0xa8] sm:%s1288] %v1383
                %v1385 = vld [vmem:[%s1297 + $0xac] sm:%s1288]
                %1386 = vst [vmem:[%s1298 + $0xac] sm:%s1288] %v1385
                %v1387 = vld [vmem:[%s1297 + $0xb0] sm:%s1288]
                %1388 = vst [vmem:[%s1298 + $0xb0] sm:%s1288] %v1387
                %v1389 = vld [vmem:[%s1297 + $0xb4] sm:%s1288]
                %1390 = vst [vmem:[%s1298 + $0xb4] sm:%s1288] %v1389
                %v1391 = vld [vmem:[%s1297 + $0xb8] sm:%s1288]
                %1392 = vst [vmem:[%s1298 + $0xb8] sm:%s1288] %v1391
                %v1393 = vld [vmem:[%s1297 + $0xbc] sm:%s1288]
                %1394 = vst [vmem:[%s1298 + $0xbc] sm:%s1288] %v1393
                %v1395 = vld [vmem:[%s1297 + $0xc0] sm:%s1288]
                %1396 = vst [vmem:[%s1298 + $0xc0] sm:%s1288] %v1395
                %v1397 = vld [vmem:[%s1297 + $0xc4] sm:%s1288]
                %1398 = vst [vmem:[%s1298 + $0xc4] sm:%s1288] %v1397
                %v1399 = vld [vmem:[%s1297 + $0xc8] sm:%s1288]
                %1400 = vst [vmem:[%s1298 + $0xc8] sm:%s1288] %v1399
                %v1401 = vld [vmem:[%s1297 + $0xcc] sm:%s1288]
                %1402 = vst [vmem:[%s1298 + $0xcc] sm:%s1288] %v1401
                %v1403 = vld [vmem:[%s1297 + $0xd0] sm:%s1288]
                %1404 = vst [vmem:[%s1298 + $0xd0] sm:%s1288] %v1403
                %v1405 = vld [vmem:[%s1297 + $0xd4] sm:%s1288]
                %1406 = vst [vmem:[%s1298 + $0xd4] sm:%s1288] %v1405
                %v1407 = vld [vmem:[%s1297 + $0xd8] sm:%s1288]
                %1408 = vst [vmem:[%s1298 + $0xd8] sm:%s1288] %v1407
                %v1409 = vld [vmem:[%s1297 + $0xdc] sm:%s1288]
                %1410 = vst [vmem:[%s1298 + $0xdc] sm:%s1288] %v1409
                %v1411 = vld [vmem:[%s1297 + $0xe0] sm:%s1288]
                %1412 = vst [vmem:[%s1298 + $0xe0] sm:%s1288] %v1411
                %v1413 = vld [vmem:[%s1297 + $0xe4] sm:%s1288]
                %1414 = vst [vmem:[%s1298 + $0xe4] sm:%s1288] %v1413
                %v1415 = vld [vmem:[%s1297 + $0xe8] sm:%s1288]
                %1416 = vst [vmem:[%s1298 + $0xe8] sm:%s1288] %v1415
                %v1417 = vld [vmem:[%s1297 + $0xec] sm:%s1288]
                %1418 = vst [vmem:[%s1298 + $0xec] sm:%s1288] %v1417
                %v1419 = vld [vmem:[%s1297 + $0xf0] sm:%s1288]
                %1420 = vst [vmem:[%s1298 + $0xf0] sm:%s1288] %v1419
                %v1421 = vld [vmem:[%s1297 + $0xf4] sm:%s1288]
                %1422 = vst [vmem:[%s1298 + $0xf4] sm:%s1288] %v1421
                %v1423 = vld [vmem:[%s1297 + $0xf8] sm:%s1288]
                %1424 = vst [vmem:[%s1298 + $0xf8] sm:%s1288] %v1423
                %v1425 = vld [vmem:[%s1297 + $0xfc] sm:%s1288]
                %1426 = vst [vmem:[%s1298 + $0xfc] sm:%s1288] %v1425
                %s1427 = sadd.s32 1, %s1296
                %p1428 = scmp.ge.s32.totalorder %s1427, %s1289
                %s1429 = scalar_select %p1428, 0, %s1427
                %s1430 = smul.u32 %s1429, 256
                %s1431 = smul.u32 %s1429, 256
                %s1432 = scalar_lea.vmem %s1268, %s1430 [#allocation2]
                %s1433 = scalar_lea.vmem %s1279, %s1431
              $region53: #{actor_critic_forward.4} parent=47 // loop_footer
                %s1293 = sadd.s32 %s1291, 1
              $region54: #{actor_critic_forward.4} parent=47 // loop_footer_branch
                %1290 = sbr.rel target = $region50
              $region55: #{actor_critic_forward.4} parent=47 // loop_exit
                _
              %s1434 = sshrl.u32 %s1275, 6
              %s1435 = sand.u32 %s1275, 63
              %s1436 = smul.u32 %s1434, 64
              %s1437 = smul.u32 4, %s1436
              %s1438 = scalar_lea.vmem %s1268, %s1437 [#allocation2]
              %s1439 = smul.u32 4, %s1436
              %s1440 = scalar_lea.vmem %s1279, %s1439
              // While loop
              $region56: #{actor_critic_forward.4} parent=47 // loop_pre_header
                _
              $region57: #{actor_critic_forward.4} parent=47 // loop_header
                %s1442 = sphi 0, %s1444
                %p1443 = scmp.ge.s32.totalorder %s1442, %s1435
                %s1447 = sphi 0, %s1454
                %s1448 = sphi %s1438, %s1457
                %s1449 = sphi %s1440, %s1458
              $region58: #{actor_critic_forward.4} parent=47 // loop_header_branch
                %1446 = sbr.rel (%p1443) target = $region62
              $region59: #{actor_critic_forward.4} parent=47 // loop_body
                %v1450 = vld [vmem:[%s1448] sm:%s1288]
                %1451 = vst [vmem:[%s1449] sm:%s1288] %v1450
                %s1452 = sadd.s32 1, %s1447
                %p1453 = scmp.ge.s32.totalorder %s1452, %s1435
                %s1454 = scalar_select %p1453, 0, %s1452
                %s1455 = smul.u32 %s1454, 4
                %s1456 = smul.u32 %s1454, 4
                %s1457 = scalar_lea.vmem %s1438, %s1455 [#allocation2]
                %s1458 = scalar_lea.vmem %s1440, %s1456
              $region60: #{actor_critic_forward.4} parent=47 // loop_footer
                %s1444 = sadd.s32 %s1442, 1
              $region61: #{actor_critic_forward.4} parent=47 // loop_footer_branch
                %1441 = sbr.rel target = $region57
              $region62: #{actor_critic_forward.4} parent=47 // loop_exit
                _
            $region48: #{actor_critic_forward.4} parent=39 // pred_fallthru
              _
          $region40: #{actor_critic_forward.4} parent=35 // pred_fallthru
            _
          %1633 = vnop
        $region36: #{actor_critic_forward.4} parent=31 // pred_fallthru
          _
      $region32: #{actor_critic_forward.4} parent=5 // pred_fallthru
        _
      %p1634 = scmp.le.s32.totalorder 2, %s9
      // Predicated region
      $region81: #{actor_critic_forward.4} parent=5 // pred_check
        %p1635 = pneg %p1634
      $region82: #{actor_critic_forward.4} parent=5 // pred_check_branch
        %1637 = sbr.rel (%p1635) target = $region84
      $region83: #{actor_critic_forward.4} parent=5 // pred_region
        %s1638 = ssub.s32 %s9, 2
        // Predicated region
        $region85: #{actor_critic_forward.4} parent=83 // pred_check
          %p1639 = pneg %p106
        $region86: #{actor_critic_forward.4} parent=83 // pred_check_branch
          %1641 = sbr.rel (%p1639) target = $region88
        $region87: #{actor_critic_forward.4} parent=83 // pred_region
          %s1642 = sand.u32 %s91, 1
          %s1643 = sand.u32 %s91, 1
          %s1644 = smul.addr %s1643, 256
          %s1645 = scalar_lea.vmem [#allocation2], %s1644
        $region88: #{actor_critic_forward.4} parent=83 // pred_fallthru
          _
      $region84: #{actor_critic_forward.4} parent=5 // pred_fallthru
        _
    $region6: #{actor_critic_forward.4} parent=1 // loop_footer
      %s13 = sadd.s32 1, %s9
    $region7: #{actor_critic_forward.4} parent=1 // loop_footer_branch
      %8 = sbr.rel target = $region3
    $region8: #{actor_critic_forward.4} parent=1 // loop_exit
      _

// kernel: actor_critic_forward.5
$region0: #{actor_critic_forward.5}
  #allocation0 [shape = 'u32[]', space=smem, size = 0x4, offset = 0x4, fixed_abs, tag = 'smem constant byte address 0x4 - core index']
  #allocation1 [shape = 'u32[144,128]{1,0:T(1,128)}', space=vmem, size = 0x12000, scoped, tag = 'internal scratch']
  %s0 = inlined_call_operand.vmem [shape: bf16[512,144], index: 0, kind: input, shape index: {}]
  %s1 = inlined_call_operand.vmem [shape: bf16[144,32], index: 1, kind: input, shape index: {}]
  %s2 = inlined_call_operand.vmem [shape: f32[1,32], index: 2, kind: input, shape index: {}]
  %s3 = inlined_call_operand.vmem [shape: bf16[512,32], index: 3, kind: output, shape index: {}]
  %s4 = sld [smem:[#allocation0]]
  $region45: #{actor_critic_forward.5} parent=0
    _
  %s6 = ssub.s32 1, %s4
  %s7 = scalar_select 0, %s6, %s4
  loop: start=0, step=1, limit=4
  $region2: #{actor_critic_forward.5} parent=0 // loop_pre_header
    _
  $region3: #{actor_critic_forward.5} parent=0 // loop_header
    %s9 = sphi 0, %s13
    %p10 = scmp.ge.s32.totalorder %s9, 4
    %s19 = sphi 0, %s21
    %s22 = sphi 0, %s19
    %s23 = sphi 0, %s22
    %s39 = sphi 0, %s23
    %s43 = sphi 0, %s43
    %s45 = sphi 0, %s43
    %s46 = sphi 0, %s45
    %s60 = sphi 0, %s46
    %s64 = sphi 0, %s64
    %s66 = sphi 0, %s64
    %s67 = sphi 0, %s66
    %s81 = sphi 0, %s67
    %s87 = sphi 0, %s89
    %s90 = sphi 0, %s87
    %s91 = sphi 0, %s90
    %s107 = sphi 0, %s91
  $region4: #{actor_critic_forward.5} parent=0 // loop_header_branch
    %12 = sbr.rel (%p10) target = $region8
  $region5: #{actor_critic_forward.5} parent=0 // loop_body
    %s14 = ssub.s32 %s9, 1
    %s15 = ssub.s32 %s9, 2
    %s16 = sadd.s32 %s9, 1
    %s17 = ssub.s32 %s9, %s16
    %p18 = scmp.eq.s32.totalorder %s17, 0
    %s20 = sadd.s32 %s19, 1
    %s21 = scalar_select %p18, %s19, %s20
    %p24 = pneg %p18
    %p25 = scmp.eq.s32.totalorder %s9, 1
    %p26 = por %p24, %p25
    %p27 = scmp.ne.s32.totalorder %s19, %s22
    %p28 = scmp.eq.s32.totalorder %s9, 0
    %p29 = por %p27, %p28
    %p30 = scmp.ne.s32.totalorder %s19, %s22
    %p31 = scmp.eq.s32.totalorder %s14, 1
    %p32 = por %p30, %p31
    %p33 = scmp.ne.s32.totalorder %s22, %s23
    %p34 = scmp.eq.s32.totalorder %s14, 0
    %p35 = por %p33, %p34
    %p36 = scmp.ne.s32.totalorder %s22, %s23
    %p37 = scmp.eq.s32.totalorder %s15, 1
    %p38 = por %p36, %p37
    %p40 = scmp.ne.s32.totalorder %s23, %s39
    %p41 = scmp.eq.s32.totalorder %s15, 0
    %p42 = por %p40, %p41
    %s44 = sadd.s32 %s43, 1
    %p47 = scmp.eq.s32.totalorder %s9, 1
    %p48 = scmp.ne.s32.totalorder %s43, %s45
    %p49 = scmp.eq.s32.totalorder %s9, 0
    %p50 = por %p48, %p49
    %p51 = scmp.ne.s32.totalorder %s43, %s45
    %p52 = scmp.eq.s32.totalorder %s14, 1
    %p53 = por %p51, %p52
    %p54 = scmp.ne.s32.totalorder %s45, %s46
    %p55 = scmp.eq.s32.totalorder %s14, 0
    %p56 = por %p54, %p55
    %p57 = scmp.ne.s32.totalorder %s45, %s46
    %p58 = scmp.eq.s32.totalorder %s15, 1
    %p59 = por %p57, %p58
    %p61 = scmp.ne.s32.totalorder %s46, %s60
    %p62 = scmp.eq.s32.totalorder %s15, 0
    %p63 = por %p61, %p62
    %s65 = sadd.s32 %s64, 1
    %p68 = scmp.eq.s32.totalorder %s9, 1
    %p69 = scmp.ne.s32.totalorder %s64, %s66
    %p70 = scmp.eq.s32.totalorder %s9, 0
    %p71 = por %p69, %p70
    %p72 = scmp.ne.s32.totalorder %s64, %s66
    %p73 = scmp.eq.s32.totalorder %s14, 1
    %p74 = por %p72, %p73
    %p75 = scmp.ne.s32.totalorder %s66, %s67
    %p76 = scmp.eq.s32.totalorder %s14, 0
    %p77 = por %p75, %p76
    %p78 = scmp.ne.s32.totalorder %s66, %s67
    %p79 = scmp.eq.s32.totalorder %s15, 1
    %p80 = por %p78, %p79
    %p82 = scmp.ne.s32.totalorder %s67, %s81
    %p83 = scmp.eq.s32.totalorder %s15, 0
    %p84 = por %p82, %p83
    %s85 = ssub.s32 %s9, %s16
    %p86 = scmp.eq.s32.totalorder %s85, 0
    %s88 = sadd.s32 %s87, 1
    %s89 = scalar_select %p86, %s87, %s88
    %p92 = pneg %p86
    %p93 = scmp.eq.s32.totalorder %s9, 1
    %p94 = por %p92, %p93
    %p95 = scmp.ne.s32.totalorder %s87, %s90
    %p96 = scmp.eq.s32.totalorder %s9, 0
    %p97 = por %p95, %p96
    %p98 = scmp.ne.s32.totalorder %s87, %s90
    %p99 = scmp.eq.s32.totalorder %s14, 1
    %p100 = por %p98, %p99
    %p101 = scmp.ne.s32.totalorder %s90, %s91
    %p102 = scmp.eq.s32.totalorder %s14, 0
    %p103 = por %p101, %p102
    %p104 = scmp.ne.s32.totalorder %s90, %s91
    %p105 = scmp.eq.s32.totalorder %s15, 1
    %p106 = por %p104, %p105
    %p108 = scmp.ne.s32.totalorder %s91, %s107
    %p109 = scmp.eq.s32.totalorder %s15, 0
    %p110 = por %p108, %p109
    %p111 = scmp.le.s32.totalorder 1, %s9
    %p112 = scmp.lt.s32.totalorder %s9, 3
    %p113 = pnand %p111, %p112
    %p114 = pneg %p113
    // Predicated region
    $region9: #{actor_critic_forward.5} parent=5 // pred_check
      _
    $region10: #{actor_critic_forward.5} parent=5 // pred_check_branch
      %116 = sbr.rel (%p113) target = $region12
    $region11: #{actor_critic_forward.5} parent=5 // pred_region
      %s117 = ssub.s32 %s9, 1
      // Predicated region
      $region13: #{actor_critic_forward.5} parent=11 // pred_check
        %p118 = pneg %p56
      $region14: #{actor_critic_forward.5} parent=11 // pred_check_branch
        %120 = sbr.rel (%p118) target = $region16
      $region15: #{actor_critic_forward.5} parent=11 // pred_region
        _
      $region16: #{actor_critic_forward.5} parent=11 // pred_fallthru
        _
      // Predicated region
      $region17: #{actor_critic_forward.5} parent=11 // pred_check
        %p121 = pneg %p77
      $region18: #{actor_critic_forward.5} parent=11 // pred_check_branch
        %123 = sbr.rel (%p121) target = $region20
      $region19: #{actor_critic_forward.5} parent=11 // pred_region
        _
      $region20: #{actor_critic_forward.5} parent=11 // pred_fallthru
        _
    $region12: #{actor_critic_forward.5} parent=5 // pred_fallthru
      _
    %p124 = scmp.lt.s32.totalorder %s9, 2
    // Predicated region
    $region21: #{actor_critic_forward.5} parent=5 // pred_check
      %p125 = pneg %p124
    $region22: #{actor_critic_forward.5} parent=5 // pred_check_branch
      %127 = sbr.rel (%p125) target = $region24
    $region23: #{actor_critic_forward.5} parent=5 // pred_region
      // Predicated region
      $region25: #{actor_critic_forward.5} parent=23 // pred_check
        %p128 = pneg %p29
      $region26: #{actor_critic_forward.5} parent=23 // pred_check_branch
        %130 = sbr.rel (%p128) target = $region28
      $region27: #{actor_critic_forward.5} parent=23 // pred_region
        %s131 = smul.u32 32, %s9
        %p132 = scmp.lt.s32.totalorder %s131, 63
        %s133 = scalar_select %p132, %s131, 63
        %s134 = smul.addr %s133, 2
        %s135 = smul.addr %s134, 4
        %s136 = scalar_lea.vmem %s0, %s135
        %s137 = smul.u32 32, %s9
      $region28: #{actor_critic_forward.5} parent=23 // pred_fallthru
        _
    $region24: #{actor_critic_forward.5} parent=5 // pred_fallthru
      _
    %p138 = scmp.le.s32.totalorder 1, %s9
    %p139 = scmp.lt.s32.totalorder %s9, 3
    %p140 = pnand %p138, %p139
    %p141 = pneg %p140
    // Predicated region
    $region29: #{actor_critic_forward.5} parent=5 // pred_check
      _
    $region30: #{actor_critic_forward.5} parent=5 // pred_check_branch
      %143 = sbr.rel (%p140) target = $region32
    $region31: #{actor_critic_forward.5} parent=5 // pred_region
      %s144 = ssub.s32 %s9, 1
      %s145 = smul.u32 32, %s14
      %p146 = scmp.lt.s32.totalorder %s145, 63
      %s147 = scalar_select %p146, %s145, 63
      %s148 = smul.addr %s147, 2
      %s149 = smul.addr %s148, 4
      %s150 = scalar_lea.vmem %s0, %s149
      %p151 = pneg %p35
      %p152 = pneg %p32
      %p153 = pneg %p56
      %p154 = pneg %p53
      %p155 = pneg %p77
      %p156 = pneg %p74
      %p157 = pneg %p103
      %p158 = pneg %p100
      %s159 = smul.u32 32, %s14
      %p160 = scmp.lt.s32.totalorder %s159, 63
      %s161 = scalar_select %p160, %s159, 63
      %s162 = smul.addr %s161, 4
      %s163 = scalar_lea.vmem %s3, %s162
      %s164 = smul.u32 32, %s14
      %p165 = scmp.lt.s32.totalorder %s164, 63
      %s166 = scalar_select %p165, %s164, 63
      %s167 = smul.addr %s166, 2
      %s168 = smul.addr %s167, 4
      %s169 = scalar_lea.vmem %s0, %s168
      %s170 = smul.u32 32, %s14
      %s171 = smul.u32 32, %s14
      %p172 = scmp.lt.s32.totalorder %s171, 63
      %s173 = scalar_select %p172, %s171, 63
      %s174 = smul.addr %s173, 4
      %s175 = scalar_lea.vmem %s3, %s174
      %s176 = smul.u32 32, %s14
      %v178 = vld [vmem:[%s169] sm:$0xff]
      %v179 = vld [vmem:[%s169 + $0x8] sm:$0xff]
      %v180 = vld [vmem:[%s169 + $0x10] sm:$0xff]
      %v181 = vld [vmem:[%s169 + $0x18] sm:$0xff]
      %v182 = vld [vmem:[%s169 + $0x20] sm:$0xff]
      %v183 = vld [vmem:[%s169 + $0x28] sm:$0xff]
      %v184 = vld [vmem:[%s169 + $0x30] sm:$0xff]
      %v185 = vld [vmem:[%s169 + $0x38] sm:$0xff]
      %v186 = vld [vmem:[%s169 + $0x40] sm:$0xff]
      %v187 = vld [vmem:[%s169 + $0x48] sm:$0xff]
      %v188 = vld [vmem:[%s169 + $0x50] sm:$0xff]
      %v189 = vld [vmem:[%s169 + $0x58] sm:$0xff]
      %v190 = vld [vmem:[%s169 + $0x60] sm:$0xff]
      %v191 = vld [vmem:[%s169 + $0x68] sm:$0xff]
      %v192 = vld [vmem:[%s169 + $0x70] sm:$0xff]
      %v193 = vld [vmem:[%s169 + $0x78] sm:$0xff]
      %v194 = vld [vmem:[%s169 + $0x80] sm:$0xff]
      %v195 = vld [vmem:[%s169 + $0x88] sm:$0xff]
      %v196 = vld [vmem:[%s169 + $0x90] sm:$0xff]
      %v197 = vld [vmem:[%s169 + $0x98] sm:$0xff]
      %v198 = vld [vmem:[%s169 + $0xa0] sm:$0xff]
      %v199 = vld [vmem:[%s169 + $0xa8] sm:$0xff]
      %v200 = vld [vmem:[%s169 + $0xb0] sm:$0xff]
      %v201 = vld [vmem:[%s169 + $0xb8] sm:$0xff]
      %v202 = vld [vmem:[%s169 + $0xc0] sm:$0xff]
      %v203 = vld [vmem:[%s169 + $0xc8] sm:$0xff]
      %v204 = vld [vmem:[%s169 + $0xd0] sm:$0xff]
      %v205 = vld [vmem:[%s169 + $0xd8] sm:$0xff]
      %v206 = vld [vmem:[%s169 + $0xe0] sm:$0xff]
      %v207 = vld [vmem:[%s169 + $0xe8] sm:$0xff]
      %v208 = vld [vmem:[%s169 + $0xf0] sm:$0xff]
      %v209 = vld [vmem:[%s169 + $0xf8] sm:$0xff]
      %v210 = vld [vmem:[%s1] sm:$0xf]
      %v211 = vld [vmem:[%s1 + $0x4] sm:$0xf]
      %v212 = vld [vmem:[%s1 + $0x8] sm:$0xf]
      %v213 = vld [vmem:[%s1 + $0xc] sm:$0xf]
      %v214 = vld [vmem:[%s1 + $0x10] sm:$0xf]
      %v215 = vld [vmem:[%s1 + $0x14] sm:$0xf]
      %v216 = vld [vmem:[%s1 + $0x18] sm:$0xf]
      %v217 = vld [vmem:[%s1 + $0x1c] sm:$0xf]
      %v218 = vld [vmem:[%s1 + $0x20] sm:$0xf]
      %v219 = vld [vmem:[%s1 + $0x24] sm:$0xf]
      %v220 = vld [vmem:[%s1 + $0x28] sm:$0xf]
      %v221 = vld [vmem:[%s1 + $0x2c] sm:$0xf]
      %v222 = vld [vmem:[%s1 + $0x30] sm:$0xf]
      %v223 = vld [vmem:[%s1 + $0x34] sm:$0xf]
      %v224 = vld [vmem:[%s1 + $0x38] sm:$0xf]
      %v225 = vld [vmem:[%s1 + $0x3c] sm:$0xf]
      %v226 = vld [vmem:[%s1 + $0x40] sm:$0xf]
      %v227 = vld [vmem:[%s1 + $0x44] sm:$0xf]
      %v228 = vld [vmem:[%s2] sm:$0x1]
      %v230 = vlaneseq
      %v231 = vshrl.u32 %v230, 7
      %v232 = vsub.s32 0, %v231
      %v233 = vrot.slane %v228, %v232
      %v267 = vunpack.c.l.b16 %v178
      %v268 = vunpack.c.h.b16 %v178
      %v269 = vunpack.c.l.b16 %v179
      %v270 = vunpack.c.h.b16 %v179
      %v271 = vunpack.c.l.b16 %v180
      %v272 = vunpack.c.h.b16 %v180
      %v273 = vunpack.c.l.b16 %v181
      %v274 = vunpack.c.h.b16 %v181
      %v275 = vunpack.c.l.b16 %v182
      %v276 = vunpack.c.h.b16 %v182
      %v277 = vunpack.c.l.b16 %v183
      %v278 = vunpack.c.h.b16 %v183
      %v279 = vunpack.c.l.b16 %v184
      %v280 = vunpack.c.h.b16 %v184
      %v281 = vunpack.c.l.b16 %v185
      %v282 = vunpack.c.h.b16 %v185
      %v283 = vunpack.c.l.b16 %v186
      %v284 = vunpack.c.h.b16 %v186
      %v285 = vunpack.c.l.b16 %v187
      %v286 = vunpack.c.h.b16 %v187
      %v287 = vunpack.c.l.b16 %v188
      %v288 = vunpack.c.h.b16 %v188
      %v289 = vunpack.c.l.b16 %v189
      %v290 = vunpack.c.h.b16 %v189
      %v291 = vunpack.c.l.b16 %v190
      %v292 = vunpack.c.h.b16 %v190
      %v293 = vunpack.c.l.b16 %v191
      %v294 = vunpack.c.h.b16 %v191
      %v295 = vunpack.c.l.b16 %v192
      %v296 = vunpack.c.h.b16 %v192
      %v297 = vunpack.c.l.b16 %v193
      %v298 = vunpack.c.h.b16 %v193
      %v299 = vunpack.c.l.b16 %v194
      %v300 = vunpack.c.h.b16 %v194
      %v301 = vunpack.c.l.b16 %v195
      %v302 = vunpack.c.h.b16 %v195
      %v303 = vunpack.c.l.b16 %v196
      %v304 = vunpack.c.h.b16 %v196
      %v305 = vunpack.c.l.b16 %v197
      %v306 = vunpack.c.h.b16 %v197
      %v307 = vunpack.c.l.b16 %v198
      %v308 = vunpack.c.h.b16 %v198
      %v309 = vunpack.c.l.b16 %v199
      %v310 = vunpack.c.h.b16 %v199
      %v311 = vunpack.c.l.b16 %v200
      %v312 = vunpack.c.h.b16 %v200
      %v313 = vunpack.c.l.b16 %v201
      %v314 = vunpack.c.h.b16 %v201
      %v315 = vunpack.c.l.b16 %v202
      %v316 = vunpack.c.h.b16 %v202
      %v317 = vunpack.c.l.b16 %v203
      %v318 = vunpack.c.h.b16 %v203
      %v319 = vunpack.c.l.b16 %v204
      %v320 = vunpack.c.h.b16 %v204
      %v321 = vunpack.c.l.b16 %v205
      %v322 = vunpack.c.h.b16 %v205
      %v323 = vunpack.c.l.b16 %v206
      %v324 = vunpack.c.h.b16 %v206
      %v325 = vunpack.c.l.b16 %v207
      %v326 = vunpack.c.h.b16 %v207
      %v327 = vunpack.c.l.b16 %v208
      %v328 = vunpack.c.h.b16 %v208
      %v329 = vunpack.c.l.b16 %v209
      %v330 = vunpack.c.h.b16 %v209
      %v331 = vpack.c.b16 %v269, %v267
      %v332 = vpack.c.b16 %v270, %v268
      %v333 = vpack.c.b16 %v273, %v271
      %v334 = vpack.c.b16 %v274, %v272
      %v335 = vpack.c.b16 %v277, %v275
      %v336 = vpack.c.b16 %v278, %v276
      %v337 = vpack.c.b16 %v281, %v279
      %v338 = vpack.c.b16 %v282, %v280
      %v339 = vpack.c.b16 %v285, %v283
      %v340 = vpack.c.b16 %v286, %v284
      %v341 = vpack.c.b16 %v289, %v287
      %v342 = vpack.c.b16 %v290, %v288
      %v343 = vpack.c.b16 %v293, %v291
      %v344 = vpack.c.b16 %v294, %v292
      %v345 = vpack.c.b16 %v297, %v295
      %v346 = vpack.c.b16 %v298, %v296
      %v347 = vpack.c.b16 %v301, %v299
      %v348 = vpack.c.b16 %v302, %v300
      %v349 = vpack.c.b16 %v305, %v303
      %v350 = vpack.c.b16 %v306, %v304
      %v351 = vpack.c.b16 %v309, %v307
      %v352 = vpack.c.b16 %v310, %v308
      %v353 = vpack.c.b16 %v313, %v311
      %v354 = vpack.c.b16 %v314, %v312
      %v355 = vpack.c.b16 %v317, %v315
      %v356 = vpack.c.b16 %v318, %v316
      %v357 = vpack.c.b16 %v321, %v319
      %v358 = vpack.c.b16 %v322, %v320
      %v359 = vpack.c.b16 %v325, %v323
      %v360 = vpack.c.b16 %v326, %v324
      %v361 = vpack.c.b16 %v329, %v327
      %v362 = vpack.c.b16 %v330, %v328
      %v397 = vunpack.c.l.b16 %v210
      %v398 = vunpack.c.l.b16 %v211
      %v399 = vunpack.c.l.b16 %v212
      %v400 = vunpack.c.l.b16 %v213
      %v401 = vunpack.c.l.b16 %v214
      %v402 = vunpack.c.l.b16 %v215
      %v403 = vunpack.c.l.b16 %v216
      %v404 = vunpack.c.l.b16 %v217
      %v405 = vunpack.c.l.b16 %v218
      %v406 = vunpack.c.l.b16 %v219
      %v407 = vunpack.c.l.b16 %v220
      %v408 = vunpack.c.l.b16 %v221
      %v409 = vunpack.c.l.b16 %v222
      %v410 = vunpack.c.l.b16 %v223
      %v411 = vunpack.c.l.b16 %v224
      %v412 = vunpack.c.l.b16 %v225
      %v413 = vunpack.c.l.b16 %v226
      %v414 = vunpack.c.l.b16 %v227
      %v415 = vpack.c.b16 %v398, %v397
      %v416 = vpack.c.b16 %v400, %v399
      %v417 = vpack.c.b16 %v402, %v401
      %v418 = vpack.c.b16 %v404, %v403
      %v419 = vpack.c.b16 %v406, %v405
      %v420 = vpack.c.b16 %v408, %v407
      %v421 = vpack.c.b16 %v410, %v409
      %v422 = vpack.c.b16 %v412, %v411
      %v423 = vpack.c.b16 %v414, %v413
      %vm433 = vcmask 130048
      %v435 = vsel %vm433, %v332, 0
      %v438 = vsel %vm433, %v334, 0
      %v441 = vsel %vm433, %v336, 0
      %v444 = vsel %vm433, %v338, 0
      %v447 = vsel %vm433, %v340, 0
      %v450 = vsel %vm433, %v342, 0
      %v453 = vsel %vm433, %v344, 0
      %v456 = vsel %vm433, %v346, 0
      %v459 = vsel %vm433, %v348, 0
      %v462 = vsel %vm433, %v350, 0
      %v465 = vsel %vm433, %v352, 0
      %v468 = vsel %vm433, %v354, 0
      %v471 = vsel %vm433, %v356, 0
      %v474 = vsel %vm433, %v358, 0
      %v477 = vsel %vm433, %v360, 0
      %v480 = vsel %vm433, %v362, 0
      %482 = vmatprep.subr.bf16.mxu0 0
      %483 = vmatpush1.bf16.msra.mxu0 %v422
      %484 = vmatprep.subr.bf16.mxu0 0
      %485 = vmatpush1.bf16.msra.mxu0 %v421
      %486 = vmatprep.subr.bf16.mxu0 0
      %487 = vmatpush1.bf16.msra.mxu0 %v420
      %488 = vmatprep.subr.bf16.mxu0 0
      %489 = vmatpush1.bf16.msra.mxu0 %v419
      %490 = vmatprep.subr.bf16.mxu0 0
      %491 = vmatpush1.bf16.msra.mxu0 %v418
      %492 = vmatprep.subr.bf16.mxu0 0
      %493 = vmatpush1.bf16.msra.mxu0 %v417
      %494 = vmatprep.subr.bf16.mxu0 0
      %495 = vmatpush1.bf16.msra.mxu0 %v416
      %496 = vmatprep.subr.bf16.mxu0 0
      %497 = vmatpush1.bf16.msra.mxu0 %v415
      %498 = vmatprep.subr.bf16.mxu0 0
      %499 = vmatpush2.bf16.msra.mxu0 0
      %500 = vmatprep.subr.bf16.mxu0 0
      %501 = vmatpush2.bf16.msra.mxu0 0
      %502 = vmatprep.subr.bf16.mxu0 0
      %503 = vmatpush2.bf16.msra.mxu0 0
      %504 = vmatprep.subr.bf16.mxu0 0
      %505 = vmatpush2.bf16.msra.mxu0 0
      %506 = vmatprep.subr.bf16.mxu0 0
      %507 = vmatpush2.bf16.msra.mxu0 0
      %508 = vmatprep.subr.bf16.mxu0 0
      %509 = vmatpush2.bf16.msra.mxu0 0
      %510 = vmatprep.subr.bf16.mxu0 0
      %511 = vmatpush2.bf16.msra.mxu0 0
      %512 = vmatprep.subr.bf16.mxu0 0
      %513 = vmatpush2.bf16.msra.mxu0 %v423
      %514 = vmatprep.mubr.bf16.mxu0 %v435
      %515 = vmatmul.mubr.bf16.gmra.mxu0 %v331
      %v516 = vpop.f32.mrf.mxu0
      %v517 = vadd.f32 %v233, %v516
      %v518 = vpop.f32.mrf.mxu0
      %v519 = vpop.f32.mrf.mxu0
      %v520 = vadd.f32 %v233, %v519
      %v521 = vpop.f32.mrf.mxu0
      %522 = vmatprep.mubr.bf16.mxu0 %v438
      %523 = vmatmul.mubr.bf16.gmra.mxu0 %v333
      %v524 = vpop.f32.mrf.mxu0
      %v525 = vadd.f32 %v233, %v524
      %v526 = vpop.f32.mrf.mxu0
      %v527 = vpop.f32.mrf.mxu0
      %v528 = vadd.f32 %v233, %v527
      %v529 = vpop.f32.mrf.mxu0
      %530 = vmatprep.mubr.bf16.mxu0 %v441
      %531 = vmatmul.mubr.bf16.gmra.mxu0 %v335
      %v532 = vpop.f32.mrf.mxu0
      %v533 = vadd.f32 %v233, %v532
      %v534 = vpop.f32.mrf.mxu0
      %v535 = vpop.f32.mrf.mxu0
      %v536 = vadd.f32 %v233, %v535
      %v537 = vpop.f32.mrf.mxu0
      %538 = vmatprep.mubr.bf16.mxu0 %v444
      %539 = vmatmul.mubr.bf16.gmra.mxu0 %v337
      %v540 = vpop.f32.mrf.mxu0
      %v541 = vadd.f32 %v233, %v540
      %v542 = vpop.f32.mrf.mxu0
      %v543 = vpop.f32.mrf.mxu0
      %v544 = vadd.f32 %v233, %v543
      %v545 = vpop.f32.mrf.mxu0
      %546 = vmatprep.mubr.bf16.mxu0 %v447
      %547 = vmatmul.mubr.bf16.gmra.mxu0 %v339
      %v548 = vpop.f32.mrf.mxu0
      %v549 = vadd.f32 %v233, %v548
      %v550 = vpop.f32.mrf.mxu0
      %v551 = vpop.f32.mrf.mxu0
      %v552 = vadd.f32 %v233, %v551
      %v553 = vpop.f32.mrf.mxu0
      %554 = vmatprep.mubr.bf16.mxu0 %v450
      %555 = vmatmul.mubr.bf16.gmra.mxu0 %v341
      %v556 = vpop.f32.mrf.mxu0
      %v557 = vadd.f32 %v233, %v556
      %v558 = vpop.f32.mrf.mxu0
      %v559 = vpop.f32.mrf.mxu0
      %v560 = vadd.f32 %v233, %v559
      %v561 = vpop.f32.mrf.mxu0
      %562 = vmatprep.mubr.bf16.mxu0 %v453
      %563 = vmatmul.mubr.bf16.gmra.mxu0 %v343
      %v564 = vpop.f32.mrf.mxu0
      %v565 = vadd.f32 %v233, %v564
      %v566 = vpop.f32.mrf.mxu0
      %v567 = vpop.f32.mrf.mxu0
      %v568 = vadd.f32 %v233, %v567
      %v569 = vpop.f32.mrf.mxu0
      %570 = vmatprep.mubr.bf16.mxu0 %v456
      %571 = vmatmul.mubr.bf16.gmra.mxu0 %v345
      %v572 = vpop.f32.mrf.mxu0
      %v573 = vadd.f32 %v233, %v572
      %v574 = vpop.f32.mrf.mxu0
      %v575 = vpop.f32.mrf.mxu0
      %v576 = vadd.f32 %v233, %v575
      %v577 = vpop.f32.mrf.mxu0
      %578 = vmatprep.mubr.bf16.mxu0 %v459
      %579 = vmatmul.mubr.bf16.gmra.mxu0 %v347
      %v580 = vpop.f32.mrf.mxu0
      %v581 = vadd.f32 %v233, %v580
      %v582 = vpop.f32.mrf.mxu0
      %v583 = vpop.f32.mrf.mxu0
      %v584 = vadd.f32 %v233, %v583
      %v585 = vpop.f32.mrf.mxu0
      %586 = vmatprep.mubr.bf16.mxu0 %v462
      %587 = vmatmul.mubr.bf16.gmra.mxu0 %v349
      %v588 = vpop.f32.mrf.mxu0
      %v589 = vadd.f32 %v233, %v588
      %v590 = vpop.f32.mrf.mxu0
      %v591 = vpop.f32.mrf.mxu0
      %v592 = vadd.f32 %v233, %v591
      %v593 = vpop.f32.mrf.mxu0
      %594 = vmatprep.mubr.bf16.mxu0 %v465
      %595 = vmatmul.mubr.bf16.gmra.mxu0 %v351
      %v596 = vpop.f32.mrf.mxu0
      %v597 = vadd.f32 %v233, %v596
      %v598 = vpop.f32.mrf.mxu0
      %v599 = vpop.f32.mrf.mxu0
      %v600 = vadd.f32 %v233, %v599
      %v601 = vpop.f32.mrf.mxu0
      %602 = vmatprep.mubr.bf16.mxu0 %v468
      %603 = vmatmul.mubr.bf16.gmra.mxu0 %v353
      %v604 = vpop.f32.mrf.mxu0
      %v605 = vadd.f32 %v233, %v604
      %v606 = vpop.f32.mrf.mxu0
      %v607 = vpop.f32.mrf.mxu0
      %v608 = vadd.f32 %v233, %v607
      %v609 = vpop.f32.mrf.mxu0
      %610 = vmatprep.mubr.bf16.mxu0 %v471
      %611 = vmatmul.mubr.bf16.gmra.mxu0 %v355
      %v612 = vpop.f32.mrf.mxu0
      %v613 = vadd.f32 %v233, %v612
      %v614 = vpop.f32.mrf.mxu0
      %v615 = vpop.f32.mrf.mxu0
      %v616 = vadd.f32 %v233, %v615
      %v617 = vpop.f32.mrf.mxu0
      %618 = vmatprep.mubr.bf16.mxu0 %v474
      %619 = vmatmul.mubr.bf16.gmra.mxu0 %v357
      %v620 = vpop.f32.mrf.mxu0
      %v621 = vadd.f32 %v233, %v620
      %v622 = vpop.f32.mrf.mxu0
      %v623 = vpop.f32.mrf.mxu0
      %v624 = vadd.f32 %v233, %v623
      %v625 = vpop.f32.mrf.mxu0
      %626 = vmatprep.mubr.bf16.mxu0 %v477
      %627 = vmatmul.mubr.bf16.gmra.mxu0 %v359
      %v628 = vpop.f32.mrf.mxu0
      %v629 = vadd.f32 %v233, %v628
      %v630 = vpop.f32.mrf.mxu0
      %v631 = vpop.f32.mrf.mxu0
      %v632 = vadd.f32 %v233, %v631
      %v633 = vpop.f32.mrf.mxu0
      %634 = vmatprep.mubr.bf16.mxu0 %v480
      %635 = vmatmul.mubr.bf16.gmra.mxu0 %v361
      %v636 = vpop.f32.mrf.mxu0
      %v637 = vadd.f32 %v233, %v636
      %v638 = vpop.f32.mrf.mxu0
      %v639 = vpop.f32.mrf.mxu0
      %v640 = vadd.f32 %v233, %v639
      %v641 = vpop.f32.mrf.mxu0
      %642 = vdwg.mxu0
      %v643 = vmax.f32 %v517, 0.0
      %v644 = vmax.f32 %v520, 0.0
      %v645 = vmax.f32 %v525, 0.0
      %v646 = vmax.f32 %v528, 0.0
      %v647 = vmax.f32 %v533, 0.0
      %v648 = vmax.f32 %v536, 0.0
      %v649 = vmax.f32 %v541, 0.0
      %v650 = vmax.f32 %v544, 0.0
      %v651 = vmax.f32 %v549, 0.0
      %v652 = vmax.f32 %v552, 0.0
      %v653 = vmax.f32 %v557, 0.0
      %v654 = vmax.f32 %v560, 0.0
      %v655 = vmax.f32 %v565, 0.0
      %v656 = vmax.f32 %v568, 0.0
      %v657 = vmax.f32 %v573, 0.0
      %v658 = vmax.f32 %v576, 0.0
      %v659 = vmax.f32 %v581, 0.0
      %v660 = vmax.f32 %v584, 0.0
      %v661 = vmax.f32 %v589, 0.0
      %v662 = vmax.f32 %v592, 0.0
      %v663 = vmax.f32 %v597, 0.0
      %v664 = vmax.f32 %v600, 0.0
      %v665 = vmax.f32 %v605, 0.0
      %v666 = vmax.f32 %v608, 0.0
      %v667 = vmax.f32 %v613, 0.0
      %v668 = vmax.f32 %v616, 0.0
      %v669 = vmax.f32 %v621, 0.0
      %v670 = vmax.f32 %v624, 0.0
      %v671 = vmax.f32 %v629, 0.0
      %v672 = vmax.f32 %v632, 0.0
      %v673 = vmax.f32 %v637, 0.0
      %v674 = vmax.f32 %v640, 0.0
      %v675 = vpack.c.bf16 %v644, %v643
      %v676 = vpack.c.bf16 %v646, %v645
      %v677 = vpack.c.bf16 %v648, %v647
      %v678 = vpack.c.bf16 %v650, %v649
      %v679 = vpack.c.bf16 %v652, %v651
      %v680 = vpack.c.bf16 %v654, %v653
      %v681 = vpack.c.bf16 %v656, %v655
      %v682 = vpack.c.bf16 %v658, %v657
      %v683 = vpack.c.bf16 %v660, %v659
      %v684 = vpack.c.bf16 %v662, %v661
      %v685 = vpack.c.bf16 %v664, %v663
      %v686 = vpack.c.bf16 %v666, %v665
      %v687 = vpack.c.bf16 %v668, %v667
      %v688 = vpack.c.bf16 %v670, %v669
      %v689 = vpack.c.bf16 %v672, %v671
      %v690 = vpack.c.bf16 %v674, %v673
      %v707 = vunpack.c.l.b16 %v675
      %v708 = vunpack.c.h.b16 %v675
      %v709 = vunpack.c.l.b16 %v676
      %v710 = vunpack.c.h.b16 %v676
      %v711 = vunpack.c.l.b16 %v677
      %v712 = vunpack.c.h.b16 %v677
      %v713 = vunpack.c.l.b16 %v678
      %v714 = vunpack.c.h.b16 %v678
      %v715 = vunpack.c.l.b16 %v679
      %v716 = vunpack.c.h.b16 %v679
      %v717 = vunpack.c.l.b16 %v680
      %v718 = vunpack.c.h.b16 %v680
      %v719 = vunpack.c.l.b16 %v681
      %v720 = vunpack.c.h.b16 %v681
      %v721 = vunpack.c.l.b16 %v682
      %v722 = vunpack.c.h.b16 %v682
      %v723 = vunpack.c.l.b16 %v683
      %v724 = vunpack.c.h.b16 %v683
      %v725 = vunpack.c.l.b16 %v684
      %v726 = vunpack.c.h.b16 %v684
      %v727 = vunpack.c.l.b16 %v685
      %v728 = vunpack.c.h.b16 %v685
      %v729 = vunpack.c.l.b16 %v686
      %v730 = vunpack.c.h.b16 %v686
      %v731 = vunpack.c.l.b16 %v687
      %v732 = vunpack.c.h.b16 %v687
      %v733 = vunpack.c.l.b16 %v688
      %v734 = vunpack.c.h.b16 %v688
      %v735 = vunpack.c.l.b16 %v689
      %v736 = vunpack.c.h.b16 %v689
      %v737 = vunpack.c.l.b16 %v690
      %v738 = vunpack.c.h.b16 %v690
      %v739 = vpack.c.b16 %v707, %v707
      %v740 = vpack.c.b16 %v708, %v708
      %v741 = vpack.c.b16 %v709, %v709
      %v742 = vpack.c.b16 %v710, %v710
      %v743 = vpack.c.b16 %v711, %v711
      %v744 = vpack.c.b16 %v712, %v712
      %v745 = vpack.c.b16 %v713, %v713
      %v746 = vpack.c.b16 %v714, %v714
      %v747 = vpack.c.b16 %v715, %v715
      %v748 = vpack.c.b16 %v716, %v716
      %v749 = vpack.c.b16 %v717, %v717
      %v750 = vpack.c.b16 %v718, %v718
      %v751 = vpack.c.b16 %v719, %v719
      %v752 = vpack.c.b16 %v720, %v720
      %v753 = vpack.c.b16 %v721, %v721
      %v754 = vpack.c.b16 %v722, %v722
      %v755 = vpack.c.b16 %v723, %v723
      %v756 = vpack.c.b16 %v724, %v724
      %v757 = vpack.c.b16 %v725, %v725
      %v758 = vpack.c.b16 %v726, %v726
      %v759 = vpack.c.b16 %v727, %v727
      %v760 = vpack.c.b16 %v728, %v728
      %v761 = vpack.c.b16 %v729, %v729
      %v762 = vpack.c.b16 %v730, %v730
      %v763 = vpack.c.b16 %v731, %v731
      %v764 = vpack.c.b16 %v732, %v732
      %v765 = vpack.c.b16 %v733, %v733
      %v766 = vpack.c.b16 %v734, %v734
      %v767 = vpack.c.b16 %v735, %v735
      %v768 = vpack.c.b16 %v736, %v736
      %v769 = vpack.c.b16 %v737, %v737
      %v770 = vpack.c.b16 %v738, %v738
      %vm803 = vcmask 257024
      %804 = vst.msk [vmem:[%s175] sm:$0xf] %vm803, %v739
      %805 = vst.msk [vmem:[%s175 + $0x4] sm:$0xf] %vm803, %v740
      %806 = vst.msk [vmem:[%s175 + $0x8] sm:$0xf] %vm803, %v741
      %807 = vst.msk [vmem:[%s175 + $0xc] sm:$0xf] %vm803, %v742
      %808 = vst.msk [vmem:[%s175 + $0x10] sm:$0xf] %vm803, %v743
      %809 = vst.msk [vmem:[%s175 + $0x14] sm:$0xf] %vm803, %v744
      %810 = vst.msk [vmem:[%s175 + $0x18] sm:$0xf] %vm803, %v745
      %811 = vst.msk [vmem:[%s175 + $0x1c] sm:$0xf] %vm803, %v746
      %812 = vst.msk [vmem:[%s175 + $0x20] sm:$0xf] %vm803, %v747
      %813 = vst.msk [vmem:[%s175 + $0x24] sm:$0xf] %vm803, %v748
      %814 = vst.msk [vmem:[%s175 + $0x28] sm:$0xf] %vm803, %v749
      %815 = vst.msk [vmem:[%s175 + $0x2c] sm:$0xf] %vm803, %v750
      %816 = vst.msk [vmem:[%s175 + $0x30] sm:$0xf] %vm803, %v751
      %817 = vst.msk [vmem:[%s175 + $0x34] sm:$0xf] %vm803, %v752
      %818 = vst.msk [vmem:[%s175 + $0x38] sm:$0xf] %vm803, %v753
      %819 = vst.msk [vmem:[%s175 + $0x3c] sm:$0xf] %vm803, %v754
      %820 = vst.msk [vmem:[%s175 + $0x40] sm:$0xf] %vm803, %v755
      %821 = vst.msk [vmem:[%s175 + $0x44] sm:$0xf] %vm803, %v756
      %822 = vst.msk [vmem:[%s175 + $0x48] sm:$0xf] %vm803, %v757
      %823 = vst.msk [vmem:[%s175 + $0x4c] sm:$0xf] %vm803, %v758
      %824 = vst.msk [vmem:[%s175 + $0x50] sm:$0xf] %vm803, %v759
      %825 = vst.msk [vmem:[%s175 + $0x54] sm:$0xf] %vm803, %v760
      %826 = vst.msk [vmem:[%s175 + $0x58] sm:$0xf] %vm803, %v761
      %827 = vst.msk [vmem:[%s175 + $0x5c] sm:$0xf] %vm803, %v762
      %828 = vst.msk [vmem:[%s175 + $0x60] sm:$0xf] %vm803, %v763
      %829 = vst.msk [vmem:[%s175 + $0x64] sm:$0xf] %vm803, %v764
      %830 = vst.msk [vmem:[%s175 + $0x68] sm:$0xf] %vm803, %v765
      %831 = vst.msk [vmem:[%s175 + $0x6c] sm:$0xf] %vm803, %v766
      %832 = vst.msk [vmem:[%s175 + $0x70] sm:$0xf] %vm803, %v767
      %833 = vst.msk [vmem:[%s175 + $0x74] sm:$0xf] %vm803, %v768
      %834 = vst.msk [vmem:[%s175 + $0x78] sm:$0xf] %vm803, %v769
      %835 = vst.msk [vmem:[%s175 + $0x7c] sm:$0xf] %vm803, %v770
      %s836 = smul.u32 32, %s14
      %p837 = scmp.lt.s32.totalorder %s836, 63
      %s838 = scalar_select %p837, %s836, 63
      %s839 = smul.addr %s838, 4
      %s840 = scalar_lea.vmem %s3, %s839
      // Predicated region
      $region33: #{actor_critic_forward.5} parent=31 // pred_check
        %p841 = pneg %p100
      $region34: #{actor_critic_forward.5} parent=31 // pred_check_branch
        %843 = sbr.rel (%p841) target = $region36
      $region35: #{actor_critic_forward.5} parent=31 // pred_region
        %s844 = smul.u32 32, %s14
      $region36: #{actor_critic_forward.5} parent=31 // pred_fallthru
        _
    $region32: #{actor_critic_forward.5} parent=5 // pred_fallthru
      _
    %p845 = scmp.le.s32.totalorder 2, %s9
    // Predicated region
    $region37: #{actor_critic_forward.5} parent=5 // pred_check
      %p846 = pneg %p845
    $region38: #{actor_critic_forward.5} parent=5 // pred_check_branch
      %848 = sbr.rel (%p846) target = $region40
    $region39: #{actor_critic_forward.5} parent=5 // pred_region
      %s849 = ssub.s32 %s9, 2
      // Predicated region
      $region41: #{actor_critic_forward.5} parent=39 // pred_check
        %p850 = pneg %p106
      $region42: #{actor_critic_forward.5} parent=39 // pred_check_branch
        %852 = sbr.rel (%p850) target = $region44
      $region43: #{actor_critic_forward.5} parent=39 // pred_region
        %s853 = smul.u32 32, %s15
        %p854 = scmp.lt.s32.totalorder %s853, 63
        %s855 = scalar_select %p854, %s853, 63
        %s856 = smul.addr %s855, 4
        %s857 = scalar_lea.vmem %s3, %s856
      $region44: #{actor_critic_forward.5} parent=39 // pred_fallthru
        _
    $region40: #{actor_critic_forward.5} parent=5 // pred_fallthru
      _
  $region6: #{actor_critic_forward.5} parent=0 // loop_footer
    %s13 = sadd.s32 1, %s9
  $region7: #{actor_critic_forward.5} parent=0 // loop_footer_branch
    %8 = sbr.rel target = $region3
  $region8: #{actor_critic_forward.5} parent=0 // loop_exit
    _

// kernel: actor_critic_forward.6
$region0: #{actor_critic_forward.6}
  #allocation0 [shape = 'u32[]', space=smem, size = 0x4, offset = 0x4, fixed_abs, tag = 'smem constant byte address 0x4 - core index']
  #allocation1 [shape = 'u32[144,128]{1,0:T(1,128)}', space=vmem, size = 0x12000, scoped, tag = 'internal scratch']
  %s0 = inlined_call_operand.vmem [shape: bf16[98,288], index: 0, kind: input, shape index: {}]
  %s1 = inlined_call_operand.vmem [shape: bf16[288,64], index: 1, kind: input, shape index: {}]
  %s2 = inlined_call_operand.vmem [shape: f32[1,64], index: 2, kind: input, shape index: {}]
  %s3 = inlined_call_operand.vmem [shape: bf16[98,64], index: 3, kind: output, shape index: {}]
  %s4 = sld [smem:[#allocation0]]
  $region89: #{actor_critic_forward.6} parent=0
    _
  %s6 = ssub.s32 1, %s4
  %s7 = scalar_select 0, %s6, %s4
  $region1: #{actor_critic_forward.6} parent=0
    #allocation2 [shape = 'u8[32768]{0}', space=vmem, size = 0x8000, scoped, tag = 'output window, operand 0']
    loop: start=0, step=1, limit=4
    $region2: #{actor_critic_forward.6} parent=1 // loop_pre_header
      _
    $region3: #{actor_critic_forward.6} parent=1 // loop_header
      %s9 = sphi 0, %s13
      %p10 = scmp.ge.s32.totalorder %s9, 4
      %s19 = sphi 0, %s21
      %s22 = sphi 0, %s19
      %s23 = sphi 0, %s22
      %s39 = sphi 0, %s23
      %s43 = sphi 0, %s43
      %s45 = sphi 0, %s43
      %s46 = sphi 0, %s45
      %s60 = sphi 0, %s46
      %s64 = sphi 0, %s64
      %s66 = sphi 0, %s64
      %s67 = sphi 0, %s66
      %s81 = sphi 0, %s67
      %s87 = sphi 0, %s89
      %s90 = sphi 0, %s87
      %s91 = sphi 0, %s90
      %s107 = sphi 0, %s91
    $region4: #{actor_critic_forward.6} parent=1 // loop_header_branch
      %12 = sbr.rel (%p10) target = $region8
    $region5: #{actor_critic_forward.6} parent=1 // loop_body
      %s14 = ssub.s32 %s9, 1
      %s15 = ssub.s32 %s9, 2
      %s16 = sadd.s32 %s9, 1
      %s17 = ssub.s32 %s9, %s16
      %p18 = scmp.eq.s32.totalorder %s17, 0
      %s20 = sadd.s32 %s19, 1
      %s21 = scalar_select %p18, %s19, %s20
      %p24 = pneg %p18
      %p25 = scmp.eq.s32.totalorder %s9, 1
      %p26 = por %p24, %p25
      %p27 = scmp.ne.s32.totalorder %s19, %s22
      %p28 = scmp.eq.s32.totalorder %s9, 0
      %p29 = por %p27, %p28
      %p30 = scmp.ne.s32.totalorder %s19, %s22
      %p31 = scmp.eq.s32.totalorder %s14, 1
      %p32 = por %p30, %p31
      %p33 = scmp.ne.s32.totalorder %s22, %s23
      %p34 = scmp.eq.s32.totalorder %s14, 0
      %p35 = por %p33, %p34
      %p36 = scmp.ne.s32.totalorder %s22, %s23
      %p37 = scmp.eq.s32.totalorder %s15, 1
      %p38 = por %p36, %p37
      %p40 = scmp.ne.s32.totalorder %s23, %s39
      %p41 = scmp.eq.s32.totalorder %s15, 0
      %p42 = por %p40, %p41
      %s44 = sadd.s32 %s43, 1
      %p47 = scmp.eq.s32.totalorder %s9, 1
      %p48 = scmp.ne.s32.totalorder %s43, %s45
      %p49 = scmp.eq.s32.totalorder %s9, 0
      %p50 = por %p48, %p49
      %p51 = scmp.ne.s32.totalorder %s43, %s45
      %p52 = scmp.eq.s32.totalorder %s14, 1
      %p53 = por %p51, %p52
      %p54 = scmp.ne.s32.totalorder %s45, %s46
      %p55 = scmp.eq.s32.totalorder %s14, 0
      %p56 = por %p54, %p55
      %p57 = scmp.ne.s32.totalorder %s45, %s46
      %p58 = scmp.eq.s32.totalorder %s15, 1
      %p59 = por %p57, %p58
      %p61 = scmp.ne.s32.totalorder %s46, %s60
      %p62 = scmp.eq.s32.totalorder %s15, 0
      %p63 = por %p61, %p62
      %s65 = sadd.s32 %s64, 1
      %p68 = scmp.eq.s32.totalorder %s9, 1
      %p69 = scmp.ne.s32.totalorder %s64, %s66
      %p70 = scmp.eq.s32.totalorder %s9, 0
      %p71 = por %p69, %p70
      %p72 = scmp.ne.s32.totalorder %s64, %s66
      %p73 = scmp.eq.s32.totalorder %s14, 1
      %p74 = por %p72, %p73
      %p75 = scmp.ne.s32.totalorder %s66, %s67
      %p76 = scmp.eq.s32.totalorder %s14, 0
      %p77 = por %p75, %p76
      %p78 = scmp.ne.s32.totalorder %s66, %s67
      %p79 = scmp.eq.s32.totalorder %s15, 1
      %p80 = por %p78, %p79
      %p82 = scmp.ne.s32.totalorder %s67, %s81
      %p83 = scmp.eq.s32.totalorder %s15, 0
      %p84 = por %p82, %p83
      %s85 = ssub.s32 %s9, %s16
      %p86 = scmp.eq.s32.totalorder %s85, 0
      %s88 = sadd.s32 %s87, 1
      %s89 = scalar_select %p86, %s87, %s88
      %p92 = pneg %p86
      %p93 = scmp.eq.s32.totalorder %s9, 1
      %p94 = por %p92, %p93
      %p95 = scmp.ne.s32.totalorder %s87, %s90
      %p96 = scmp.eq.s32.totalorder %s9, 0
      %p97 = por %p95, %p96
      %p98 = scmp.ne.s32.totalorder %s87, %s90
      %p99 = scmp.eq.s32.totalorder %s14, 1
      %p100 = por %p98, %p99
      %p101 = scmp.ne.s32.totalorder %s90, %s91
      %p102 = scmp.eq.s32.totalorder %s14, 0
      %p103 = por %p101, %p102
      %p104 = scmp.ne.s32.totalorder %s90, %s91
      %p105 = scmp.eq.s32.totalorder %s15, 1
      %p106 = por %p104, %p105
      %p108 = scmp.ne.s32.totalorder %s91, %s107
      %p109 = scmp.eq.s32.totalorder %s15, 0
      %p110 = por %p108, %p109
      %p111 = scmp.le.s32.totalorder 1, %s9
      %p112 = scmp.lt.s32.totalorder %s9, 3
      %p113 = pnand %p111, %p112
      %p114 = pneg %p113
      // Predicated region
      $region9: #{actor_critic_forward.6} parent=5 // pred_check
        _
      $region10: #{actor_critic_forward.6} parent=5 // pred_check_branch
        %116 = sbr.rel (%p113) target = $region12
      $region11: #{actor_critic_forward.6} parent=5 // pred_region
        %s117 = ssub.s32 %s9, 1
        // Predicated region
        $region13: #{actor_critic_forward.6} parent=11 // pred_check
          %p118 = pneg %p56
        $region14: #{actor_critic_forward.6} parent=11 // pred_check_branch
          %120 = sbr.rel (%p118) target = $region16
        $region15: #{actor_critic_forward.6} parent=11 // pred_region
          _
        $region16: #{actor_critic_forward.6} parent=11 // pred_fallthru
          _
        // Predicated region
        $region17: #{actor_critic_forward.6} parent=11 // pred_check
          %p121 = pneg %p77
        $region18: #{actor_critic_forward.6} parent=11 // pred_check_branch
          %123 = sbr.rel (%p121) target = $region20
        $region19: #{actor_critic_forward.6} parent=11 // pred_region
          _
        $region20: #{actor_critic_forward.6} parent=11 // pred_fallthru
          _
      $region12: #{actor_critic_forward.6} parent=5 // pred_fallthru
        _
      %p124 = scmp.lt.s32.totalorder %s9, 2
      // Predicated region
      $region21: #{actor_critic_forward.6} parent=5 // pred_check
        %p125 = pneg %p124
      $region22: #{actor_critic_forward.6} parent=5 // pred_check_branch
        %127 = sbr.rel (%p125) target = $region24
      $region23: #{actor_critic_forward.6} parent=5 // pred_region
        // Predicated region
        $region25: #{actor_critic_forward.6} parent=23 // pred_check
          %p128 = pneg %p29
        $region26: #{actor_critic_forward.6} parent=23 // pred_check_branch
          %130 = sbr.rel (%p128) target = $region28
        $region27: #{actor_critic_forward.6} parent=23 // pred_region
          %s131 = smul.u32 8, %s9
          %s132 = ssub.s32 13, %s131
          %p133 = scmp.lt.s32.totalorder %s132, 8
          %s134 = scalar_select %p133, %s132, 8
          %s135 = smul.u32 64, %s134
          %s136 = smul.u32 %s135, 3
          %p137 = scmp.lt.s32.totalorder %s131, 12
          %s138 = scalar_select %p137, %s131, 12
          %s139 = smul.addr %s138, 3
          %s140 = smul.addr %s139, 4
          %s141 = scalar_lea.vmem %s0, %s140
          %s142 = smul.u32 8, %s9
          %s143 = ssub.s32 13, %s142
          %p144 = scmp.lt.s32.totalorder %s143, 8
          %s145 = scalar_select %p144, %s143, 8
          %s146 = smul.u32 64, %s145
          %s147 = smul.u32 %s146, 3
        $region28: #{actor_critic_forward.6} parent=23 // pred_fallthru
          _
      $region24: #{actor_critic_forward.6} parent=5 // pred_fallthru
        _
      %p148 = scmp.le.s32.totalorder 1, %s9
      %p149 = scmp.lt.s32.totalorder %s9, 3
      %p150 = pnand %p148, %p149
      %p151 = pneg %p150
      // Predicated region
      $region29: #{actor_critic_forward.6} parent=5 // pred_check
        _
      $region30: #{actor_critic_forward.6} parent=5 // pred_check_branch
        %153 = sbr.rel (%p150) target = $region32
      $region31: #{actor_critic_forward.6} parent=5 // pred_region
        %s154 = ssub.s32 %s9, 1
        %s155 = smul.u32 8, %s14
        %s156 = ssub.s32 13, %s155
        %p157 = scmp.lt.s32.totalorder %s156, 8
        %s158 = scalar_select %p157, %s156, 8
        %s159 = smul.u32 64, %s158
        %s160 = smul.u32 %s159, 3
        %p161 = scmp.lt.s32.totalorder %s155, 12
        %s162 = scalar_select %p161, %s155, 12
        %s163 = smul.addr %s162, 3
        %s164 = smul.addr %s163, 4
        %s165 = scalar_lea.vmem %s0, %s164
        %p166 = pneg %p35
        %p167 = pneg %p32
        %p168 = pneg %p56
        %p169 = pneg %p53
        %p170 = pneg %p77
        %p171 = pneg %p74
        %p172 = pneg %p103
        %p173 = pneg %p100
        %s174 = sand.u32 %s90, 1
        %s175 = sand.u32 %s90, 1
        %s176 = smul.addr %s175, 32
        %s177 = scalar_lea.vmem [#allocation2], %s176
        %s178 = smul.u32 8, %s14
        %s179 = ssub.s32 13, %s178
        %p180 = scmp.lt.s32.totalorder %s179, 8
        %s181 = scalar_select %p180, %s179, 8
        %s182 = smul.u32 64, %s181
        %s183 = smul.u32 %s182, 3
        %p184 = scmp.lt.s32.totalorder %s178, 12
        %s185 = scalar_select %p184, %s178, 12
        %s186 = smul.addr %s185, 3
        %s187 = smul.addr %s186, 4
        %s188 = scalar_lea.vmem %s0, %s187
        %s189 = smul.u32 8, %s14
        %s190 = ssub.s32 13, %s189
        %p191 = scmp.lt.s32.totalorder %s190, 8
        %s192 = scalar_select %p191, %s190, 8
        %s193 = smul.u32 64, %s192
        %s194 = smul.u32 %s193, 3
        %s195 = smul.u32 8, %s14
        %s196 = ssub.s32 13, %s195
        %p197 = scmp.lt.s32.totalorder %s196, 8
        %s198 = scalar_select %p197, %s196, 8
        %s199 = smul.u32 64, %s198
        %v201 = vld [vmem:[%s188] sm:$0xff]
        %v202 = vld [vmem:[%s188 + $0x8] sm:$0xf]
        %v203 = vld [vmem:[%s188 + $0xc] sm:$0xff]
        %v204 = vld [vmem:[%s188 + $0x14] sm:$0xf]
        %v205 = vld [vmem:[%s188 + $0x18] sm:$0xff]
        %v206 = vld [vmem:[%s188 + $0x20] sm:$0xf]
        %v207 = vld [vmem:[%s188 + $0x24] sm:$0xff]
        %v208 = vld [vmem:[%s188 + $0x2c] sm:$0xf]
        %v209 = vld [vmem:[%s188 + $0x30] sm:$0xff]
        %v210 = vld [vmem:[%s188 + $0x38] sm:$0xf]
        %v211 = vld [vmem:[%s188 + $0x3c] sm:$0xff]
        %v212 = vld [vmem:[%s188 + $0x44] sm:$0xf]
        %v213 = vld [vmem:[%s188 + $0x48] sm:$0xff]
        %v214 = vld [vmem:[%s188 + $0x50] sm:$0xf]
        %v215 = vld [vmem:[%s188 + $0x54] sm:$0xff]
        %v216 = vld [vmem:[%s188 + $0x5c] sm:$0xf]
        %v217 = vld [vmem:[%s1] sm:$0xf]
        %v218 = vld [vmem:[%s1 + $0x4] sm:$0xf]
        %v219 = vld [vmem:[%s1 + $0x8] sm:$0xf]
        %v220 = vld [vmem:[%s1 + $0xc] sm:$0xf]
        %v221 = vld [vmem:[%s1 + $0x10] sm:$0xf]
        %v222 = vld [vmem:[%s1 + $0x14] sm:$0xf]
        %v223 = vld [vmem:[%s1 + $0x18] sm:$0xf]
        %v224 = vld [vmem:[%s1 + $0x1c] sm:$0xf]
        %v225 = vld [vmem:[%s1 + $0x20] sm:$0xf]
        %v226 = vld [vmem:[%s1 + $0x24] sm:$0xf]
        %v227 = vld [vmem:[%s1 + $0x28] sm:$0xf]
        %v228 = vld [vmem:[%s1 + $0x2c] sm:$0xf]
        %v229 = vld [vmem:[%s1 + $0x30] sm:$0xf]
        %v230 = vld [vmem:[%s1 + $0x34] sm:$0xf]
        %v231 = vld [vmem:[%s1 + $0x38] sm:$0xf]
        %v232 = vld [vmem:[%s1 + $0x3c] sm:$0xf]
        %v233 = vld [vmem:[%s1 + $0x40] sm:$0xf]
        %v234 = vld [vmem:[%s1 + $0x44] sm:$0xf]
        %v235 = vld [vmem:[%s1 + $0x48] sm:$0xf]
        %v236 = vld [vmem:[%s1 + $0x4c] sm:$0xf]
        %v237 = vld [vmem:[%s1 + $0x50] sm:$0xf]
        %v238 = vld [vmem:[%s1 + $0x54] sm:$0xf]
        %v239 = vld [vmem:[%s1 + $0x58] sm:$0xf]
        %v240 = vld [vmem:[%s1 + $0x5c] sm:$0xf]
        %v241 = vld [vmem:[%s1 + $0x60] sm:$0xf]
        %v242 = vld [vmem:[%s1 + $0x64] sm:$0xf]
        %v243 = vld [vmem:[%s1 + $0x68] sm:$0xf]
        %v244 = vld [vmem:[%s1 + $0x6c] sm:$0xf]
        %v245 = vld [vmem:[%s1 + $0x70] sm:$0xf]
        %v246 = vld [vmem:[%s1 + $0x74] sm:$0xf]
        %v247 = vld [vmem:[%s1 + $0x78] sm:$0xf]
        %v248 = vld [vmem:[%s1 + $0x7c] sm:$0xf]
        %v249 = vld [vmem:[%s1 + $0x80] sm:$0xf]
        %v250 = vld [vmem:[%s1 + $0x84] sm:$0xf]
        %v251 = vld [vmem:[%s1 + $0x88] sm:$0xf]
        %v252 = vld [vmem:[%s1 + $0x8c] sm:$0xf]
        %v253 = vld [vmem:[%s2] sm:$0x1]
        %v255 = vlaneseq
        %v256 = vshrl.u32 %v255, 7
        %v257 = vsub.s32 0, %v256
        %v258 = vrot.slane %v253, %v257
        %v276 = vunpack.c.l.b16 %v201
        %v277 = vunpack.c.h.b16 %v201
        %v278 = vunpack.c.l.b16 %v202
        %v279 = vunpack.c.l.b16 %v203
        %v280 = vunpack.c.h.b16 %v203
        %v281 = vunpack.c.l.b16 %v204
        %v282 = vunpack.c.l.b16 %v205
        %v283 = vunpack.c.h.b16 %v205
        %v284 = vunpack.c.l.b16 %v206
        %v285 = vunpack.c.l.b16 %v207
        %v286 = vunpack.c.h.b16 %v207
        %v287 = vunpack.c.l.b16 %v208
        %v288 = vunpack.c.l.b16 %v209
        %v289 = vunpack.c.h.b16 %v209
        %v290 = vunpack.c.l.b16 %v210
        %v291 = vunpack.c.l.b16 %v211
        %v292 = vunpack.c.h.b16 %v211
        %v293 = vunpack.c.l.b16 %v212
        %v294 = vunpack.c.l.b16 %v213
        %v295 = vunpack.c.h.b16 %v213
        %v296 = vunpack.c.l.b16 %v214
        %v297 = vunpack.c.l.b16 %v215
        %v298 = vunpack.c.h.b16 %v215
        %v299 = vunpack.c.l.b16 %v216
        %v300 = vpack.c.b16 %v279, %v276
        %v301 = vpack.c.b16 %v280, %v277
        %v302 = vpack.c.b16 %v281, %v278
        %v303 = vpack.c.b16 %v285, %v282
        %v304 = vpack.c.b16 %v286, %v283
        %v305 = vpack.c.b16 %v287, %v284
        %v306 = vpack.c.b16 %v291, %v288
        %v307 = vpack.c.b16 %v292, %v289
        %v308 = vpack.c.b16 %v293, %v290
        %v309 = vpack.c.b16 %v297, %v294
        %v310 = vpack.c.b16 %v298, %v295
        %v311 = vpack.c.b16 %v299, %v296
        %v356 = vunpack.c.l.b16 %v217
        %v357 = vunpack.c.l.b16 %v218
        %v358 = vunpack.c.l.b16 %v219
        %v359 = vunpack.c.l.b16 %v220
        %v360 = vunpack.c.l.b16 %v221
        %v361 = vunpack.c.l.b16 %v222
        %v362 = vunpack.c.l.b16 %v223
        %v363 = vunpack.c.l.b16 %v224
        %v364 = vunpack.c.l.b16 %v225
        %v365 = vunpack.c.l.b16 %v226
        %v366 = vunpack.c.l.b16 %v227
        %v367 = vunpack.c.l.b16 %v228
        %v368 = vunpack.c.l.b16 %v229
        %v369 = vunpack.c.l.b16 %v230
        %v370 = vunpack.c.l.b16 %v231
        %v371 = vunpack.c.l.b16 %v232
        %v372 = vunpack.c.l.b16 %v233
        %v373 = vunpack.c.l.b16 %v234
        %v374 = vunpack.c.l.b16 %v235
        %v375 = vunpack.c.l.b16 %v236
        %v376 = vunpack.c.l.b16 %v237
        %v377 = vunpack.c.l.b16 %v238
        %v378 = vunpack.c.l.b16 %v239
        %v379 = vunpack.c.l.b16 %v240
        %v380 = vunpack.c.l.b16 %v241
        %v381 = vunpack.c.l.b16 %v242
        %v382 = vunpack.c.l.b16 %v243
        %v383 = vunpack.c.l.b16 %v244
        %v384 = vunpack.c.l.b16 %v245
        %v385 = vunpack.c.l.b16 %v246
        %v386 = vunpack.c.l.b16 %v247
        %v387 = vunpack.c.l.b16 %v248
        %v388 = vunpack.c.l.b16 %v249
        %v389 = vunpack.c.l.b16 %v250
        %v390 = vunpack.c.l.b16 %v251
        %v391 = vunpack.c.l.b16 %v252
        %v392 = vpack.c.b16 %v357, %v356
        %v393 = vpack.c.b16 %v359, %v358
        %v394 = vpack.c.b16 %v361, %v360
        %v395 = vpack.c.b16 %v363, %v362
        %v396 = vpack.c.b16 %v365, %v364
        %v397 = vpack.c.b16 %v367, %v366
        %v398 = vpack.c.b16 %v369, %v368
        %v399 = vpack.c.b16 %v371, %v370
        %v400 = vpack.c.b16 %v373, %v372
        %v401 = vpack.c.b16 %v375, %v374
        %v402 = vpack.c.b16 %v377, %v376
        %v403 = vpack.c.b16 %v379, %v378
        %v404 = vpack.c.b16 %v381, %v380
        %v405 = vpack.c.b16 %v383, %v382
        %v406 = vpack.c.b16 %v385, %v384
        %v407 = vpack.c.b16 %v387, %v386
        %v408 = vpack.c.b16 %v389, %v388
        %v409 = vpack.c.b16 %v391, %v390
        %vm428 = vcmask 261120
        %v430 = vsel %vm428, %v302, 0
        %v433 = vsel %vm428, %v305, 0
        %v436 = vsel %vm428, %v308, 0
        %v439 = vsel %vm428, %v311, 0
        %441 = vmatprep.subr.bf16.mxu0 0
        %442 = vmatpush1.bf16.msra.mxu0 %v399
        %443 = vmatprep.subr.bf16.mxu0 0
        %444 = vmatpush1.bf16.msra.mxu0 %v398
        %445 = vmatprep.subr.bf16.mxu0 0
        %446 = vmatpush1.bf16.msra.mxu0 %v397
        %447 = vmatprep.subr.bf16.mxu0 0
        %448 = vmatpush1.bf16.msra.mxu0 %v396
        %449 = vmatprep.subr.bf16.mxu0 0
        %450 = vmatpush1.bf16.msra.mxu0 %v395
        %451 = vmatprep.subr.bf16.mxu0 0
        %452 = vmatpush1.bf16.msra.mxu0 %v394
        %453 = vmatprep.subr.bf16.mxu0 0
        %454 = vmatpush1.bf16.msra.mxu0 %v393
        %455 = vmatprep.subr.bf16.mxu0 0
        %456 = vmatpush1.bf16.msra.mxu0 %v392
        %457 = vmatprep.subr.bf16.mxu0 0
        %458 = vmatpush2.bf16.msra.mxu0 %v407
        %459 = vmatprep.subr.bf16.mxu0 0
        %460 = vmatpush2.bf16.msra.mxu0 %v406
        %461 = vmatprep.subr.bf16.mxu0 0
        %462 = vmatpush2.bf16.msra.mxu0 %v405
        %463 = vmatprep.subr.bf16.mxu0 0
        %464 = vmatpush2.bf16.msra.mxu0 %v404
        %465 = vmatprep.subr.bf16.mxu0 0
        %466 = vmatpush2.bf16.msra.mxu0 %v403
        %467 = vmatprep.subr.bf16.mxu0 0
        %468 = vmatpush2.bf16.msra.mxu0 %v402
        %469 = vmatprep.subr.bf16.mxu0 0
        %470 = vmatpush2.bf16.msra.mxu0 %v401
        %471 = vmatprep.subr.bf16.mxu0 0
        %472 = vmatpush2.bf16.msra.mxu0 %v400
        %473 = vmatprep.mubr.bf16.mxu0 %v301
        %474 = vmatmul.mubr.bf16.gmra.mxu0 %v300
        %v475 = vpop.f32.mrf.mxu0
        %v476 = vadd.f32 %v258, %v475
        %v477 = vpop.f32.mrf.mxu0
        %v478 = vpop.f32.mrf.mxu0
        %v479 = vadd.f32 %v258, %v478
        %v480 = vpop.f32.mrf.mxu0
        %481 = vmatprep.mubr.bf16.mxu0 %v304
        %482 = vmatmul.mubr.bf16.gmra.mxu0 %v303
        %v483 = vpop.f32.mrf.mxu0
        %v484 = vadd.f32 %v258, %v483
        %v485 = vpop.f32.mrf.mxu0
        %v486 = vpop.f32.mrf.mxu0
        %v487 = vadd.f32 %v258, %v486
        %v488 = vpop.f32.mrf.mxu0
        %489 = vmatprep.mubr.bf16.mxu0 %v307
        %490 = vmatmul.mubr.bf16.gmra.mxu0 %v306
        %v491 = vpop.f32.mrf.mxu0
        %v492 = vadd.f32 %v258, %v491
        %v493 = vpop.f32.mrf.mxu0
        %v494 = vpop.f32.mrf.mxu0
        %v495 = vadd.f32 %v258, %v494
        %v496 = vpop.f32.mrf.mxu0
        %497 = vmatprep.mubr.bf16.mxu0 %v310
        %498 = vmatmul.mubr.bf16.gmra.mxu0 %v309
        %v499 = vpop.f32.mrf.mxu0
        %v500 = vadd.f32 %v258, %v499
        %v501 = vpop.f32.mrf.mxu0
        %v502 = vpop.f32.mrf.mxu0
        %v503 = vadd.f32 %v258, %v502
        %v504 = vpop.f32.mrf.mxu0
        %505 = vdwg.mxu0
        %506 = vmatprep.subr.bf16.mxu0 0
        %507 = vmatpush1.bf16.msra.mxu0 0
        %508 = vmatprep.subr.bf16.mxu0 0
        %509 = vmatpush1.bf16.msra.mxu0 0
        %510 = vmatprep.subr.bf16.mxu0 0
        %511 = vmatpush1.bf16.msra.mxu0 0
        %512 = vmatprep.subr.bf16.mxu0 0
        %513 = vmatpush1.bf16.msra.mxu0 0
        %514 = vmatprep.subr.bf16.mxu0 0
        %515 = vmatpush1.bf16.msra.mxu0 0
        %516 = vmatprep.subr.bf16.mxu0 0
        %517 = vmatpush1.bf16.msra.mxu0 0
        %518 = vmatprep.subr.bf16.mxu0 0
        %519 = vmatpush1.bf16.msra.mxu0 %v409
        %520 = vmatprep.subr.bf16.mxu0 0
        %521 = vmatpush1.bf16.msra.mxu0 %v408
        %522 = vmatprep.subr.bf16.mxu0 0
        %523 = vmatpush2.bf16.msra.mxu0 0
        %524 = vmatprep.subr.bf16.mxu0 0
        %525 = vmatpush2.bf16.msra.mxu0 0
        %526 = vmatprep.subr.bf16.mxu0 0
        %527 = vmatpush2.bf16.msra.mxu0 0
        %528 = vmatprep.subr.bf16.mxu0 0
        %529 = vmatpush2.bf16.msra.mxu0 0
        %530 = vmatprep.subr.bf16.mxu0 0
        %531 = vmatpush2.bf16.msra.mxu0 0
        %532 = vmatprep.subr.bf16.mxu0 0
        %533 = vmatpush2.bf16.msra.mxu0 0
        %534 = vmatprep.subr.bf16.mxu0 0
        %535 = vmatpush2.bf16.msra.mxu0 0
        %536 = vmatprep.subr.bf16.mxu0 0
        %537 = vmatpush2.bf16.msra.mxu0 0
        %538 = vmatprep.mubr.bf16.mxu0 0
        %539 = vmatmul.mubr.bf16.gmra.mxu0 %v430
        %v540 = vpop.f32.mrf.mxu0
        %v541 = vadd.f32 %v476, %v540
        %v542 = vpop.f32.mrf.mxu0
        %v543 = vpop.f32.mrf.mxu0
        %v544 = vadd.f32 %v479, %v543
        %v545 = vpop.f32.mrf.mxu0
        %546 = vmatprep.mubr.bf16.mxu0 0
        %547 = vmatmul.mubr.bf16.gmra.mxu0 %v433
        %v548 = vpop.f32.mrf.mxu0
        %v549 = vadd.f32 %v484, %v548
        %v550 = vpop.f32.mrf.mxu0
        %v551 = vpop.f32.mrf.mxu0
        %v552 = vadd.f32 %v487, %v551
        %v553 = vpop.f32.mrf.mxu0
        %554 = vmatprep.mubr.bf16.mxu0 0
        %555 = vmatmul.mubr.bf16.gmra.mxu0 %v436
        %v556 = vpop.f32.mrf.mxu0
        %v557 = vadd.f32 %v492, %v556
        %v558 = vpop.f32.mrf.mxu0
        %v559 = vpop.f32.mrf.mxu0
        %v560 = vadd.f32 %v495, %v559
        %v561 = vpop.f32.mrf.mxu0
        %562 = vmatprep.mubr.bf16.mxu0 0
        %563 = vmatmul.mubr.bf16.gmra.mxu0 %v439
        %v564 = vpop.f32.mrf.mxu0
        %v565 = vadd.f32 %v500, %v564
        %v566 = vpop.f32.mrf.mxu0
        %v567 = vpop.f32.mrf.mxu0
        %v568 = vadd.f32 %v503, %v567
        %v569 = vpop.f32.mrf.mxu0
        %570 = vdwg.mxu0
        %v571 = vmax.f32 %v541, 0.0
        %v572 = vmax.f32 %v544, 0.0
        %v573 = vmax.f32 %v549, 0.0
        %v574 = vmax.f32 %v552, 0.0
        %v575 = vmax.f32 %v557, 0.0
        %v576 = vmax.f32 %v560, 0.0
        %v577 = vmax.f32 %v565, 0.0
        %v578 = vmax.f32 %v568, 0.0
        %v579 = vpack.c.bf16 %v572, %v571
        %v580 = vpack.c.bf16 %v574, %v573
        %v581 = vpack.c.bf16 %v576, %v575
        %v582 = vpack.c.bf16 %v578, %v577
        %v587 = vunpack.c.l.b16 %v579
        %v588 = vunpack.c.h.b16 %v579
        %v589 = vunpack.c.l.b16 %v580
        %v590 = vunpack.c.h.b16 %v580
        %v591 = vunpack.c.l.b16 %v581
        %v592 = vunpack.c.h.b16 %v581
        %v593 = vunpack.c.l.b16 %v582
        %v594 = vunpack.c.h.b16 %v582
        %v595 = vpack.c.b16 %v587, %v587
        %v596 = vpack.c.b16 %v588, %v588
        %v597 = vpack.c.b16 %v589, %v589
        %v598 = vpack.c.b16 %v590, %v590
        %v599 = vpack.c.b16 %v591, %v591
        %v600 = vpack.c.b16 %v592, %v592
        %v601 = vpack.c.b16 %v593, %v593
        %v602 = vpack.c.b16 %v594, %v594
        %vm611 = vcmask 519168
        %612 = vst.msk [vmem:[%s177] sm:$0xf] %vm611, %v595
        %613 = vst.msk [vmem:[%s177 + $0x4] sm:$0xf] %vm611, %v596
        %614 = vst.msk [vmem:[%s177 + $0x8] sm:$0xf] %vm611, %v597
        %615 = vst.msk [vmem:[%s177 + $0xc] sm:$0xf] %vm611, %v598
        %616 = vst.msk [vmem:[%s177 + $0x10] sm:$0xf] %vm611, %v599
        %617 = vst.msk [vmem:[%s177 + $0x14] sm:$0xf] %vm611, %v600
        %618 = vst.msk [vmem:[%s177 + $0x18] sm:$0xf] %vm611, %v601
        %619 = vst.msk [vmem:[%s177 + $0x1c] sm:$0xf] %vm611, %v602
        %s620 = sand.u32 %s90, 1
        %s621 = sand.u32 %s90, 1
        %s622 = smul.addr %s621, 32
        %s623 = scalar_lea.vmem [#allocation2], %s622
        // Predicated region
        $region33: #{actor_critic_forward.6} parent=31 // pred_check
          %p624 = pneg %p100
        $region34: #{actor_critic_forward.6} parent=31 // pred_check_branch
          %626 = sbr.rel (%p624) target = $region36
        $region35: #{actor_critic_forward.6} parent=31 // pred_region
          %s627 = smul.u32 8, %s14
          %s628 = ssub.s32 13, %s627
          %p629 = scmp.lt.s32.totalorder %s628, 8
          %s630 = scalar_select %p629, %s628, 8
          %s631 = smul.u32 64, %s630
          %p632 = scmp.ne.s32.totalorder 0, %s631
          %s633 = smul.addr %s627, 4
          %s634 = scalar_lea.vmem %s3, %s633
          // Predicated region
          $region37: #{actor_critic_forward.6} parent=35 // pred_check
            %p635 = pneg %p632
          $region38: #{actor_critic_forward.6} parent=35 // pred_check_branch
            %637 = sbr.rel (%p635) target = $region40
          $region39: #{actor_critic_forward.6} parent=35 // pred_region
            // Predicated region
            $region41: #{actor_critic_forward.6} parent=39 // pred_check
              _
            $region42: #{actor_critic_forward.6} parent=39 // pred_check_branch
              %639 = sbr.rel target = $region44
            $region43: #{actor_critic_forward.6} parent=39 // pred_region
              // Predicated region
              $region63: #{actor_critic_forward.6} parent=43 // pred_check
                _
              $region64: #{actor_critic_forward.6} parent=43 // pred_check_branch
                %703 = sbr.rel (0) target = $region66
              $region65: #{actor_critic_forward.6} parent=43 // pred_region
                %s705 = ssub.s32 16, 1
                %s706 = sshrl.u32 %s630, 3
                // While loop
                $region67: #{actor_critic_forward.6} parent=65 // loop_pre_header
                  _
                $region68: #{actor_critic_forward.6} parent=65 // loop_header
                  %s708 = sphi 0, %s710
                  %p709 = scmp.ge.s32.totalorder %s708, %s706
                  %s713 = sphi 0, %s734
                  %s714 = sphi %s623, %s737
                  %s715 = sphi %s634, %s738
                $region69: #{actor_critic_forward.6} parent=65 // loop_header_branch
                  %712 = sbr.rel (%p709) target = $region73
                $region70: #{actor_critic_forward.6} parent=65 // loop_body
                  %v716 = vld [vmem:[%s714] sm:%s705]
                  %717 = vst [vmem:[%s715] sm:%s705] %v716
                  %v718 = vld [vmem:[%s714 + $0x4] sm:%s705]
                  %719 = vst [vmem:[%s715 + $0x4] sm:%s705] %v718
                  %v720 = vld [vmem:[%s714 + $0x8] sm:%s705]
                  %721 = vst [vmem:[%s715 + $0x8] sm:%s705] %v720
                  %v722 = vld [vmem:[%s714 + $0xc] sm:%s705]
                  %723 = vst [vmem:[%s715 + $0xc] sm:%s705] %v722
                  %v724 = vld [vmem:[%s714 + $0x10] sm:%s705]
                  %725 = vst [vmem:[%s715 + $0x10] sm:%s705] %v724
                  %v726 = vld [vmem:[%s714 + $0x14] sm:%s705]
                  %727 = vst [vmem:[%s715 + $0x14] sm:%s705] %v726
                  %v728 = vld [vmem:[%s714 + $0x18] sm:%s705]
                  %729 = vst [vmem:[%s715 + $0x18] sm:%s705] %v728
                  %v730 = vld [vmem:[%s714 + $0x1c] sm:%s705]
                  %731 = vst [vmem:[%s715 + $0x1c] sm:%s705] %v730
                  %s732 = sadd.s32 1, %s713
                  %p733 = scmp.ge.s32.totalorder %s732, %s706
                  %s734 = scalar_select %p733, 0, %s732
                  %s735 = smul.u32 %s734, 32
                  %s736 = smul.u32 %s734, 32
                  %s737 = scalar_lea.vmem %s623, %s735 [#allocation2]
                  %s738 = scalar_lea.vmem %s634, %s736
                $region71: #{actor_critic_forward.6} parent=65 // loop_footer
                  %s710 = sadd.s32 %s708, 1
                $region72: #{actor_critic_forward.6} parent=65 // loop_footer_branch
                  %707 = sbr.rel target = $region68
                $region73: #{actor_critic_forward.6} parent=65 // loop_exit
                  _
                %s739 = sshrl.u32 %s630, 3
                %s740 = sand.u32 %s630, 7
                %s741 = smul.u32 %s739, 8
                %s742 = smul.u32 4, %s741
                %s743 = scalar_lea.vmem %s623, %s742 [#allocation2]
                %s744 = smul.u32 4, %s741
                %s745 = scalar_lea.vmem %s634, %s744
                // While loop
                $region74: #{actor_critic_forward.6} parent=65 // loop_pre_header
                  _
                $region75: #{actor_critic_forward.6} parent=65 // loop_header
                  %s747 = sphi 0, %s749
                  %p748 = scmp.ge.s32.totalorder %s747, %s740
                  %s752 = sphi 0, %s759
                  %s753 = sphi %s743, %s762
                  %s754 = sphi %s745, %s763
                $region76: #{actor_critic_forward.6} parent=65 // loop_header_branch
                  %751 = sbr.rel (%p748) target = $region80
                $region77: #{actor_critic_forward.6} parent=65 // loop_body
                  %v755 = vld [vmem:[%s753] sm:%s705]
                  %756 = vst [vmem:[%s754] sm:%s705] %v755
                  %s757 = sadd.s32 1, %s752
                  %p758 = scmp.ge.s32.totalorder %s757, %s740
                  %s759 = scalar_select %p758, 0, %s757
                  %s760 = smul.u32 %s759, 4
                  %s761 = smul.u32 %s759, 4
                  %s762 = scalar_lea.vmem %s743, %s760 [#allocation2]
                  %s763 = scalar_lea.vmem %s745, %s761
                $region78: #{actor_critic_forward.6} parent=65 // loop_footer
                  %s749 = sadd.s32 %s747, 1
                $region79: #{actor_critic_forward.6} parent=65 // loop_footer_branch
                  %746 = sbr.rel target = $region75
                $region80: #{actor_critic_forward.6} parent=65 // loop_exit
                  _
              $region66: #{actor_critic_forward.6} parent=43 // pred_fallthru
                _
            $region44: #{actor_critic_forward.6} parent=39 // pred_fallthru
              _
            // Predicated region
            $region45: #{actor_critic_forward.6} parent=39 // pred_check
              _
            $region46: #{actor_critic_forward.6} parent=39 // pred_check_branch
              %641 = sbr.rel (0) target = $region48
            $region47: #{actor_critic_forward.6} parent=39 // pred_region
              %s643 = ssub.s32 16, 1
              %s644 = sshrl.u32 %s630, 3
              // While loop
              $region49: #{actor_critic_forward.6} parent=47 // loop_pre_header
                _
              $region50: #{actor_critic_forward.6} parent=47 // loop_header
                %s646 = sphi 0, %s648
                %p647 = scmp.ge.s32.totalorder %s646, %s644
                %s651 = sphi 0, %s672
                %s652 = sphi %s623, %s675
                %s653 = sphi %s634, %s676
              $region51: #{actor_critic_forward.6} parent=47 // loop_header_branch
                %650 = sbr.rel (%p647) target = $region55
              $region52: #{actor_critic_forward.6} parent=47 // loop_body
                %v654 = vld [vmem:[%s652] sm:%s643]
                %655 = vst [vmem:[%s653] sm:%s643] %v654
                %v656 = vld [vmem:[%s652 + $0x4] sm:%s643]
                %657 = vst [vmem:[%s653 + $0x4] sm:%s643] %v656
                %v658 = vld [vmem:[%s652 + $0x8] sm:%s643]
                %659 = vst [vmem:[%s653 + $0x8] sm:%s643] %v658
                %v660 = vld [vmem:[%s652 + $0xc] sm:%s643]
                %661 = vst [vmem:[%s653 + $0xc] sm:%s643] %v660
                %v662 = vld [vmem:[%s652 + $0x10] sm:%s643]
                %663 = vst [vmem:[%s653 + $0x10] sm:%s643] %v662
                %v664 = vld [vmem:[%s652 + $0x14] sm:%s643]
                %665 = vst [vmem:[%s653 + $0x14] sm:%s643] %v664
                %v666 = vld [vmem:[%s652 + $0x18] sm:%s643]
                %667 = vst [vmem:[%s653 + $0x18] sm:%s643] %v666
                %v668 = vld [vmem:[%s652 + $0x1c] sm:%s643]
                %669 = vst [vmem:[%s653 + $0x1c] sm:%s643] %v668
                %s670 = sadd.s32 1, %s651
                %p671 = scmp.ge.s32.totalorder %s670, %s644
                %s672 = scalar_select %p671, 0, %s670
                %s673 = smul.u32 %s672, 32
                %s674 = smul.u32 %s672, 32
                %s675 = scalar_lea.vmem %s623, %s673 [#allocation2]
                %s676 = scalar_lea.vmem %s634, %s674
              $region53: #{actor_critic_forward.6} parent=47 // loop_footer
                %s648 = sadd.s32 %s646, 1
              $region54: #{actor_critic_forward.6} parent=47 // loop_footer_branch
                %645 = sbr.rel target = $region50
              $region55: #{actor_critic_forward.6} parent=47 // loop_exit
                _
              %s677 = sshrl.u32 %s630, 3
              %s678 = sand.u32 %s630, 7
              %s679 = smul.u32 %s677, 8
              %s680 = smul.u32 4, %s679
              %s681 = scalar_lea.vmem %s623, %s680 [#allocation2]
              %s682 = smul.u32 4, %s679
              %s683 = scalar_lea.vmem %s634, %s682
              // While loop
              $region56: #{actor_critic_forward.6} parent=47 // loop_pre_header
                _
              $region57: #{actor_critic_forward.6} parent=47 // loop_header
                %s685 = sphi 0, %s687
                %p686 = scmp.ge.s32.totalorder %s685, %s678
                %s690 = sphi 0, %s697
                %s691 = sphi %s681, %s700
                %s692 = sphi %s683, %s701
              $region58: #{actor_critic_forward.6} parent=47 // loop_header_branch
                %689 = sbr.rel (%p686) target = $region62
              $region59: #{actor_critic_forward.6} parent=47 // loop_body
                %v693 = vld [vmem:[%s691] sm:%s643]
                %694 = vst [vmem:[%s692] sm:%s643] %v693
                %s695 = sadd.s32 1, %s690
                %p696 = scmp.ge.s32.totalorder %s695, %s678
                %s697 = scalar_select %p696, 0, %s695
                %s698 = smul.u32 %s697, 4
                %s699 = smul.u32 %s697, 4
                %s700 = scalar_lea.vmem %s681, %s698 [#allocation2]
                %s701 = scalar_lea.vmem %s683, %s699
              $region60: #{actor_critic_forward.6} parent=47 // loop_footer
                %s687 = sadd.s32 %s685, 1
              $region61: #{actor_critic_forward.6} parent=47 // loop_footer_branch
                %684 = sbr.rel target = $region57
              $region62: #{actor_critic_forward.6} parent=47 // loop_exit
                _
            $region48: #{actor_critic_forward.6} parent=39 // pred_fallthru
              _
          $region40: #{actor_critic_forward.6} parent=35 // pred_fallthru
            _
          %764 = vnop
        $region36: #{actor_critic_forward.6} parent=31 // pred_fallthru
          _
      $region32: #{actor_critic_forward.6} parent=5 // pred_fallthru
        _
      %p765 = scmp.le.s32.totalorder 2, %s9
      // Predicated region
      $region81: #{actor_critic_forward.6} parent=5 // pred_check
        %p766 = pneg %p765
      $region82: #{actor_critic_forward.6} parent=5 // pred_check_branch
        %768 = sbr.rel (%p766) target = $region84
      $region83: #{actor_critic_forward.6} parent=5 // pred_region
        %s769 = ssub.s32 %s9, 2
        // Predicated region
        $region85: #{actor_critic_forward.6} parent=83 // pred_check
          %p770 = pneg %p106
        $region86: #{actor_critic_forward.6} parent=83 // pred_check_branch
          %772 = sbr.rel (%p770) target = $region88
        $region87: #{actor_critic_forward.6} parent=83 // pred_region
          %s773 = sand.u32 %s91, 1
          %s774 = sand.u32 %s91, 1
          %s775 = smul.addr %s774, 32
          %s776 = scalar_lea.vmem [#allocation2], %s775
        $region88: #{actor_critic_forward.6} parent=83 // pred_fallthru
          _
      $region84: #{actor_critic_forward.6} parent=5 // pred_fallthru
        _
    $region6: #{actor_critic_forward.6} parent=1 // loop_footer
      %s13 = sadd.s32 1, %s9
    $region7: #{actor_critic_forward.6} parent=1 // loop_footer_branch
      %8 = sbr.rel target = $region3
    $region8: #{actor_critic_forward.6} parent=1 // loop_exit
      _

// kernel: actor_critic_forward.7
$region0: #{actor_critic_forward.7}
  #allocation0 [shape = 'u32[]', space=smem, size = 0x4, offset = 0x4, fixed_abs, tag = 'smem constant byte address 0x4 - core index']
  #allocation1 [shape = 'u32[144,128]{1,0:T(1,128)}', space=vmem, size = 0x12000, scoped, tag = 'internal scratch']
  %s0 = inlined_call_operand.vmem [shape: bf16[2,3136], index: 0, kind: input, shape index: {}]
  %s1 = inlined_call_operand.vmem [shape: bf16[3136,256], index: 1, kind: input, shape index: {}]
  %s2 = inlined_call_operand.vmem [shape: f32[1,256], index: 2, kind: input, shape index: {}]
  %s3 = inlined_call_operand.vmem [shape: bf16[256,8], index: 3, kind: input, shape index: {}]
  %s4 = inlined_call_operand.vmem [shape: f32[1,8], index: 4, kind: input, shape index: {}]
  %s5 = inlined_call_operand.vmem [shape: f32[2,8], index: 5, kind: output, shape index: {}]
  %s6 = sld [smem:[#allocation0]]
  $region30: #{actor_critic_forward.7} parent=0
    _
  %s8 = ssub.s32 1, %s6
  %s9 = scalar_select 0, %s8, %s6
  // Predicated region
  $region2: #{actor_critic_forward.7} parent=0 // pred_check
    _
  $region3: #{actor_critic_forward.7} parent=0 // pred_check_branch
    %11 = sbr.rel (0) target = $region5
  $region4: #{actor_critic_forward.7} parent=0 // pred_region
    _
  $region5: #{actor_critic_forward.7} parent=0 // pred_fallthru
    _
  // Predicated region
  $region6: #{actor_critic_forward.7} parent=0 // pred_check
    _
  $region7: #{actor_critic_forward.7} parent=0 // pred_check_branch
    %13 = sbr.rel (0) target = $region9
  $region8: #{actor_critic_forward.7} parent=0 // pred_region
    _
  $region9: #{actor_critic_forward.7} parent=0 // pred_fallthru
    _
  // Predicated region
  $region10: #{actor_critic_forward.7} parent=0 // pred_check
    _
  $region11: #{actor_critic_forward.7} parent=0 // pred_check_branch
    %15 = sbr.rel (0) target = $region13
  $region12: #{actor_critic_forward.7} parent=0 // pred_region
    _
  $region13: #{actor_critic_forward.7} parent=0 // pred_fallthru
    _
  // Predicated region
  $region14: #{actor_critic_forward.7} parent=0 // pred_check
    _
  $region15: #{actor_critic_forward.7} parent=0 // pred_check_branch
    %17 = sbr.rel (0) target = $region17
  $region16: #{actor_critic_forward.7} parent=0 // pred_region
    _
  $region17: #{actor_critic_forward.7} parent=0 // pred_fallthru
    _
  // Predicated region
  $region18: #{actor_critic_forward.7} parent=0 // pred_check
    _
  $region19: #{actor_critic_forward.7} parent=0 // pred_check_branch
    %19 = sbr.rel (0) target = $region21
  $region20: #{actor_critic_forward.7} parent=0 // pred_region
    _
  $region21: #{actor_critic_forward.7} parent=0 // pred_fallthru
    _
  %v21 = vld [vmem:[%s0] sm:$0xff]
  %v22 = vld [vmem:[%s0 + $0x8] sm:$0xff]
  %v23 = vld [vmem:[%s0 + $0x10] sm:$0xff]
  %v24 = vld [vmem:[%s0 + $0x18] sm:$0x1]
  %v25 = vld [vmem:[%s1] sm:$0xff]
  %v26 = vld [vmem:[%s1 + $0x8] sm:$0xff]
  %v27 = vld [vmem:[%s1 + $0x10] sm:$0xff]
  %v28 = vld [vmem:[%s1 + $0x18] sm:$0xff]
  %v29 = vld [vmem:[%s1 + $0x20] sm:$0xff]
  %v30 = vld [vmem:[%s1 + $0x28] sm:$0xff]
  %v31 = vld [vmem:[%s1 + $0x30] sm:$0xff]
  %v32 = vld [vmem:[%s1 + $0x38] sm:$0xff]
  %v33 = vld [vmem:[%s1 + $0x40] sm:$0xff]
  %v34 = vld [vmem:[%s1 + $0x48] sm:$0xff]
  %v35 = vld [vmem:[%s1 + $0x50] sm:$0xff]
  %v36 = vld [vmem:[%s1 + $0x58] sm:$0xff]
  %v37 = vld [vmem:[%s1 + $0x60] sm:$0xff]
  %v38 = vld [vmem:[%s1 + $0x68] sm:$0xff]
  %v39 = vld [vmem:[%s1 + $0x70] sm:$0xff]
  %v40 = vld [vmem:[%s1 + $0x78] sm:$0xff]
  %v41 = vld [vmem:[%s1 + $0x80] sm:$0xff]
  %v42 = vld [vmem:[%s1 + $0x88] sm:$0xff]
  %v43 = vld [vmem:[%s1 + $0x90] sm:$0xff]
  %v44 = vld [vmem:[%s1 + $0x98] sm:$0xff]
  %v45 = vld [vmem:[%s1 + $0xa0] sm:$0xff]
  %v46 = vld [vmem:[%s1 + $0xa8] sm:$0xff]
  %v47 = vld [vmem:[%s1 + $0xb0] sm:$0xff]
  %v48 = vld [vmem:[%s1 + $0xb8] sm:$0xff]
  %v49 = vld [vmem:[%s1 + $0xc0] sm:$0xff]
  %v50 = vld [vmem:[%s1 + $0xc8] sm:$0xff]
  %v51 = vld [vmem:[%s1 + $0xd0] sm:$0xff]
  %v52 = vld [vmem:[%s1 + $0xd8] sm:$0xff]
  %v53 = vld [vmem:[%s1 + $0xe0] sm:$0xff]
  %v54 = vld [vmem:[%s1 + $0xe8] sm:$0xff]
  %v55 = vld [vmem:[%s1 + $0xf0] sm:$0xff]
  %v56 = vld [vmem:[%s1 + $0xf8] sm:$0xff]
  %v57 = vld [vmem:[%s1 + $0x100] sm:$0xff]
  %v58 = vld [vmem:[%s1 + $0x108] sm:$0xff]
  %v59 = vld [vmem:[%s1 + $0x110] sm:$0xff]
  %v60 = vld [vmem:[%s1 + $0x118] sm:$0xff]
  %v61 = vld [vmem:[%s1 + $0x120] sm:$0xff]
  %v62 = vld [vmem:[%s1 + $0x128] sm:$0xff]
  %v63 = vld [vmem:[%s1 + $0x130] sm:$0xff]
  %v64 = vld [vmem:[%s1 + $0x138] sm:$0xff]
  %v65 = vld [vmem:[%s1 + $0x140] sm:$0xff]
  %v66 = vld [vmem:[%s1 + $0x148] sm:$0xff]
  %v67 = vld [vmem:[%s1 + $0x150] sm:$0xff]
  %v68 = vld [vmem:[%s1 + $0x158] sm:$0xff]
  %v69 = vld [vmem:[%s1 + $0x160] sm:$0xff]
  %v70 = vld [vmem:[%s1 + $0x168] sm:$0xff]
  %v71 = vld [vmem:[%s1 + $0x170] sm:$0xff]
  %v72 = vld [vmem:[%s1 + $0x178] sm:$0xff]
  %v73 = vld [vmem:[%s1 + $0x180] sm:$0xff]
  %v74 = vld [vmem:[%s1 + $0x188] sm:$0xff]
  %v75 = vld [vmem:[%s1 + $0x190] sm:$0xff]
  %v76 = vld [vmem:[%s1 + $0x198] sm:$0xff]
  %v77 = vld [vmem:[%s1 + $0x1a0] sm:$0xff]
  %v78 = vld [vmem:[%s1 + $0x1a8] sm:$0xff]
  %v79 = vld [vmem:[%s1 + $0x1b0] sm:$0xff]
  %v80 = vld [vmem:[%s1 + $0x1b8] sm:$0xff]
  %v81 = vld [vmem:[%s1 + $0x1c0] sm:$0xff]
  %v82 = vld [vmem:[%s1 + $0x1c8] sm:$0xff]
  %v83 = vld [vmem:[%s1 + $0x1d0] sm:$0xff]
  %v84 = vld [vmem:[%s1 + $0x1d8] sm:$0xff]
  %v85 = vld [vmem:[%s1 + $0x1e0] sm:$0xff]
  %v86 = vld [vmem:[%s1 + $0x1e8] sm:$0xff]
  %v87 = vld [vmem:[%s1 + $0x1f0] sm:$0xff]
  %v88 = vld [vmem:[%s1 + $0x1f8] sm:$0xff]
  %v89 = vld [vmem:[%s1 + $0x200] sm:$0xff]
  %v90 = vld [vmem:[%s1 + $0x208] sm:$0xff]
  %v91 = vld [vmem:[%s1 + $0x210] sm:$0xff]
  %v92 = vld [vmem:[%s1 + $0x218] sm:$0xff]
  %v93 = vld [vmem:[%s1 + $0x220] sm:$0xff]
  %v94 = vld [vmem:[%s1 + $0x228] sm:$0xff]
  %v95 = vld [vmem:[%s1 + $0x230] sm:$0xff]
  %v96 = vld [vmem:[%s1 + $0x238] sm:$0xff]
  %v97 = vld [vmem:[%s1 + $0x240] sm:$0xff]
  %v98 = vld [vmem:[%s1 + $0x248] sm:$0xff]
  %v99 = vld [vmem:[%s1 + $0x250] sm:$0xff]
  %v100 = vld [vmem:[%s1 + $0x258] sm:$0xff]
  %v101 = vld [vmem:[%s1 + $0x260] sm:$0xff]
  %v102 = vld [vmem:[%s1 + $0x268] sm:$0xff]
  %v103 = vld [vmem:[%s1 + $0x270] sm:$0xff]
  %v104 = vld [vmem:[%s1 + $0x278] sm:$0xff]
  %v105 = vld [vmem:[%s1 + $0x280] sm:$0xff]
  %v106 = vld [vmem:[%s1 + $0x288] sm:$0xff]
  %v107 = vld [vmem:[%s1 + $0x290] sm:$0xff]
  %v108 = vld [vmem:[%s1 + $0x298] sm:$0xff]
  %v109 = vld [vmem:[%s1 + $0x2a0] sm:$0xff]
  %v110 = vld [vmem:[%s1 + $0x2a8] sm:$0xff]
  %v111 = vld [vmem:[%s1 + $0x2b0] sm:$0xff]
  %v112 = vld [vmem:[%s1 + $0x2b8] sm:$0xff]
  %v113 = vld [vmem:[%s1 + $0x2c0] sm:$0xff]
  %v114 = vld [vmem:[%s1 + $0x2c8] sm:$0xff]
  %v115 = vld [vmem:[%s1 + $0x2d0] sm:$0xff]
  %v116 = vld [vmem:[%s1 + $0x2d8] sm:$0xff]
  %v117 = vld [vmem:[%s1 + $0x2e0] sm:$0xff]
  %v118 = vld [vmem:[%s1 + $0x2e8] sm:$0xff]
  %v119 = vld [vmem:[%s1 + $0x2f0] sm:$0xff]
  %v120 = vld [vmem:[%s1 + $0x2f8] sm:$0xff]
  %v121 = vld [vmem:[%s1 + $0x300] sm:$0xff]
  %v122 = vld [vmem:[%s1 + $0x308] sm:$0xff]
  %v123 = vld [vmem:[%s1 + $0x310] sm:$0xff]
  %v124 = vld [vmem:[%s1 + $0x318] sm:$0xff]
  %v125 = vld [vmem:[%s1 + $0x320] sm:$0xff]
  %v126 = vld [vmem:[%s1 + $0x328] sm:$0xff]
  %v127 = vld [vmem:[%s1 + $0x330] sm:$0xff]
  %v128 = vld [vmem:[%s1 + $0x338] sm:$0xff]
  %v129 = vld [vmem:[%s1 + $0x340] sm:$0xff]
  %v130 = vld [vmem:[%s1 + $0x348] sm:$0xff]
  %v131 = vld [vmem:[%s1 + $0x350] sm:$0xff]
  %v132 = vld [vmem:[%s1 + $0x358] sm:$0xff]
  %v133 = vld [vmem:[%s1 + $0x360] sm:$0xff]
  %v134 = vld [vmem:[%s1 + $0x368] sm:$0xff]
  %v135 = vld [vmem:[%s1 + $0x370] sm:$0xff]
  %v136 = vld [vmem:[%s1 + $0x378] sm:$0xff]
  %v137 = vld [vmem:[%s1 + $0x380] sm:$0xff]
  %v138 = vld [vmem:[%s1 + $0x388] sm:$0xff]
  %v139 = vld [vmem:[%s1 + $0x390] sm:$0xff]
  %v140 = vld [vmem:[%s1 + $0x398] sm:$0xff]
  %v141 = vld [vmem:[%s1 + $0x3a0] sm:$0xff]
  %v142 = vld [vmem:[%s1 + $0x3a8] sm:$0xff]
  %v143 = vld [vmem:[%s1 + $0x3b0] sm:$0xff]
  %v144 = vld [vmem:[%s1 + $0x3b8] sm:$0xff]
  %v145 = vld [vmem:[%s1 + $0x3c0] sm:$0xff]
  %v146 = vld [vmem:[%s1 + $0x3c8] sm:$0xff]
  %v147 = vld [vmem:[%s1 + $0x3d0] sm:$0xff]
  %v148 = vld [vmem:[%s1 + $0x3d8] sm:$0xff]
  %v149 = vld [vmem:[%s1 + $0x3e0] sm:$0xff]
  %v150 = vld [vmem:[%s1 + $0x3e8] sm:$0xff]
  %v151 = vld [vmem:[%s1 + $0x3f0] sm:$0xff]
  %v152 = vld [vmem:[%s1 + $0x3f8] sm:$0xff]
  %v153 = vld [vmem:[%s1 + $0x400] sm:$0xff]
  %v154 = vld [vmem:[%s1 + $0x408] sm:$0xff]
  %v155 = vld [vmem:[%s1 + $0x410] sm:$0xff]
  %v156 = vld [vmem:[%s1 + $0x418] sm:$0xff]
  %v157 = vld [vmem:[%s1 + $0x420] sm:$0xff]
  %v158 = vld [vmem:[%s1 + $0x428] sm:$0xff]
  %v159 = vld [vmem:[%s1 + $0x430] sm:$0xff]
  %v160 = vld [vmem:[%s1 + $0x438] sm:$0xff]
  %v161 = vld [vmem:[%s1 + $0x440] sm:$0xff]
  %v162 = vld [vmem:[%s1 + $0x448] sm:$0xff]
  %v163 = vld [vmem:[%s1 + $0x450] sm:$0xff]
  %v164 = vld [vmem:[%s1 + $0x458] sm:$0xff]
  %v165 = vld [vmem:[%s1 + $0x460] sm:$0xff]
  %v166 = vld [vmem:[%s1 + $0x468] sm:$0xff]
  %v167 = vld [vmem:[%s1 + $0x470] sm:$0xff]
  %v168 = vld [vmem:[%s1 + $0x478] sm:$0xff]
  %v169 = vld [vmem:[%s1 + $0x480] sm:$0xff]
  %v170 = vld [vmem:[%s1 + $0x488] sm:$0xff]
  %v171 = vld [vmem:[%s1 + $0x490] sm:$0xff]
  %v172 = vld [vmem:[%s1 + $0x498] sm:$0xff]
  %v173 = vld [vmem:[%s1 + $0x4a0] sm:$0xff]
  %v174 = vld [vmem:[%s1 + $0x4a8] sm:$0xff]
  %v175 = vld [vmem:[%s1 + $0x4b0] sm:$0xff]
  %v176 = vld [vmem:[%s1 + $0x4b8] sm:$0xff]
  %v177 = vld [vmem:[%s1 + $0x4c0] sm:$0xff]
  %v178 = vld [vmem:[%s1 + $0x4c8] sm:$0xff]
  %v179 = vld [vmem:[%s1 + $0x4d0] sm:$0xff]
  %v180 = vld [vmem:[%s1 + $0x4d8] sm:$0xff]
  %v181 = vld [vmem:[%s1 + $0x4e0] sm:$0xff]
  %v182 = vld [vmem:[%s1 + $0x4e8] sm:$0xff]
  %v183 = vld [vmem:[%s1 + $0x4f0] sm:$0xff]
  %v184 = vld [vmem:[%s1 + $0x4f8] sm:$0xff]
  %v185 = vld [vmem:[%s1 + $0x500] sm:$0xff]
  %v186 = vld [vmem:[%s1 + $0x508] sm:$0xff]
  %v187 = vld [vmem:[%s1 + $0x510] sm:$0xff]
  %v188 = vld [vmem:[%s1 + $0x518] sm:$0xff]
  %v189 = vld [vmem:[%s1 + $0x520] sm:$0xff]
  %v190 = vld [vmem:[%s1 + $0x528] sm:$0xff]
  %v191 = vld [vmem:[%s1 + $0x530] sm:$0xff]
  %v192 = vld [vmem:[%s1 + $0x538] sm:$0xff]
  %v193 = vld [vmem:[%s1 + $0x540] sm:$0xff]
  %v194 = vld [vmem:[%s1 + $0x548] sm:$0xff]
  %v195 = vld [vmem:[%s1 + $0x550] sm:$0xff]
  %v196 = vld [vmem:[%s1 + $0x558] sm:$0xff]
  %v197 = vld [vmem:[%s1 + $0x560] sm:$0xff]
  %v198 = vld [vmem:[%s1 + $0x568] sm:$0xff]
  %v199 = vld [vmem:[%s1 + $0x570] sm:$0xff]
  %v200 = vld [vmem:[%s1 + $0x578] sm:$0xff]
  %v201 = vld [vmem:[%s1 + $0x580] sm:$0xff]
  %v202 = vld [vmem:[%s1 + $0x588] sm:$0xff]
  %v203 = vld [vmem:[%s1 + $0x590] sm:$0xff]
  %v204 = vld [vmem:[%s1 + $0x598] sm:$0xff]
  %v205 = vld [vmem:[%s1 + $0x5a0] sm:$0xff]
  %v206 = vld [vmem:[%s1 + $0x5a8] sm:$0xff]
  %v207 = vld [vmem:[%s1 + $0x5b0] sm:$0xff]
  %v208 = vld [vmem:[%s1 + $0x5b8] sm:$0xff]
  %v209 = vld [vmem:[%s1 + $0x5c0] sm:$0xff]
  %v210 = vld [vmem:[%s1 + $0x5c8] sm:$0xff]
  %v211 = vld [vmem:[%s1 + $0x5d0] sm:$0xff]
  %v212 = vld [vmem:[%s1 + $0x5d8] sm:$0xff]
  %v213 = vld [vmem:[%s1 + $0x5e0] sm:$0xff]
  %v214 = vld [vmem:[%s1 + $0x5e8] sm:$0xff]
  %v215 = vld [vmem:[%s1 + $0x5f0] sm:$0xff]
  %v216 = vld [vmem:[%s1 + $0x5f8] sm:$0xff]
  %v217 = vld [vmem:[%s1 + $0x600] sm:$0xff]
  %v218 = vld [vmem:[%s1 + $0x608] sm:$0xff]
  %v219 = vld [vmem:[%s1 + $0x610] sm:$0xff]
  %v220 = vld [vmem:[%s1 + $0x618] sm:$0xff]
  %v221 = vld [vmem:[%s1 + $0x620] sm:$0xff]
  %v222 = vld [vmem:[%s1 + $0x628] sm:$0xff]
  %v223 = vld [vmem:[%s1 + $0x630] sm:$0xff]
  %v224 = vld [vmem:[%s1 + $0x638] sm:$0xff]
  %v225 = vld [vmem:[%s1 + $0x640] sm:$0xff]
  %v226 = vld [vmem:[%s1 + $0x648] sm:$0xff]
  %v227 = vld [vmem:[%s1 + $0x650] sm:$0xff]
  %v228 = vld [vmem:[%s1 + $0x658] sm:$0xff]
  %v229 = vld [vmem:[%s1 + $0x660] sm:$0xff]
  %v230 = vld [vmem:[%s1 + $0x668] sm:$0xff]
  %v231 = vld [vmem:[%s1 + $0x670] sm:$0xff]
  %v232 = vld [vmem:[%s1 + $0x678] sm:$0xff]
  %v233 = vld [vmem:[%s1 + $0x680] sm:$0xff]
  %v234 = vld [vmem:[%s1 + $0x688] sm:$0xff]
  %v235 = vld [vmem:[%s1 + $0x690] sm:$0xff]
  %v236 = vld [vmem:[%s1 + $0x698] sm:$0xff]
  %v237 = vld [vmem:[%s1 + $0x6a0] sm:$0xff]
  %v238 = vld [vmem:[%s1 + $0x6a8] sm:$0xff]
  %v239 = vld [vmem:[%s1 + $0x6b0] sm:$0xff]
  %v240 = vld [vmem:[%s1 + $0x6b8] sm:$0xff]
  %v241 = vld [vmem:[%s1 + $0x6c0] sm:$0xff]
  %v242 = vld [vmem:[%s1 + $0x6c8] sm:$0xff]
  %v243 = vld [vmem:[%s1 + $0x6d0] sm:$0xff]
  %v244 = vld [vmem:[%s1 + $0x6d8] sm:$0xff]
  %v245 = vld [vmem:[%s1 + $0x6e0] sm:$0xff]
  %v246 = vld [vmem:[%s1 + $0x6e8] sm:$0xff]
  %v247 = vld [vmem:[%s1 + $0x6f0] sm:$0xff]
  %v248 = vld [vmem:[%s1 + $0x6f8] sm:$0xff]
  %v249 = vld [vmem:[%s1 + $0x700] sm:$0xff]
  %v250 = vld [vmem:[%s1 + $0x708] sm:$0xff]
  %v251 = vld [vmem:[%s1 + $0x710] sm:$0xff]
  %v252 = vld [vmem:[%s1 + $0x718] sm:$0xff]
  %v253 = vld [vmem:[%s1 + $0x720] sm:$0xff]
  %v254 = vld [vmem:[%s1 + $0x728] sm:$0xff]
  %v255 = vld [vmem:[%s1 + $0x730] sm:$0xff]
  %v256 = vld [vmem:[%s1 + $0x738] sm:$0xff]
  %v257 = vld [vmem:[%s1 + $0x740] sm:$0xff]
  %v258 = vld [vmem:[%s1 + $0x748] sm:$0xff]
  %v259 = vld [vmem:[%s1 + $0x750] sm:$0xff]
  %v260 = vld [vmem:[%s1 + $0x758] sm:$0xff]
  %v261 = vld [vmem:[%s1 + $0x760] sm:$0xff]
  %v262 = vld [vmem:[%s1 + $0x768] sm:$0xff]
  %v263 = vld [vmem:[%s1 + $0x770] sm:$0xff]
  %v264 = vld [vmem:[%s1 + $0x778] sm:$0xff]
  %v265 = vld [vmem:[%s1 + $0x780] sm:$0xff]
  %v266 = vld [vmem:[%s1 + $0x788] sm:$0xff]
  %v267 = vld [vmem:[%s1 + $0x790] sm:$0xff]
  %v268 = vld [vmem:[%s1 + $0x798] sm:$0xff]
  %v269 = vld [vmem:[%s1 + $0x7a0] sm:$0xff]
  %v270 = vld [vmem:[%s1 + $0x7a8] sm:$0xff]
  %v271 = vld [vmem:[%s1 + $0x7b0] sm:$0xff]
  %v272 = vld [vmem:[%s1 + $0x7b8] sm:$0xff]
  %v273 = vld [vmem:[%s1 + $0x7c0] sm:$0xff]
  %v274 = vld [vmem:[%s1 + $0x7c8] sm:$0xff]
  %v275 = vld [vmem:[%s1 + $0x7d0] sm:$0xff]
  %v276 = vld [vmem:[%s1 + $0x7d8] sm:$0xff]
  %v277 = vld [vmem:[%s1 + $0x7e0] sm:$0xff]
  %v278 = vld [vmem:[%s1 + $0x7e8] sm:$0xff]
  %v279 = vld [vmem:[%s1 + $0x7f0] sm:$0xff]
  %v280 = vld [vmem:[%s1 + $0x7f8] sm:$0xff]
  %v281 = vld [vmem:[%s1 + $0x800] sm:$0xff]
  %v282 = vld [vmem:[%s1 + $0x808] sm:$0xff]
  %v283 = vld [vmem:[%s1 + $0x810] sm:$0xff]
  %v284 = vld [vmem:[%s1 + $0x818] sm:$0xff]
  %v285 = vld [vmem:[%s1 + $0x820] sm:$0xff]
  %v286 = vld [vmem:[%s1 + $0x828] sm:$0xff]
  %v287 = vld [vmem:[%s1 + $0x830] sm:$0xff]
  %v288 = vld [vmem:[%s1 + $0x838] sm:$0xff]
  %v289 = vld [vmem:[%s1 + $0x840] sm:$0xff]
  %v290 = vld [vmem:[%s1 + $0x848] sm:$0xff]
  %v291 = vld [vmem:[%s1 + $0x850] sm:$0xff]
  %v292 = vld [vmem:[%s1 + $0x858] sm:$0xff]
  %v293 = vld [vmem:[%s1 + $0x860] sm:$0xff]
  %v294 = vld [vmem:[%s1 + $0x868] sm:$0xff]
  %v295 = vld [vmem:[%s1 + $0x870] sm:$0xff]
  %v296 = vld [vmem:[%s1 + $0x878] sm:$0xff]
  %v297 = vld [vmem:[%s1 + $0x880] sm:$0xff]
  %v298 = vld [vmem:[%s1 + $0x888] sm:$0xff]
  %v299 = vld [vmem:[%s1 + $0x890] sm:$0xff]
  %v300 = vld [vmem:[%s1 + $0x898] sm:$0xff]
  %v301 = vld [vmem:[%s1 + $0x8a0] sm:$0xff]
  %v302 = vld [vmem:[%s1 + $0x8a8] sm:$0xff]
  %v303 = vld [vmem:[%s1 + $0x8b0] sm:$0xff]
  %v304 = vld [vmem:[%s1 + $0x8b8] sm:$0xff]
  %v305 = vld [vmem:[%s1 + $0x8c0] sm:$0xff]
  %v306 = vld [vmem:[%s1 + $0x8c8] sm:$0xff]
  %v307 = vld [vmem:[%s1 + $0x8d0] sm:$0xff]
  %v308 = vld [vmem:[%s1 + $0x8d8] sm:$0xff]
  %v309 = vld [vmem:[%s1 + $0x8e0] sm:$0xff]
  %v310 = vld [vmem:[%s1 + $0x8e8] sm:$0xff]
  %v311 = vld [vmem:[%s1 + $0x8f0] sm:$0xff]
  %v312 = vld [vmem:[%s1 + $0x8f8] sm:$0xff]
  %v313 = vld [vmem:[%s1 + $0x900] sm:$0xff]
  %v314 = vld [vmem:[%s1 + $0x908] sm:$0xff]
  %v315 = vld [vmem:[%s1 + $0x910] sm:$0xff]
  %v316 = vld [vmem:[%s1 + $0x918] sm:$0xff]
  %v317 = vld [vmem:[%s1 + $0x920] sm:$0xff]
  %v318 = vld [vmem:[%s1 + $0x928] sm:$0xff]
  %v319 = vld [vmem:[%s1 + $0x930] sm:$0xff]
  %v320 = vld [vmem:[%s1 + $0x938] sm:$0xff]
  %v321 = vld [vmem:[%s1 + $0x940] sm:$0xff]
  %v322 = vld [vmem:[%s1 + $0x948] sm:$0xff]
  %v323 = vld [vmem:[%s1 + $0x950] sm:$0xff]
  %v324 = vld [vmem:[%s1 + $0x958] sm:$0xff]
  %v325 = vld [vmem:[%s1 + $0x960] sm:$0xff]
  %v326 = vld [vmem:[%s1 + $0x968] sm:$0xff]
  %v327 = vld [vmem:[%s1 + $0x970] sm:$0xff]
  %v328 = vld [vmem:[%s1 + $0x978] sm:$0xff]
  %v329 = vld [vmem:[%s1 + $0x980] sm:$0xff]
  %v330 = vld [vmem:[%s1 + $0x988] sm:$0xff]
  %v331 = vld [vmem:[%s1 + $0x990] sm:$0xff]
  %v332 = vld [vmem:[%s1 + $0x998] sm:$0xff]
  %v333 = vld [vmem:[%s1 + $0x9a0] sm:$0xff]
  %v334 = vld [vmem:[%s1 + $0x9a8] sm:$0xff]
  %v335 = vld [vmem:[%s1 + $0x9b0] sm:$0xff]
  %v336 = vld [vmem:[%s1 + $0x9b8] sm:$0xff]
  %v337 = vld [vmem:[%s1 + $0x9c0] sm:$0xff]
  %v338 = vld [vmem:[%s1 + $0x9c8] sm:$0xff]
  %v339 = vld [vmem:[%s1 + $0x9d0] sm:$0xff]
  %v340 = vld [vmem:[%s1 + $0x9d8] sm:$0xff]
  %v341 = vld [vmem:[%s1 + $0x9e0] sm:$0xff]
  %v342 = vld [vmem:[%s1 + $0x9e8] sm:$0xff]
  %v343 = vld [vmem:[%s1 + $0x9f0] sm:$0xff]
  %v344 = vld [vmem:[%s1 + $0x9f8] sm:$0xff]
  %v345 = vld [vmem:[%s1 + $0xa00] sm:$0xff]
  %v346 = vld [vmem:[%s1 + $0xa08] sm:$0xff]
  %v347 = vld [vmem:[%s1 + $0xa10] sm:$0xff]
  %v348 = vld [vmem:[%s1 + $0xa18] sm:$0xff]
  %v349 = vld [vmem:[%s1 + $0xa20] sm:$0xff]
  %v350 = vld [vmem:[%s1 + $0xa28] sm:$0xff]
  %v351 = vld [vmem:[%s1 + $0xa30] sm:$0xff]
  %v352 = vld [vmem:[%s1 + $0xa38] sm:$0xff]
  %v353 = vld [vmem:[%s1 + $0xa40] sm:$0xff]
  %v354 = vld [vmem:[%s1 + $0xa48] sm:$0xff]
  %v355 = vld [vmem:[%s1 + $0xa50] sm:$0xff]
  %v356 = vld [vmem:[%s1 + $0xa58] sm:$0xff]
  %v357 = vld [vmem:[%s1 + $0xa60] sm:$0xff]
  %v358 = vld [vmem:[%s1 + $0xa68] sm:$0xff]
  %v359 = vld [vmem:[%s1 + $0xa70] sm:$0xff]
  %v360 = vld [vmem:[%s1 + $0xa78] sm:$0xff]
  %v361 = vld [vmem:[%s1 + $0xa80] sm:$0xff]
  %v362 = vld [vmem:[%s1 + $0xa88] sm:$0xff]
  %v363 = vld [vmem:[%s1 + $0xa90] sm:$0xff]
  %v364 = vld [vmem:[%s1 + $0xa98] sm:$0xff]
  %v365 = vld [vmem:[%s1 + $0xaa0] sm:$0xff]
  %v366 = vld [vmem:[%s1 + $0xaa8] sm:$0xff]
  %v367 = vld [vmem:[%s1 + $0xab0] sm:$0xff]
  %v368 = vld [vmem:[%s1 + $0xab8] sm:$0xff]
  %v369 = vld [vmem:[%s1 + $0xac0] sm:$0xff]
  %v370 = vld [vmem:[%s1 + $0xac8] sm:$0xff]
  %v371 = vld [vmem:[%s1 + $0xad0] sm:$0xff]
  %v372 = vld [vmem:[%s1 + $0xad8] sm:$0xff]
  %v373 = vld [vmem:[%s1 + $0xae0] sm:$0xff]
  %v374 = vld [vmem:[%s1 + $0xae8] sm:$0xff]
  %v375 = vld [vmem:[%s1 + $0xaf0] sm:$0xff]
  %v376 = vld [vmem:[%s1 + $0xaf8] sm:$0xff]
  %v377 = vld [vmem:[%s1 + $0xb00] sm:$0xff]
  %v378 = vld [vmem:[%s1 + $0xb08] sm:$0xff]
  %v379 = vld [vmem:[%s1 + $0xb10] sm:$0xff]
  %v380 = vld [vmem:[%s1 + $0xb18] sm:$0xff]
  %v381 = vld [vmem:[%s1 + $0xb20] sm:$0xff]
  %v382 = vld [vmem:[%s1 + $0xb28] sm:$0xff]
  %v383 = vld [vmem:[%s1 + $0xb30] sm:$0xff]
  %v384 = vld [vmem:[%s1 + $0xb38] sm:$0xff]
  %v385 = vld [vmem:[%s1 + $0xb40] sm:$0xff]
  %v386 = vld [vmem:[%s1 + $0xb48] sm:$0xff]
  %v387 = vld [vmem:[%s1 + $0xb50] sm:$0xff]
  %v388 = vld [vmem:[%s1 + $0xb58] sm:$0xff]
  %v389 = vld [vmem:[%s1 + $0xb60] sm:$0xff]
  %v390 = vld [vmem:[%s1 + $0xb68] sm:$0xff]
  %v391 = vld [vmem:[%s1 + $0xb70] sm:$0xff]
  %v392 = vld [vmem:[%s1 + $0xb78] sm:$0xff]
  %v393 = vld [vmem:[%s1 + $0xb80] sm:$0xff]
  %v394 = vld [vmem:[%s1 + $0xb88] sm:$0xff]
  %v395 = vld [vmem:[%s1 + $0xb90] sm:$0xff]
  %v396 = vld [vmem:[%s1 + $0xb98] sm:$0xff]
  %v397 = vld [vmem:[%s1 + $0xba0] sm:$0xff]
  %v398 = vld [vmem:[%s1 + $0xba8] sm:$0xff]
  %v399 = vld [vmem:[%s1 + $0xbb0] sm:$0xff]
  %v400 = vld [vmem:[%s1 + $0xbb8] sm:$0xff]
  %v401 = vld [vmem:[%s1 + $0xbc0] sm:$0xff]
  %v402 = vld [vmem:[%s1 + $0xbc8] sm:$0xff]
  %v403 = vld [vmem:[%s1 + $0xbd0] sm:$0xff]
  %v404 = vld [vmem:[%s1 + $0xbd8] sm:$0xff]
  %v405 = vld [vmem:[%s1 + $0xbe0] sm:$0xff]
  %v406 = vld [vmem:[%s1 + $0xbe8] sm:$0xff]
  %v407 = vld [vmem:[%s1 + $0xbf0] sm:$0xff]
  %v408 = vld [vmem:[%s1 + $0xbf8] sm:$0xff]
  %v409 = vld [vmem:[%s1 + $0xc00] sm:$0xff]
  %v410 = vld [vmem:[%s1 + $0xc08] sm:$0xff]
  %v411 = vld [vmem:[%s1 + $0xc10] sm:$0xff]
  %v412 = vld [vmem:[%s1 + $0xc18] sm:$0xff]
  %v413 = vld [vmem:[%s1 + $0xc20] sm:$0xff]
  %v414 = vld [vmem:[%s1 + $0xc28] sm:$0xff]
  %v415 = vld [vmem:[%s1 + $0xc30] sm:$0xff]
  %v416 = vld [vmem:[%s1 + $0xc38] sm:$0xff]
  %v417 = vld [vmem:[%s2] sm:$0x3]
  %v419 = vlaneseq
  %v420 = vshrl.u32 %v419, 7
  %v421 = vsub.s32 0, %v420
  %v422 = vrot.slane %v417, %v421
  %v423 = vlaneseq
  %v424 = vshrl.u32 %v423, 7
  %v425 = vsub.s32 1, %v424
  %v426 = vrot.slane %v417, %v425
  %v433 = vcombine.high %v21, %v21
  %v435 = vunpack.c.l.s4 1966171168
  %v436 = vunpack.c.0.s8 %v435
  %v437 = vlaneseq
  %v438 = vshrl.u32 %v437, 7
  %v439 = vsub.s32 %v436, %v438
  %v440 = vrot.slane %v21, %v439
  %v442 = vunpack.c.l.s4 1966171168
  %v443 = vunpack.c.0.s8 %v442
  %v444 = vlaneseq
  %v445 = vshrl.u32 %v444, 7
  %v446 = vsub.s32 %v443, %v445
  %v447 = vrot.slane %v433, %v446
  %v448 = vcombine.high %v440, %v440
  %v449 = vcombine.high %v447, %v447
  %v451 = vunpack.c.l.s4 1966171168
  %v452 = vunpack.c.0.s8 %v451
  %v453 = vlaneseq
  %v454 = vshrl.u32 %v453, 7
  %v455 = vsub.s32 %v452, %v454
  %v456 = vrot.slane %v440, %v455
  %v458 = vunpack.c.l.s4 1966171168
  %v459 = vunpack.c.0.s8 %v458
  %v460 = vlaneseq
  %v461 = vshrl.u32 %v460, 7
  %v462 = vsub.s32 %v459, %v461
  %v463 = vrot.slane %v447, %v462
  %v465 = vunpack.c.l.s4 1966171168
  %v466 = vunpack.c.0.s8 %v465
  %v467 = vlaneseq
  %v468 = vshrl.u32 %v467, 7
  %v469 = vsub.s32 %v466, %v468
  %v470 = vrot.slane %v448, %v469
  %v472 = vunpack.c.l.s4 1966171168
  %v473 = vunpack.c.0.s8 %v472
  %v474 = vlaneseq
  %v475 = vshrl.u32 %v474, 7
  %v476 = vsub.s32 %v473, %v475
  %v477 = vrot.slane %v449, %v476
  %v478 = vcombine.high %v456, %v456
  %v479 = vcombine.high %v463, %v463
  %v480 = vcombine.high %v470, %v470
  %v481 = vcombine.high %v477, %v477
  %v482 = vcombine.high %v22, %v22
  %v484 = vunpack.c.l.s4 1966171168
  %v485 = vunpack.c.0.s8 %v484
  %v486 = vlaneseq
  %v487 = vshrl.u32 %v486, 7
  %v488 = vsub.s32 %v485, %v487
  %v489 = vrot.slane %v22, %v488
  %v491 = vunpack.c.l.s4 1966171168
  %v492 = vunpack.c.0.s8 %v491
  %v493 = vlaneseq
  %v494 = vshrl.u32 %v493, 7
  %v495 = vsub.s32 %v492, %v494
  %v496 = vrot.slane %v482, %v495
  %v497 = vcombine.high %v489, %v489
  %v498 = vcombine.high %v496, %v496
  %v500 = vunpack.c.l.s4 1966171168
  %v501 = vunpack.c.0.s8 %v500
  %v502 = vlaneseq
  %v503 = vshrl.u32 %v502, 7
  %v504 = vsub.s32 %v501, %v503
  %v505 = vrot.slane %v489, %v504
  %v507 = vunpack.c.l.s4 1966171168
  %v508 = vunpack.c.0.s8 %v507
  %v509 = vlaneseq
  %v510 = vshrl.u32 %v509, 7
  %v511 = vsub.s32 %v508, %v510
  %v512 = vrot.slane %v496, %v511
  %v514 = vunpack.c.l.s4 1966171168
  %v515 = vunpack.c.0.s8 %v514
  %v516 = vlaneseq
  %v517 = vshrl.u32 %v516, 7
  %v518 = vsub.s32 %v515, %v517
  %v519 = vrot.slane %v497, %v518
  %v521 = vunpack.c.l.s4 1966171168
  %v522 = vunpack.c.0.s8 %v521
  %v523 = vlaneseq
  %v524 = vshrl.u32 %v523, 7
  %v525 = vsub.s32 %v522, %v524
  %v526 = vrot.slane %v498, %v525
  %v527 = vcombine.high %v505, %v505
  %v528 = vcombine.high %v512, %v512
  %v529 = vcombine.high %v519, %v519
  %v530 = vcombine.high %v526, %v526
  %v531 = vcombine.high %v23, %v23
  %v533 = vunpack.c.l.s4 1966171168
  %v534 = vunpack.c.0.s8 %v533
  %v535 = vlaneseq
  %v536 = vshrl.u32 %v535, 7
  %v537 = vsub.s32 %v534, %v536
  %v538 = vrot.slane %v23, %v537
  %v540 = vunpack.c.l.s4 1966171168
  %v541 = vunpack.c.0.s8 %v540
  %v542 = vlaneseq
  %v543 = vshrl.u32 %v542, 7
  %v544 = vsub.s32 %v541, %v543
  %v545 = vrot.slane %v531, %v544
  %v546 = vcombine.high %v538, %v538
  %v547 = vcombine.high %v545, %v545
  %v549 = vunpack.c.l.s4 1966171168
  %v550 = vunpack.c.0.s8 %v549
  %v551 = vlaneseq
  %v552 = vshrl.u32 %v551, 7
  %v553 = vsub.s32 %v550, %v552
  %v554 = vrot.slane %v538, %v553
  %v556 = vunpack.c.l.s4 1966171168
  %v557 = vunpack.c.0.s8 %v556
  %v558 = vlaneseq
  %v559 = vshrl.u32 %v558, 7
  %v560 = vsub.s32 %v557, %v559
  %v561 = vrot.slane %v545, %v560
  %v563 = vunpack.c.l.s4 1966171168
  %v564 = vunpack.c.0.s8 %v563
  %v565 = vlaneseq
  %v566 = vshrl.u32 %v565, 7
  %v567 = vsub.s32 %v564, %v566
  %v568 = vrot.slane %v546, %v567
  %v570 = vunpack.c.l.s4 1966171168
  %v571 = vunpack.c.0.s8 %v570
  %v572 = vlaneseq
  %v573 = vshrl.u32 %v572, 7
  %v574 = vsub.s32 %v571, %v573
  %v575 = vrot.slane %v547, %v574
  %v576 = vcombine.high %v554, %v554
  %v577 = vcombine.high %v561, %v561
  %v578 = vcombine.high %v568, %v568
  %v579 = vcombine.high %v575, %v575
  %v581 = vunpack.c.l.s4 1966171168
  %v582 = vunpack.c.0.s8 %v581
  %v583 = vlaneseq
  %v584 = vshrl.u32 %v583, 7
  %v585 = vsub.s32 %v582, %v584
  %v586 = vrot.slane %v24, %v585
  %v588 = vunpack.c.l.s4 1966171168
  %v589 = vunpack.c.0.s8 %v588
  %v590 = vlaneseq
  %v591 = vshrl.u32 %v590, 7
  %v592 = vsub.s32 %v589, %v591
  %v593 = vrot.slane %v586, %v592
  %v1010 = vunpack.c.l.b16 %v25
  %v1011 = vunpack.c.h.b16 %v25
  %v1012 = vunpack.c.l.b16 %v26
  %v1013 = vunpack.c.h.b16 %v26
  %v1014 = vunpack.c.l.b16 %v27
  %v1015 = vunpack.c.h.b16 %v27
  %v1016 = vunpack.c.l.b16 %v28
  %v1017 = vunpack.c.h.b16 %v28
  %v1018 = vunpack.c.l.b16 %v29
  %v1019 = vunpack.c.h.b16 %v29
  %v1020 = vunpack.c.l.b16 %v30
  %v1021 = vunpack.c.h.b16 %v30
  %v1022 = vunpack.c.l.b16 %v31
  %v1023 = vunpack.c.h.b16 %v31
  %v1024 = vunpack.c.l.b16 %v32
  %v1025 = vunpack.c.h.b16 %v32
  %v1026 = vunpack.c.l.b16 %v33
  %v1027 = vunpack.c.h.b16 %v33
  %v1028 = vunpack.c.l.b16 %v34
  %v1029 = vunpack.c.h.b16 %v34
  %v1030 = vunpack.c.l.b16 %v35
  %v1031 = vunpack.c.h.b16 %v35
  %v1032 = vunpack.c.l.b16 %v36
  %v1033 = vunpack.c.h.b16 %v36
  %v1034 = vunpack.c.l.b16 %v37
  %v1035 = vunpack.c.h.b16 %v37
  %v1036 = vunpack.c.l.b16 %v38
  %v1037 = vunpack.c.h.b16 %v38
  %v1038 = vunpack.c.l.b16 %v39
  %v1039 = vunpack.c.h.b16 %v39
  %v1040 = vunpack.c.l.b16 %v40
  %v1041 = vunpack.c.h.b16 %v40
  %v1042 = vunpack.c.l.b16 %v41
  %v1043 = vunpack.c.h.b16 %v41
  %v1044 = vunpack.c.l.b16 %v42
  %v1045 = vunpack.c.h.b16 %v42
  %v1046 = vunpack.c.l.b16 %v43
  %v1047 = vunpack.c.h.b16 %v43
  %v1048 = vunpack.c.l.b16 %v44
  %v1049 = vunpack.c.h.b16 %v44
  %v1050 = vunpack.c.l.b16 %v45
  %v1051 = vunpack.c.h.b16 %v45
  %v1052 = vunpack.c.l.b16 %v46
  %v1053 = vunpack.c.h.b16 %v46
  %v1054 = vunpack.c.l.b16 %v47
  %v1055 = vunpack.c.h.b16 %v47
  %v1056 = vunpack.c.l.b16 %v48
  %v1057 = vunpack.c.h.b16 %v48
  %v1058 = vunpack.c.l.b16 %v49
  %v1059 = vunpack.c.h.b16 %v49
  %v1060 = vunpack.c.l.b16 %v50
  %v1061 = vunpack.c.h.b16 %v50
  %v1062 = vunpack.c.l.b16 %v51
  %v1063 = vunpack.c.h.b16 %v51
  %v1064 = vunpack.c.l.b16 %v52
  %v1065 = vunpack.c.h.b16 %v52
  %v1066 = vunpack.c.l.b16 %v53
  %v1067 = vunpack.c.h.b16 %v53
  %v1068 = vunpack.c.l.b16 %v54
  %v1069 = vunpack.c.h.b16 %v54
  %v1070 = vunpack.c.l.b16 %v55
  %v1071 = vunpack.c.h.b16 %v55
  %v1072 = vunpack.c.l.b16 %v56
  %v1073 = vunpack.c.h.b16 %v56
  %v1074 = vunpack.c.l.b16 %v57
  %v1075 = vunpack.c.h.b16 %v57
  %v1076 = vunpack.c.l.b16 %v58
  %v1077 = vunpack.c.h.b16 %v58
  %v1078 = vunpack.c.l.b16 %v59
  %v1079 = vunpack.c.h.b16 %v59
  %v1080 = vunpack.c.l.b16 %v60
  %v1081 = vunpack.c.h.b16 %v60
  %v1082 = vunpack.c.l.b16 %v61
  %v1083 = vunpack.c.h.b16 %v61
  %v1084 = vunpack.c.l.b16 %v62
  %v1085 = vunpack.c.h.b16 %v62
  %v1086 = vunpack.c.l.b16 %v63
  %v1087 = vunpack.c.h.b16 %v63
  %v1088 = vunpack.c.l.b16 %v64
  %v1089 = vunpack.c.h.b16 %v64
  %v1090 = vunpack.c.l.b16 %v65
  %v1091 = vunpack.c.h.b16 %v65
  %v1092 = vunpack.c.l.b16 %v66
  %v1093 = vunpack.c.h.b16 %v66
  %v1094 = vunpack.c.l.b16 %v67
  %v1095 = vunpack.c.h.b16 %v67
  %v1096 = vunpack.c.l.b16 %v68
  %v1097 = vunpack.c.h.b16 %v68
  %v1098 = vunpack.c.l.b16 %v69
  %v1099 = vunpack.c.h.b16 %v69
  %v1100 = vunpack.c.l.b16 %v70
  %v1101 = vunpack.c.h.b16 %v70
  %v1102 = vunpack.c.l.b16 %v71
  %v1103 = vunpack.c.h.b16 %v71
  %v1104 = vunpack.c.l.b16 %v72
  %v1105 = vunpack.c.h.b16 %v72
  %v1106 = vunpack.c.l.b16 %v73
  %v1107 = vunpack.c.h.b16 %v73
  %v1108 = vunpack.c.l.b16 %v74
  %v1109 = vunpack.c.h.b16 %v74
  %v1110 = vunpack.c.l.b16 %v75
  %v1111 = vunpack.c.h.b16 %v75
  %v1112 = vunpack.c.l.b16 %v76
  %v1113 = vunpack.c.h.b16 %v76
  %v1114 = vunpack.c.l.b16 %v77
  %v1115 = vunpack.c.h.b16 %v77
  %v1116 = vunpack.c.l.b16 %v78
  %v1117 = vunpack.c.h.b16 %v78
  %v1118 = vunpack.c.l.b16 %v79
  %v1119 = vunpack.c.h.b16 %v79
  %v1120 = vunpack.c.l.b16 %v80
  %v1121 = vunpack.c.h.b16 %v80
  %v1122 = vunpack.c.l.b16 %v81
  %v1123 = vunpack.c.h.b16 %v81
  %v1124 = vunpack.c.l.b16 %v82
  %v1125 = vunpack.c.h.b16 %v82
  %v1126 = vunpack.c.l.b16 %v83
  %v1127 = vunpack.c.h.b16 %v83
  %v1128 = vunpack.c.l.b16 %v84
  %v1129 = vunpack.c.h.b16 %v84
  %v1130 = vunpack.c.l.b16 %v85
  %v1131 = vunpack.c.h.b16 %v85
  %v1132 = vunpack.c.l.b16 %v86
  %v1133 = vunpack.c.h.b16 %v86
  %v1134 = vunpack.c.l.b16 %v87
  %v1135 = vunpack.c.h.b16 %v87
  %v1136 = vunpack.c.l.b16 %v88
  %v1137 = vunpack.c.h.b16 %v88
  %v1138 = vunpack.c.l.b16 %v89
  %v1139 = vunpack.c.h.b16 %v89
  %v1140 = vunpack.c.l.b16 %v90
  %v1141 = vunpack.c.h.b16 %v90
  %v1142 = vunpack.c.l.b16 %v91
  %v1143 = vunpack.c.h.b16 %v91
  %v1144 = vunpack.c.l.b16 %v92
  %v1145 = vunpack.c.h.b16 %v92
  %v1146 = vunpack.c.l.b16 %v93
  %v1147 = vunpack.c.h.b16 %v93
  %v1148 = vunpack.c.l.b16 %v94
  %v1149 = vunpack.c.h.b16 %v94
  %v1150 = vunpack.c.l.b16 %v95
  %v1151 = vunpack.c.h.b16 %v95
  %v1152 = vunpack.c.l.b16 %v96
  %v1153 = vunpack.c.h.b16 %v96
  %v1154 = vunpack.c.l.b16 %v97
  %v1155 = vunpack.c.h.b16 %v97
  %v1156 = vunpack.c.l.b16 %v98
  %v1157 = vunpack.c.h.b16 %v98
  %v1158 = vunpack.c.l.b16 %v99
  %v1159 = vunpack.c.h.b16 %v99
  %v1160 = vunpack.c.l.b16 %v100
  %v1161 = vunpack.c.h.b16 %v100
  %v1162 = vunpack.c.l.b16 %v101
  %v1163 = vunpack.c.h.b16 %v101
  %v1164 = vunpack.c.l.b16 %v102
  %v1165 = vunpack.c.h.b16 %v102
  %v1166 = vunpack.c.l.b16 %v103
  %v1167 = vunpack.c.h.b16 %v103
  %v1168 = vunpack.c.l.b16 %v104
  %v1169 = vunpack.c.h.b16 %v104
  %v1170 = vunpack.c.l.b16 %v105
  %v1171 = vunpack.c.h.b16 %v105
  %v1172 = vunpack.c.l.b16 %v106
  %v1173 = vunpack.c.h.b16 %v106
  %v1174 = vunpack.c.l.b16 %v107
  %v1175 = vunpack.c.h.b16 %v107
  %v1176 = vunpack.c.l.b16 %v108
  %v1177 = vunpack.c.h.b16 %v108
  %v1178 = vunpack.c.l.b16 %v109
  %v1179 = vunpack.c.h.b16 %v109
  %v1180 = vunpack.c.l.b16 %v110
  %v1181 = vunpack.c.h.b16 %v110
  %v1182 = vunpack.c.l.b16 %v111
  %v1183 = vunpack.c.h.b16 %v111
  %v1184 = vunpack.c.l.b16 %v112
  %v1185 = vunpack.c.h.b16 %v112
  %v1186 = vunpack.c.l.b16 %v113
  %v1187 = vunpack.c.h.b16 %v113
  %v1188 = vunpack.c.l.b16 %v114
  %v1189 = vunpack.c.h.b16 %v114
  %v1190 = vunpack.c.l.b16 %v115
  %v1191 = vunpack.c.h.b16 %v115
  %v1192 = vunpack.c.l.b16 %v116
  %v1193 = vunpack.c.h.b16 %v116
  %v1194 = vunpack.c.l.b16 %v117
  %v1195 = vunpack.c.h.b16 %v117
  %v1196 = vunpack.c.l.b16 %v118
  %v1197 = vunpack.c.h.b16 %v118
  %v1198 = vunpack.c.l.b16 %v119
  %v1199 = vunpack.c.h.b16 %v119
  %v1200 = vunpack.c.l.b16 %v120
  %v1201 = vunpack.c.h.b16 %v120
  %v1202 = vunpack.c.l.b16 %v121
  %v1203 = vunpack.c.h.b16 %v121
  %v1204 = vunpack.c.l.b16 %v122
  %v1205 = vunpack.c.h.b16 %v122
  %v1206 = vunpack.c.l.b16 %v123
  %v1207 = vunpack.c.h.b16 %v123
  %v1208 = vunpack.c.l.b16 %v124
  %v1209 = vunpack.c.h.b16 %v124
  %v1210 = vunpack.c.l.b16 %v125
  %v1211 = vunpack.c.h.b16 %v125
  %v1212 = vunpack.c.l.b16 %v126
  %v1213 = vunpack.c.h.b16 %v126
  %v1214 = vunpack.c.l.b16 %v127
  %v1215 = vunpack.c.h.b16 %v127
  %v1216 = vunpack.c.l.b16 %v128
  %v1217 = vunpack.c.h.b16 %v128
  %v1218 = vunpack.c.l.b16 %v129
  %v1219 = vunpack.c.h.b16 %v129
  %v1220 = vunpack.c.l.b16 %v130
  %v1221 = vunpack.c.h.b16 %v130
  %v1222 = vunpack.c.l.b16 %v131
  %v1223 = vunpack.c.h.b16 %v131
  %v1224 = vunpack.c.l.b16 %v132
  %v1225 = vunpack.c.h.b16 %v132
  %v1226 = vunpack.c.l.b16 %v133
  %v1227 = vunpack.c.h.b16 %v133
  %v1228 = vunpack.c.l.b16 %v134
  %v1229 = vunpack.c.h.b16 %v134
  %v1230 = vunpack.c.l.b16 %v135
  %v1231 = vunpack.c.h.b16 %v135
  %v1232 = vunpack.c.l.b16 %v136
  %v1233 = vunpack.c.h.b16 %v136
  %v1234 = vunpack.c.l.b16 %v137
  %v1235 = vunpack.c.h.b16 %v137
  %v1236 = vunpack.c.l.b16 %v138
  %v1237 = vunpack.c.h.b16 %v138
  %v1238 = vunpack.c.l.b16 %v139
  %v1239 = vunpack.c.h.b16 %v139
  %v1240 = vunpack.c.l.b16 %v140
  %v1241 = vunpack.c.h.b16 %v140
  %v1242 = vunpack.c.l.b16 %v141
  %v1243 = vunpack.c.h.b16 %v141
  %v1244 = vunpack.c.l.b16 %v142
  %v1245 = vunpack.c.h.b16 %v142
  %v1246 = vunpack.c.l.b16 %v143
  %v1247 = vunpack.c.h.b16 %v143
  %v1248 = vunpack.c.l.b16 %v144
  %v1249 = vunpack.c.h.b16 %v144
  %v1250 = vunpack.c.l.b16 %v145
  %v1251 = vunpack.c.h.b16 %v145
  %v1252 = vunpack.c.l.b16 %v146
  %v1253 = vunpack.c.h.b16 %v146
  %v1254 = vunpack.c.l.b16 %v147
  %v1255 = vunpack.c.h.b16 %v147
  %v1256 = vunpack.c.l.b16 %v148
  %v1257 = vunpack.c.h.b16 %v148
  %v1258 = vunpack.c.l.b16 %v149
  %v1259 = vunpack.c.h.b16 %v149
  %v1260 = vunpack.c.l.b16 %v150
  %v1261 = vunpack.c.h.b16 %v150
  %v1262 = vunpack.c.l.b16 %v151
  %v1263 = vunpack.c.h.b16 %v151
  %v1264 = vunpack.c.l.b16 %v152
  %v1265 = vunpack.c.h.b16 %v152
  %v1266 = vunpack.c.l.b16 %v153
  %v1267 = vunpack.c.h.b16 %v153
  %v1268 = vunpack.c.l.b16 %v154
  %v1269 = vunpack.c.h.b16 %v154
  %v1270 = vunpack.c.l.b16 %v155
  %v1271 = vunpack.c.h.b16 %v155
  %v1272 = vunpack.c.l.b16 %v156
  %v1273 = vunpack.c.h.b16 %v156
  %v1274 = vunpack.c.l.b16 %v157
  %v1275 = vunpack.c.h.b16 %v157
  %v1276 = vunpack.c.l.b16 %v158
  %v1277 = vunpack.c.h.b16 %v158
  %v1278 = vunpack.c.l.b16 %v159
  %v1279 = vunpack.c.h.b16 %v159
  %v1280 = vunpack.c.l.b16 %v160
  %v1281 = vunpack.c.h.b16 %v160
  %v1282 = vunpack.c.l.b16 %v161
  %v1283 = vunpack.c.h.b16 %v161
  %v1284 = vunpack.c.l.b16 %v162
  %v1285 = vunpack.c.h.b16 %v162
  %v1286 = vunpack.c.l.b16 %v163
  %v1287 = vunpack.c.h.b16 %v163
  %v1288 = vunpack.c.l.b16 %v164
  %v1289 = vunpack.c.h.b16 %v164
  %v1290 = vunpack.c.l.b16 %v165
  %v1291 = vunpack.c.h.b16 %v165
  %v1292 = vunpack.c.l.b16 %v166
  %v1293 = vunpack.c.h.b16 %v166
  %v1294 = vunpack.c.l.b16 %v167
  %v1295 = vunpack.c.h.b16 %v167
  %v1296 = vunpack.c.l.b16 %v168
  %v1297 = vunpack.c.h.b16 %v168
  %v1298 = vunpack.c.l.b16 %v169
  %v1299 = vunpack.c.h.b16 %v169
  %v1300 = vunpack.c.l.b16 %v170
  %v1301 = vunpack.c.h.b16 %v170
  %v1302 = vunpack.c.l.b16 %v171
  %v1303 = vunpack.c.h.b16 %v171
  %v1304 = vunpack.c.l.b16 %v172
  %v1305 = vunpack.c.h.b16 %v172
  %v1306 = vunpack.c.l.b16 %v173
  %v1307 = vunpack.c.h.b16 %v173
  %v1308 = vunpack.c.l.b16 %v174
  %v1309 = vunpack.c.h.b16 %v174
  %v1310 = vunpack.c.l.b16 %v175
  %v1311 = vunpack.c.h.b16 %v175
  %v1312 = vunpack.c.l.b16 %v176
  %v1313 = vunpack.c.h.b16 %v176
  %v1314 = vunpack.c.l.b16 %v177
  %v1315 = vunpack.c.h.b16 %v177
  %v1316 = vunpack.c.l.b16 %v178
  %v1317 = vunpack.c.h.b16 %v178
  %v1318 = vunpack.c.l.b16 %v179
  %v1319 = vunpack.c.h.b16 %v179
  %v1320 = vunpack.c.l.b16 %v180
  %v1321 = vunpack.c.h.b16 %v180
  %v1322 = vunpack.c.l.b16 %v181
  %v1323 = vunpack.c.h.b16 %v181
  %v1324 = vunpack.c.l.b16 %v182
  %v1325 = vunpack.c.h.b16 %v182
  %v1326 = vunpack.c.l.b16 %v183
  %v1327 = vunpack.c.h.b16 %v183
  %v1328 = vunpack.c.l.b16 %v184
  %v1329 = vunpack.c.h.b16 %v184
  %v1330 = vunpack.c.l.b16 %v185
  %v1331 = vunpack.c.h.b16 %v185
  %v1332 = vunpack.c.l.b16 %v186
  %v1333 = vunpack.c.h.b16 %v186
  %v1334 = vunpack.c.l.b16 %v187
  %v1335 = vunpack.c.h.b16 %v187
  %v1336 = vunpack.c.l.b16 %v188
  %v1337 = vunpack.c.h.b16 %v188
  %v1338 = vunpack.c.l.b16 %v189
  %v1339 = vunpack.c.h.b16 %v189
  %v1340 = vunpack.c.l.b16 %v190
  %v1341 = vunpack.c.h.b16 %v190
  %v1342 = vunpack.c.l.b16 %v191
  %v1343 = vunpack.c.h.b16 %v191
  %v1344 = vunpack.c.l.b16 %v192
  %v1345 = vunpack.c.h.b16 %v192
  %v1346 = vunpack.c.l.b16 %v193
  %v1347 = vunpack.c.h.b16 %v193
  %v1348 = vunpack.c.l.b16 %v194
  %v1349 = vunpack.c.h.b16 %v194
  %v1350 = vunpack.c.l.b16 %v195
  %v1351 = vunpack.c.h.b16 %v195
  %v1352 = vunpack.c.l.b16 %v196
  %v1353 = vunpack.c.h.b16 %v196
  %v1354 = vunpack.c.l.b16 %v197
  %v1355 = vunpack.c.h.b16 %v197
  %v1356 = vunpack.c.l.b16 %v198
  %v1357 = vunpack.c.h.b16 %v198
  %v1358 = vunpack.c.l.b16 %v199
  %v1359 = vunpack.c.h.b16 %v199
  %v1360 = vunpack.c.l.b16 %v200
  %v1361 = vunpack.c.h.b16 %v200
  %v1362 = vunpack.c.l.b16 %v201
  %v1363 = vunpack.c.h.b16 %v201
  %v1364 = vunpack.c.l.b16 %v202
  %v1365 = vunpack.c.h.b16 %v202
  %v1366 = vunpack.c.l.b16 %v203
  %v1367 = vunpack.c.h.b16 %v203
  %v1368 = vunpack.c.l.b16 %v204
  %v1369 = vunpack.c.h.b16 %v204
  %v1370 = vunpack.c.l.b16 %v205
  %v1371 = vunpack.c.h.b16 %v205
  %v1372 = vunpack.c.l.b16 %v206
  %v1373 = vunpack.c.h.b16 %v206
  %v1374 = vunpack.c.l.b16 %v207
  %v1375 = vunpack.c.h.b16 %v207
  %v1376 = vunpack.c.l.b16 %v208
  %v1377 = vunpack.c.h.b16 %v208
  %v1378 = vunpack.c.l.b16 %v209
  %v1379 = vunpack.c.h.b16 %v209
  %v1380 = vunpack.c.l.b16 %v210
  %v1381 = vunpack.c.h.b16 %v210
  %v1382 = vunpack.c.l.b16 %v211
  %v1383 = vunpack.c.h.b16 %v211
  %v1384 = vunpack.c.l.b16 %v212
  %v1385 = vunpack.c.h.b16 %v212
  %v1386 = vunpack.c.l.b16 %v213
  %v1387 = vunpack.c.h.b16 %v213
  %v1388 = vunpack.c.l.b16 %v214
  %v1389 = vunpack.c.h.b16 %v214
  %v1390 = vunpack.c.l.b16 %v215
  %v1391 = vunpack.c.h.b16 %v215
  %v1392 = vunpack.c.l.b16 %v216
  %v1393 = vunpack.c.h.b16 %v216
  %v1394 = vunpack.c.l.b16 %v217
  %v1395 = vunpack.c.h.b16 %v217
  %v1396 = vunpack.c.l.b16 %v218
  %v1397 = vunpack.c.h.b16 %v218
  %v1398 = vunpack.c.l.b16 %v219
  %v1399 = vunpack.c.h.b16 %v219
  %v1400 = vunpack.c.l.b16 %v220
  %v1401 = vunpack.c.h.b16 %v220
  %v1402 = vunpack.c.l.b16 %v221
  %v1403 = vunpack.c.h.b16 %v221
  %v1404 = vunpack.c.l.b16 %v222
  %v1405 = vunpack.c.h.b16 %v222
  %v1406 = vunpack.c.l.b16 %v223
  %v1407 = vunpack.c.h.b16 %v223
  %v1408 = vunpack.c.l.b16 %v224
  %v1409 = vunpack.c.h.b16 %v224
  %v1410 = vunpack.c.l.b16 %v225
  %v1411 = vunpack.c.h.b16 %v225
  %v1412 = vunpack.c.l.b16 %v226
  %v1413 = vunpack.c.h.b16 %v226
  %v1414 = vunpack.c.l.b16 %v227
  %v1415 = vunpack.c.h.b16 %v227
  %v1416 = vunpack.c.l.b16 %v228
  %v1417 = vunpack.c.h.b16 %v228
  %v1418 = vunpack.c.l.b16 %v229
  %v1419 = vunpack.c.h.b16 %v229
  %v1420 = vunpack.c.l.b16 %v230
  %v1421 = vunpack.c.h.b16 %v230
  %v1422 = vunpack.c.l.b16 %v231
  %v1423 = vunpack.c.h.b16 %v231
  %v1424 = vunpack.c.l.b16 %v232
  %v1425 = vunpack.c.h.b16 %v232
  %v1426 = vunpack.c.l.b16 %v233
  %v1427 = vunpack.c.h.b16 %v233
  %v1428 = vunpack.c.l.b16 %v234
  %v1429 = vunpack.c.h.b16 %v234
  %v1430 = vunpack.c.l.b16 %v235
  %v1431 = vunpack.c.h.b16 %v235
  %v1432 = vunpack.c.l.b16 %v236
  %v1433 = vunpack.c.h.b16 %v236
  %v1434 = vunpack.c.l.b16 %v237
  %v1435 = vunpack.c.h.b16 %v237
  %v1436 = vunpack.c.l.b16 %v238
  %v1437 = vunpack.c.h.b16 %v238
  %v1438 = vunpack.c.l.b16 %v239
  %v1439 = vunpack.c.h.b16 %v239
  %v1440 = vunpack.c.l.b16 %v240
  %v1441 = vunpack.c.h.b16 %v240
  %v1442 = vunpack.c.l.b16 %v241
  %v1443 = vunpack.c.h.b16 %v241
  %v1444 = vunpack.c.l.b16 %v242
  %v1445 = vunpack.c.h.b16 %v242
  %v1446 = vunpack.c.l.b16 %v243
  %v1447 = vunpack.c.h.b16 %v243
  %v1448 = vunpack.c.l.b16 %v244
  %v1449 = vunpack.c.h.b16 %v244
  %v1450 = vunpack.c.l.b16 %v245
  %v1451 = vunpack.c.h.b16 %v245
  %v1452 = vunpack.c.l.b16 %v246
  %v1453 = vunpack.c.h.b16 %v246
  %v1454 = vunpack.c.l.b16 %v247
  %v1455 = vunpack.c.h.b16 %v247
  %v1456 = vunpack.c.l.b16 %v248
  %v1457 = vunpack.c.h.b16 %v248
  %v1458 = vunpack.c.l.b16 %v249
  %v1459 = vunpack.c.h.b16 %v249
  %v1460 = vunpack.c.l.b16 %v250
  %v1461 = vunpack.c.h.b16 %v250
  %v1462 = vunpack.c.l.b16 %v251
  %v1463 = vunpack.c.h.b16 %v251
  %v1464 = vunpack.c.l.b16 %v252
  %v1465 = vunpack.c.h.b16 %v252
  %v1466 = vunpack.c.l.b16 %v253
  %v1467 = vunpack.c.h.b16 %v253
  %v1468 = vunpack.c.l.b16 %v254
  %v1469 = vunpack.c.h.b16 %v254
  %v1470 = vunpack.c.l.b16 %v255
  %v1471 = vunpack.c.h.b16 %v255
  %v1472 = vunpack.c.l.b16 %v256
  %v1473 = vunpack.c.h.b16 %v256
  %v1474 = vunpack.c.l.b16 %v257
  %v1475 = vunpack.c.h.b16 %v257
  %v1476 = vunpack.c.l.b16 %v258
  %v1477 = vunpack.c.h.b16 %v258
  %v1478 = vunpack.c.l.b16 %v259
  %v1479 = vunpack.c.h.b16 %v259
  %v1480 = vunpack.c.l.b16 %v260
  %v1481 = vunpack.c.h.b16 %v260
  %v1482 = vunpack.c.l.b16 %v261
  %v1483 = vunpack.c.h.b16 %v261
  %v1484 = vunpack.c.l.b16 %v262
  %v1485 = vunpack.c.h.b16 %v262
  %v1486 = vunpack.c.l.b16 %v263
  %v1487 = vunpack.c.h.b16 %v263
  %v1488 = vunpack.c.l.b16 %v264
  %v1489 = vunpack.c.h.b16 %v264
  %v1490 = vunpack.c.l.b16 %v265
  %v1491 = vunpack.c.h.b16 %v265
  %v1492 = vunpack.c.l.b16 %v266
  %v1493 = vunpack.c.h.b16 %v266
  %v1494 = vunpack.c.l.b16 %v267
  %v1495 = vunpack.c.h.b16 %v267
  %v1496 = vunpack.c.l.b16 %v268
  %v1497 = vunpack.c.h.b16 %v268
  %v1498 = vunpack.c.l.b16 %v269
  %v1499 = vunpack.c.h.b16 %v269
  %v1500 = vunpack.c.l.b16 %v270
  %v1501 = vunpack.c.h.b16 %v270
  %v1502 = vunpack.c.l.b16 %v271
  %v1503 = vunpack.c.h.b16 %v271
  %v1504 = vunpack.c.l.b16 %v272
  %v1505 = vunpack.c.h.b16 %v272
  %v1506 = vunpack.c.l.b16 %v273
  %v1507 = vunpack.c.h.b16 %v273
  %v1508 = vunpack.c.l.b16 %v274
  %v1509 = vunpack.c.h.b16 %v274
  %v1510 = vunpack.c.l.b16 %v275
  %v1511 = vunpack.c.h.b16 %v275
  %v1512 = vunpack.c.l.b16 %v276
  %v1513 = vunpack.c.h.b16 %v276
  %v1514 = vunpack.c.l.b16 %v277
  %v1515 = vunpack.c.h.b16 %v277
  %v1516 = vunpack.c.l.b16 %v278
  %v1517 = vunpack.c.h.b16 %v278
  %v1518 = vunpack.c.l.b16 %v279
  %v1519 = vunpack.c.h.b16 %v279
  %v1520 = vunpack.c.l.b16 %v280
  %v1521 = vunpack.c.h.b16 %v280
  %v1522 = vunpack.c.l.b16 %v281
  %v1523 = vunpack.c.h.b16 %v281
  %v1524 = vunpack.c.l.b16 %v282
  %v1525 = vunpack.c.h.b16 %v282
  %v1526 = vunpack.c.l.b16 %v283
  %v1527 = vunpack.c.h.b16 %v283
  %v1528 = vunpack.c.l.b16 %v284
  %v1529 = vunpack.c.h.b16 %v284
  %v1530 = vunpack.c.l.b16 %v285
  %v1531 = vunpack.c.h.b16 %v285
  %v1532 = vunpack.c.l.b16 %v286
  %v1533 = vunpack.c.h.b16 %v286
  %v1534 = vunpack.c.l.b16 %v287
  %v1535 = vunpack.c.h.b16 %v287
  %v1536 = vunpack.c.l.b16 %v288
  %v1537 = vunpack.c.h.b16 %v288
  %v1538 = vunpack.c.l.b16 %v289
  %v1539 = vunpack.c.h.b16 %v289
  %v1540 = vunpack.c.l.b16 %v290
  %v1541 = vunpack.c.h.b16 %v290
  %v1542 = vunpack.c.l.b16 %v291
  %v1543 = vunpack.c.h.b16 %v291
  %v1544 = vunpack.c.l.b16 %v292
  %v1545 = vunpack.c.h.b16 %v292
  %v1546 = vunpack.c.l.b16 %v293
  %v1547 = vunpack.c.h.b16 %v293
  %v1548 = vunpack.c.l.b16 %v294
  %v1549 = vunpack.c.h.b16 %v294
  %v1550 = vunpack.c.l.b16 %v295
  %v1551 = vunpack.c.h.b16 %v295
  %v1552 = vunpack.c.l.b16 %v296
  %v1553 = vunpack.c.h.b16 %v296
  %v1554 = vunpack.c.l.b16 %v297
  %v1555 = vunpack.c.h.b16 %v297
  %v1556 = vunpack.c.l.b16 %v298
  %v1557 = vunpack.c.h.b16 %v298
  %v1558 = vunpack.c.l.b16 %v299
  %v1559 = vunpack.c.h.b16 %v299
  %v1560 = vunpack.c.l.b16 %v300
  %v1561 = vunpack.c.h.b16 %v300
  %v1562 = vunpack.c.l.b16 %v301
  %v1563 = vunpack.c.h.b16 %v301
  %v1564 = vunpack.c.l.b16 %v302
  %v1565 = vunpack.c.h.b16 %v302
  %v1566 = vunpack.c.l.b16 %v303
  %v1567 = vunpack.c.h.b16 %v303
  %v1568 = vunpack.c.l.b16 %v304
  %v1569 = vunpack.c.h.b16 %v304
  %v1570 = vunpack.c.l.b16 %v305
  %v1571 = vunpack.c.h.b16 %v305
  %v1572 = vunpack.c.l.b16 %v306
  %v1573 = vunpack.c.h.b16 %v306
  %v1574 = vunpack.c.l.b16 %v307
  %v1575 = vunpack.c.h.b16 %v307
  %v1576 = vunpack.c.l.b16 %v308
  %v1577 = vunpack.c.h.b16 %v308
  %v1578 = vunpack.c.l.b16 %v309
  %v1579 = vunpack.c.h.b16 %v309
  %v1580 = vunpack.c.l.b16 %v310
  %v1581 = vunpack.c.h.b16 %v310
  %v1582 = vunpack.c.l.b16 %v311
  %v1583 = vunpack.c.h.b16 %v311
  %v1584 = vunpack.c.l.b16 %v312
  %v1585 = vunpack.c.h.b16 %v312
  %v1586 = vunpack.c.l.b16 %v313
  %v1587 = vunpack.c.h.b16 %v313
  %v1588 = vunpack.c.l.b16 %v314
  %v1589 = vunpack.c.h.b16 %v314
  %v1590 = vunpack.c.l.b16 %v315
  %v1591 = vunpack.c.h.b16 %v315
  %v1592 = vunpack.c.l.b16 %v316
  %v1593 = vunpack.c.h.b16 %v316
  %v1594 = vunpack.c.l.b16 %v317
  %v1595 = vunpack.c.h.b16 %v317
  %v1596 = vunpack.c.l.b16 %v318
  %v1597 = vunpack.c.h.b16 %v318
  %v1598 = vunpack.c.l.b16 %v319
  %v1599 = vunpack.c.h.b16 %v319
  %v1600 = vunpack.c.l.b16 %v320
  %v1601 = vunpack.c.h.b16 %v320
  %v1602 = vunpack.c.l.b16 %v321
  %v1603 = vunpack.c.h.b16 %v321
  %v1604 = vunpack.c.l.b16 %v322
  %v1605 = vunpack.c.h.b16 %v322
  %v1606 = vunpack.c.l.b16 %v323
  %v1607 = vunpack.c.h.b16 %v323
  %v1608 = vunpack.c.l.b16 %v324
  %v1609 = vunpack.c.h.b16 %v324
  %v1610 = vunpack.c.l.b16 %v325
  %v1611 = vunpack.c.h.b16 %v325
  %v1612 = vunpack.c.l.b16 %v326
  %v1613 = vunpack.c.h.b16 %v326
  %v1614 = vunpack.c.l.b16 %v327
  %v1615 = vunpack.c.h.b16 %v327
  %v1616 = vunpack.c.l.b16 %v328
  %v1617 = vunpack.c.h.b16 %v328
  %v1618 = vunpack.c.l.b16 %v329
  %v1619 = vunpack.c.h.b16 %v329
  %v1620 = vunpack.c.l.b16 %v330
  %v1621 = vunpack.c.h.b16 %v330
  %v1622 = vunpack.c.l.b16 %v331
  %v1623 = vunpack.c.h.b16 %v331
  %v1624 = vunpack.c.l.b16 %v332
  %v1625 = vunpack.c.h.b16 %v332
  %v1626 = vunpack.c.l.b16 %v333
  %v1627 = vunpack.c.h.b16 %v333
  %v1628 = vunpack.c.l.b16 %v334
  %v1629 = vunpack.c.h.b16 %v334
  %v1630 = vunpack.c.l.b16 %v335
  %v1631 = vunpack.c.h.b16 %v335
  %v1632 = vunpack.c.l.b16 %v336
  %v1633 = vunpack.c.h.b16 %v336
  %v1634 = vunpack.c.l.b16 %v337
  %v1635 = vunpack.c.h.b16 %v337
  %v1636 = vunpack.c.l.b16 %v338
  %v1637 = vunpack.c.h.b16 %v338
  %v1638 = vunpack.c.l.b16 %v339
  %v1639 = vunpack.c.h.b16 %v339
  %v1640 = vunpack.c.l.b16 %v340
  %v1641 = vunpack.c.h.b16 %v340
  %v1642 = vunpack.c.l.b16 %v341
  %v1643 = vunpack.c.h.b16 %v341
  %v1644 = vunpack.c.l.b16 %v342
  %v1645 = vunpack.c.h.b16 %v342
  %v1646 = vunpack.c.l.b16 %v343
  %v1647 = vunpack.c.h.b16 %v343
  %v1648 = vunpack.c.l.b16 %v344
  %v1649 = vunpack.c.h.b16 %v344
  %v1650 = vunpack.c.l.b16 %v345
  %v1651 = vunpack.c.h.b16 %v345
  %v1652 = vunpack.c.l.b16 %v346
  %v1653 = vunpack.c.h.b16 %v346
  %v1654 = vunpack.c.l.b16 %v347
  %v1655 = vunpack.c.h.b16 %v347
  %v1656 = vunpack.c.l.b16 %v348
  %v1657 = vunpack.c.h.b16 %v348
  %v1658 = vunpack.c.l.b16 %v349
  %v1659 = vunpack.c.h.b16 %v349
  %v1660 = vunpack.c.l.b16 %v350
  %v1661 = vunpack.c.h.b16 %v350
  %v1662 = vunpack.c.l.b16 %v351
  %v1663 = vunpack.c.h.b16 %v351
  %v1664 = vunpack.c.l.b16 %v352
  %v1665 = vunpack.c.h.b16 %v352
  %v1666 = vunpack.c.l.b16 %v353
  %v1667 = vunpack.c.h.b16 %v353
  %v1668 = vunpack.c.l.b16 %v354
  %v1669 = vunpack.c.h.b16 %v354
  %v1670 = vunpack.c.l.b16 %v355
  %v1671 = vunpack.c.h.b16 %v355
  %v1672 = vunpack.c.l.b16 %v356
  %v1673 = vunpack.c.h.b16 %v356
  %v1674 = vunpack.c.l.b16 %v357
  %v1675 = vunpack.c.h.b16 %v357
  %v1676 = vunpack.c.l.b16 %v358
  %v1677 = vunpack.c.h.b16 %v358
  %v1678 = vunpack.c.l.b16 %v359
  %v1679 = vunpack.c.h.b16 %v359
  %v1680 = vunpack.c.l.b16 %v360
  %v1681 = vunpack.c.h.b16 %v360
  %v1682 = vunpack.c.l.b16 %v361
  %v1683 = vunpack.c.h.b16 %v361
  %v1684 = vunpack.c.l.b16 %v362
  %v1685 = vunpack.c.h.b16 %v362
  %v1686 = vunpack.c.l.b16 %v363
  %v1687 = vunpack.c.h.b16 %v363
  %v1688 = vunpack.c.l.b16 %v364
  %v1689 = vunpack.c.h.b16 %v364
  %v1690 = vunpack.c.l.b16 %v365
  %v1691 = vunpack.c.h.b16 %v365
  %v1692 = vunpack.c.l.b16 %v366
  %v1693 = vunpack.c.h.b16 %v366
  %v1694 = vunpack.c.l.b16 %v367
  %v1695 = vunpack.c.h.b16 %v367
  %v1696 = vunpack.c.l.b16 %v368
  %v1697 = vunpack.c.h.b16 %v368
  %v1698 = vunpack.c.l.b16 %v369
  %v1699 = vunpack.c.h.b16 %v369
  %v1700 = vunpack.c.l.b16 %v370
  %v1701 = vunpack.c.h.b16 %v370
  %v1702 = vunpack.c.l.b16 %v371
  %v1703 = vunpack.c.h.b16 %v371
  %v1704 = vunpack.c.l.b16 %v372
  %v1705 = vunpack.c.h.b16 %v372
  %v1706 = vunpack.c.l.b16 %v373
  %v1707 = vunpack.c.h.b16 %v373
  %v1708 = vunpack.c.l.b16 %v374
  %v1709 = vunpack.c.h.b16 %v374
  %v1710 = vunpack.c.l.b16 %v375
  %v1711 = vunpack.c.h.b16 %v375
  %v1712 = vunpack.c.l.b16 %v376
  %v1713 = vunpack.c.h.b16 %v376
  %v1714 = vunpack.c.l.b16 %v377
  %v1715 = vunpack.c.h.b16 %v377
  %v1716 = vunpack.c.l.b16 %v378
  %v1717 = vunpack.c.h.b16 %v378
  %v1718 = vunpack.c.l.b16 %v379
  %v1719 = vunpack.c.h.b16 %v379
  %v1720 = vunpack.c.l.b16 %v380
  %v1721 = vunpack.c.h.b16 %v380
  %v1722 = vunpack.c.l.b16 %v381
  %v1723 = vunpack.c.h.b16 %v381
  %v1724 = vunpack.c.l.b16 %v382
  %v1725 = vunpack.c.h.b16 %v382
  %v1726 = vunpack.c.l.b16 %v383
  %v1727 = vunpack.c.h.b16 %v383
  %v1728 = vunpack.c.l.b16 %v384
  %v1729 = vunpack.c.h.b16 %v384
  %v1730 = vunpack.c.l.b16 %v385
  %v1731 = vunpack.c.h.b16 %v385
  %v1732 = vunpack.c.l.b16 %v386
  %v1733 = vunpack.c.h.b16 %v386
  %v1734 = vunpack.c.l.b16 %v387
  %v1735 = vunpack.c.h.b16 %v387
  %v1736 = vunpack.c.l.b16 %v388
  %v1737 = vunpack.c.h.b16 %v388
  %v1738 = vunpack.c.l.b16 %v389
  %v1739 = vunpack.c.h.b16 %v389
  %v1740 = vunpack.c.l.b16 %v390
  %v1741 = vunpack.c.h.b16 %v390
  %v1742 = vunpack.c.l.b16 %v391
  %v1743 = vunpack.c.h.b16 %v391
  %v1744 = vunpack.c.l.b16 %v392
  %v1745 = vunpack.c.h.b16 %v392
  %v1746 = vunpack.c.l.b16 %v393
  %v1747 = vunpack.c.h.b16 %v393
  %v1748 = vunpack.c.l.b16 %v394
  %v1749 = vunpack.c.h.b16 %v394
  %v1750 = vunpack.c.l.b16 %v395
  %v1751 = vunpack.c.h.b16 %v395
  %v1752 = vunpack.c.l.b16 %v396
  %v1753 = vunpack.c.h.b16 %v396
  %v1754 = vunpack.c.l.b16 %v397
  %v1755 = vunpack.c.h.b16 %v397
  %v1756 = vunpack.c.l.b16 %v398
  %v1757 = vunpack.c.h.b16 %v398
  %v1758 = vunpack.c.l.b16 %v399
  %v1759 = vunpack.c.h.b16 %v399
  %v1760 = vunpack.c.l.b16 %v400
  %v1761 = vunpack.c.h.b16 %v400
  %v1762 = vunpack.c.l.b16 %v401
  %v1763 = vunpack.c.h.b16 %v401
  %v1764 = vunpack.c.l.b16 %v402
  %v1765 = vunpack.c.h.b16 %v402
  %v1766 = vunpack.c.l.b16 %v403
  %v1767 = vunpack.c.h.b16 %v403
  %v1768 = vunpack.c.l.b16 %v404
  %v1769 = vunpack.c.h.b16 %v404
  %v1770 = vunpack.c.l.b16 %v405
  %v1771 = vunpack.c.h.b16 %v405
  %v1772 = vunpack.c.l.b16 %v406
  %v1773 = vunpack.c.h.b16 %v406
  %v1774 = vunpack.c.l.b16 %v407
  %v1775 = vunpack.c.h.b16 %v407
  %v1776 = vunpack.c.l.b16 %v408
  %v1777 = vunpack.c.h.b16 %v408
  %v1778 = vunpack.c.l.b16 %v409
  %v1779 = vunpack.c.h.b16 %v409
  %v1780 = vunpack.c.l.b16 %v410
  %v1781 = vunpack.c.h.b16 %v410
  %v1782 = vunpack.c.l.b16 %v411
  %v1783 = vunpack.c.h.b16 %v411
  %v1784 = vunpack.c.l.b16 %v412
  %v1785 = vunpack.c.h.b16 %v412
  %v1786 = vunpack.c.l.b16 %v413
  %v1787 = vunpack.c.h.b16 %v413
  %v1788 = vunpack.c.l.b16 %v414
  %v1789 = vunpack.c.h.b16 %v414
  %v1790 = vunpack.c.l.b16 %v415
  %v1791 = vunpack.c.h.b16 %v415
  %v1792 = vunpack.c.l.b16 %v416
  %v1793 = vunpack.c.h.b16 %v416
  %v1794 = vpack.c.b16 %v1012, %v1010
  %v1795 = vpack.c.b16 %v1013, %v1011
  %v1796 = vpack.c.b16 %v1016, %v1014
  %v1797 = vpack.c.b16 %v1017, %v1015
  %v1798 = vpack.c.b16 %v1020, %v1018
  %v1799 = vpack.c.b16 %v1021, %v1019
  %v1800 = vpack.c.b16 %v1024, %v1022
  %v1801 = vpack.c.b16 %v1025, %v1023
  %v1802 = vpack.c.b16 %v1028, %v1026
  %v1803 = vpack.c.b16 %v1029, %v1027
  %v1804 = vpack.c.b16 %v1032, %v1030
  %v1805 = vpack.c.b16 %v1033, %v1031
  %v1806 = vpack.c.b16 %v1036, %v1034
  %v1807 = vpack.c.b16 %v1037, %v1035
  %v1808 = vpack.c.b16 %v1040, %v1038
  %v1809 = vpack.c.b16 %v1041, %v1039
  %v1810 = vpack.c.b16 %v1044, %v1042
  %v1811 = vpack.c.b16 %v1045, %v1043
  %v1812 = vpack.c.b16 %v1048, %v1046
  %v1813 = vpack.c.b16 %v1049, %v1047
  %v1814 = vpack.c.b16 %v1052, %v1050
  %v1815 = vpack.c.b16 %v1053, %v1051
  %v1816 = vpack.c.b16 %v1056, %v1054
  %v1817 = vpack.c.b16 %v1057, %v1055
  %v1818 = vpack.c.b16 %v1060, %v1058
  %v1819 = vpack.c.b16 %v1061, %v1059
  %v1820 = vpack.c.b16 %v1064, %v1062
  %v1821 = vpack.c.b16 %v1065, %v1063
  %v1822 = vpack.c.b16 %v1068, %v1066
  %v1823 = vpack.c.b16 %v1069, %v1067
  %v1824 = vpack.c.b16 %v1072, %v1070
  %v1825 = vpack.c.b16 %v1073, %v1071
  %v1826 = vpack.c.b16 %v1076, %v1074
  %v1827 = vpack.c.b16 %v1077, %v1075
  %v1828 = vpack.c.b16 %v1080, %v1078
  %v1829 = vpack.c.b16 %v1081, %v1079
  %v1830 = vpack.c.b16 %v1084, %v1082
  %v1831 = vpack.c.b16 %v1085, %v1083
  %v1832 = vpack.c.b16 %v1088, %v1086
  %v1833 = vpack.c.b16 %v1089, %v1087
  %v1834 = vpack.c.b16 %v1092, %v1090
  %v1835 = vpack.c.b16 %v1093, %v1091
  %v1836 = vpack.c.b16 %v1096, %v1094
  %v1837 = vpack.c.b16 %v1097, %v1095
  %v1838 = vpack.c.b16 %v1100, %v1098
  %v1839 = vpack.c.b16 %v1101, %v1099
  %v1840 = vpack.c.b16 %v1104, %v1102
  %v1841 = vpack.c.b16 %v1105, %v1103
  %v1842 = vpack.c.b16 %v1108, %v1106
  %v1843 = vpack.c.b16 %v1109, %v1107
  %v1844 = vpack.c.b16 %v1112, %v1110
  %v1845 = vpack.c.b16 %v1113, %v1111
  %v1846 = vpack.c.b16 %v1116, %v1114
  %v1847 = vpack.c.b16 %v1117, %v1115
  %v1848 = vpack.c.b16 %v1120, %v1118
  %v1849 = vpack.c.b16 %v1121, %v1119
  %v1850 = vpack.c.b16 %v1124, %v1122
  %v1851 = vpack.c.b16 %v1125, %v1123
  %v1852 = vpack.c.b16 %v1128, %v1126
  %v1853 = vpack.c.b16 %v1129, %v1127
  %v1854 = vpack.c.b16 %v1132, %v1130
  %v1855 = vpack.c.b16 %v1133, %v1131
  %v1856 = vpack.c.b16 %v1136, %v1134
  %v1857 = vpack.c.b16 %v1137, %v1135
  %v1858 = vpack.c.b16 %v1140, %v1138
  %v1859 = vpack.c.b16 %v1141, %v1139
  %v1860 = vpack.c.b16 %v1144, %v1142
  %v1861 = vpack.c.b16 %v1145, %v1143
  %v1862 = vpack.c.b16 %v1148, %v1146
  %v1863 = vpack.c.b16 %v1149, %v1147
  %v1864 = vpack.c.b16 %v1152, %v1150
  %v1865 = vpack.c.b16 %v1153, %v1151
  %v1866 = vpack.c.b16 %v1156, %v1154
  %v1867 = vpack.c.b16 %v1157, %v1155
  %v1868 = vpack.c.b16 %v1160, %v1158
  %v1869 = vpack.c.b16 %v1161, %v1159
  %v1870 = vpack.c.b16 %v1164, %v1162
  %v1871 = vpack.c.b16 %v1165, %v1163
  %v1872 = vpack.c.b16 %v1168, %v1166
  %v1873 = vpack.c.b16 %v1169, %v1167
  %v1874 = vpack.c.b16 %v1172, %v1170
  %v1875 = vpack.c.b16 %v1173, %v1171
  %v1876 = vpack.c.b16 %v1176, %v1174
  %v1877 = vpack.c.b16 %v1177, %v1175
  %v1878 = vpack.c.b16 %v1180, %v1178
  %v1879 = vpack.c.b16 %v1181, %v1179
  %v1880 = vpack.c.b16 %v1184, %v1182
  %v1881 = vpack.c.b16 %v1185, %v1183
  %v1882 = vpack.c.b16 %v1188, %v1186
  %v1883 = vpack.c.b16 %v1189, %v1187
  %v1884 = vpack.c.b16 %v1192, %v1190
  %v1885 = vpack.c.b16 %v1193, %v1191
  %v1886 = vpack.c.b16 %v1196, %v1194
  %v1887 = vpack.c.b16 %v1197, %v1195
  %v1888 = vpack.c.b16 %v1200, %v1198
  %v1889 = vpack.c.b16 %v1201, %v1199
  %v1890 = vpack.c.b16 %v1204, %v1202
  %v1891 = vpack.c.b16 %v1205, %v1203
  %v1892 = vpack.c.b16 %v1208, %v1206
  %v1893 = vpack.c.b16 %v1209, %v1207
  %v1894 = vpack.c.b16 %v1212, %v1210
  %v1895 = vpack.c.b16 %v1213, %v1211
  %v1896 = vpack.c.b16 %v1216, %v1214
  %v1897 = vpack.c.b16 %v1217, %v1215
  %v1898 = vpack.c.b16 %v1220, %v1218
  %v1899 = vpack.c.b16 %v1221, %v1219
  %v1900 = vpack.c.b16 %v1224, %v1222
  %v1901 = vpack.c.b16 %v1225, %v1223
  %v1902 = vpack.c.b16 %v1228, %v1226
  %v1903 = vpack.c.b16 %v1229, %v1227
  %v1904 = vpack.c.b16 %v1232, %v1230
  %v1905 = vpack.c.b16 %v1233, %v1231
  %v1906 = vpack.c.b16 %v1236, %v1234
  %v1907 = vpack.c.b16 %v1237, %v1235
  %v1908 = vpack.c.b16 %v1240, %v1238
  %v1909 = vpack.c.b16 %v1241, %v1239
  %v1910 = vpack.c.b16 %v1244, %v1242
  %v1911 = vpack.c.b16 %v1245, %v1243
  %v1912 = vpack.c.b16 %v1248, %v1246
  %v1913 = vpack.c.b16 %v1249, %v1247
  %v1914 = vpack.c.b16 %v1252, %v1250
  %v1915 = vpack.c.b16 %v1253, %v1251
  %v1916 = vpack.c.b16 %v1256, %v1254
  %v1917 = vpack.c.b16 %v1257, %v1255
  %v1918 = vpack.c.b16 %v1260, %v1258
  %v1919 = vpack.c.b16 %v1261, %v1259
  %v1920 = vpack.c.b16 %v1264, %v1262
  %v1921 = vpack.c.b16 %v1265, %v1263
  %v1922 = vpack.c.b16 %v1268, %v1266
  %v1923 = vpack.c.b16 %v1269, %v1267
  %v1924 = vpack.c.b16 %v1272, %v1270
  %v1925 = vpack.c.b16 %v1273, %v1271
  %v1926 = vpack.c.b16 %v1276, %v1274
  %v1927 = vpack.c.b16 %v1277, %v1275
  %v1928 = vpack.c.b16 %v1280, %v1278
  %v1929 = vpack.c.b16 %v1281, %v1279
  %v1930 = vpack.c.b16 %v1284, %v1282
  %v1931 = vpack.c.b16 %v1285, %v1283
  %v1932 = vpack.c.b16 %v1288, %v1286
  %v1933 = vpack.c.b16 %v1289, %v1287
  %v1934 = vpack.c.b16 %v1292, %v1290
  %v1935 = vpack.c.b16 %v1293, %v1291
  %v1936 = vpack.c.b16 %v1296, %v1294
  %v1937 = vpack.c.b16 %v1297, %v1295
  %v1938 = vpack.c.b16 %v1300, %v1298
  %v1939 = vpack.c.b16 %v1301, %v1299
  %v1940 = vpack.c.b16 %v1304, %v1302
  %v1941 = vpack.c.b16 %v1305, %v1303
  %v1942 = vpack.c.b16 %v1308, %v1306
  %v1943 = vpack.c.b16 %v1309, %v1307
  %v1944 = vpack.c.b16 %v1312, %v1310
  %v1945 = vpack.c.b16 %v1313, %v1311
  %v1946 = vpack.c.b16 %v1316, %v1314
  %v1947 = vpack.c.b16 %v1317, %v1315
  %v1948 = vpack.c.b16 %v1320, %v1318
  %v1949 = vpack.c.b16 %v1321, %v1319
  %v1950 = vpack.c.b16 %v1324, %v1322
  %v1951 = vpack.c.b16 %v1325, %v1323
  %v1952 = vpack.c.b16 %v1328, %v1326
  %v1953 = vpack.c.b16 %v1329, %v1327
  %v1954 = vpack.c.b16 %v1332, %v1330
  %v1955 = vpack.c.b16 %v1333, %v1331
  %v1956 = vpack.c.b16 %v1336, %v1334
  %v1957 = vpack.c.b16 %v1337, %v1335
  %v1958 = vpack.c.b16 %v1340, %v1338
  %v1959 = vpack.c.b16 %v1341, %v1339
  %v1960 = vpack.c.b16 %v1344, %v1342
  %v1961 = vpack.c.b16 %v1345, %v1343
  %v1962 = vpack.c.b16 %v1348, %v1346
  %v1963 = vpack.c.b16 %v1349, %v1347
  %v1964 = vpack.c.b16 %v1352, %v1350
  %v1965 = vpack.c.b16 %v1353, %v1351
  %v1966 = vpack.c.b16 %v1356, %v1354
  %v1967 = vpack.c.b16 %v1357, %v1355
  %v1968 = vpack.c.b16 %v1360, %v1358
  %v1969 = vpack.c.b16 %v1361, %v1359
  %v1970 = vpack.c.b16 %v1364, %v1362
  %v1971 = vpack.c.b16 %v1365, %v1363
  %v1972 = vpack.c.b16 %v1368, %v1366
  %v1973 = vpack.c.b16 %v1369, %v1367
  %v1974 = vpack.c.b16 %v1372, %v1370
  %v1975 = vpack.c.b16 %v1373, %v1371
  %v1976 = vpack.c.b16 %v1376, %v1374
  %v1977 = vpack.c.b16 %v1377, %v1375
  %v1978 = vpack.c.b16 %v1380, %v1378
  %v1979 = vpack.c.b16 %v1381, %v1379
  %v1980 = vpack.c.b16 %v1384, %v1382
  %v1981 = vpack.c.b16 %v1385, %v1383
  %v1982 = vpack.c.b16 %v1388, %v1386
  %v1983 = vpack.c.b16 %v1389, %v1387
  %v1984 = vpack.c.b16 %v1392, %v1390
  %v1985 = vpack.c.b16 %v1393, %v1391
  %v1986 = vpack.c.b16 %v1396, %v1394
  %v1987 = vpack.c.b16 %v1397, %v1395
  %v1988 = vpack.c.b16 %v1400, %v1398
  %v1989 = vpack.c.b16 %v1401, %v1399
  %v1990 = vpack.c.b16 %v1404, %v1402
  %v1991 = vpack.c.b16 %v1405, %v1403
  %v1992 = vpack.c.b16 %v1408, %v1406
  %v1993 = vpack.c.b16 %v1409, %v1407
  %v1994 = vpack.c.b16 %v1412, %v1410
  %v1995 = vpack.c.b16 %v1413, %v1411
  %v1996 = vpack.c.b16 %v1416, %v1414
  %v1997 = vpack.c.b16 %v1417, %v1415
  %v1998 = vpack.c.b16 %v1420, %v1418
  %v1999 = vpack.c.b16 %v1421, %v1419
  %v2000 = vpack.c.b16 %v1424, %v1422
  %v2001 = vpack.c.b16 %v1425, %v1423
  %v2002 = vpack.c.b16 %v1428, %v1426
  %v2003 = vpack.c.b16 %v1429, %v1427
  %v2004 = vpack.c.b16 %v1432, %v1430
  %v2005 = vpack.c.b16 %v1433, %v1431
  %v2006 = vpack.c.b16 %v1436, %v1434
  %v2007 = vpack.c.b16 %v1437, %v1435
  %v2008 = vpack.c.b16 %v1440, %v1438
  %v2009 = vpack.c.b16 %v1441, %v1439
  %v2010 = vpack.c.b16 %v1444, %v1442
  %v2011 = vpack.c.b16 %v1445, %v1443
  %v2012 = vpack.c.b16 %v1448, %v1446
  %v2013 = vpack.c.b16 %v1449, %v1447
  %v2014 = vpack.c.b16 %v1452, %v1450
  %v2015 = vpack.c.b16 %v1453, %v1451
  %v2016 = vpack.c.b16 %v1456, %v1454
  %v2017 = vpack.c.b16 %v1457, %v1455
  %v2018 = vpack.c.b16 %v1460, %v1458
  %v2019 = vpack.c.b16 %v1461, %v1459
  %v2020 = vpack.c.b16 %v1464, %v1462
  %v2021 = vpack.c.b16 %v1465, %v1463
  %v2022 = vpack.c.b16 %v1468, %v1466
  %v2023 = vpack.c.b16 %v1469, %v1467
  %v2024 = vpack.c.b16 %v1472, %v1470
  %v2025 = vpack.c.b16 %v1473, %v1471
  %v2026 = vpack.c.b16 %v1476, %v1474
  %v2027 = vpack.c.b16 %v1477, %v1475
  %v2028 = vpack.c.b16 %v1480, %v1478
  %v2029 = vpack.c.b16 %v1481, %v1479
  %v2030 = vpack.c.b16 %v1484, %v1482
  %v2031 = vpack.c.b16 %v1485, %v1483
  %v2032 = vpack.c.b16 %v1488, %v1486
  %v2033 = vpack.c.b16 %v1489, %v1487
  %v2034 = vpack.c.b16 %v1492, %v1490
  %v2035 = vpack.c.b16 %v1493, %v1491
  %v2036 = vpack.c.b16 %v1496, %v1494
  %v2037 = vpack.c.b16 %v1497, %v1495
  %v2038 = vpack.c.b16 %v1500, %v1498
  %v2039 = vpack.c.b16 %v1501, %v1499
  %v2040 = vpack.c.b16 %v1504, %v1502
  %v2041 = vpack.c.b16 %v1505, %v1503
  %v2042 = vpack.c.b16 %v1508, %v1506
  %v2043 = vpack.c.b16 %v1509, %v1507
  %v2044 = vpack.c.b16 %v1512, %v1510
  %v2045 = vpack.c.b16 %v1513, %v1511
  %v2046 = vpack.c.b16 %v1516, %v1514
  %v2047 = vpack.c.b16 %v1517, %v1515
  %v2048 = vpack.c.b16 %v1520, %v1518
  %v2049 = vpack.c.b16 %v1521, %v1519
  %v2050 = vpack.c.b16 %v1524, %v1522
  %v2051 = vpack.c.b16 %v1525, %v1523
  %v2052 = vpack.c.b16 %v1528, %v1526
  %v2053 = vpack.c.b16 %v1529, %v1527
  %v2054 = vpack.c.b16 %v1532, %v1530
  %v2055 = vpack.c.b16 %v1533, %v1531
  %v2056 = vpack.c.b16 %v1536, %v1534
  %v2057 = vpack.c.b16 %v1537, %v1535
  %v2058 = vpack.c.b16 %v1540, %v1538
  %v2059 = vpack.c.b16 %v1541, %v1539
  %v2060 = vpack.c.b16 %v1544, %v1542
  %v2061 = vpack.c.b16 %v1545, %v1543
  %v2062 = vpack.c.b16 %v1548, %v1546
  %v2063 = vpack.c.b16 %v1549, %v1547
  %v2064 = vpack.c.b16 %v1552, %v1550
  %v2065 = vpack.c.b16 %v1553, %v1551
  %v2066 = vpack.c.b16 %v1556, %v1554
  %v2067 = vpack.c.b16 %v1557, %v1555
  %v2068 = vpack.c.b16 %v1560, %v1558
  %v2069 = vpack.c.b16 %v1561, %v1559
  %v2070 = vpack.c.b16 %v1564, %v1562
  %v2071 = vpack.c.b16 %v1565, %v1563
  %v2072 = vpack.c.b16 %v1568, %v1566
  %v2073 = vpack.c.b16 %v1569, %v1567
  %v2074 = vpack.c.b16 %v1572, %v1570
  %v2075 = vpack.c.b16 %v1573, %v1571
  %v2076 = vpack.c.b16 %v1576, %v1574
  %v2077 = vpack.c.b16 %v1577, %v1575
  %v2078 = vpack.c.b16 %v1580, %v1578
  %v2079 = vpack.c.b16 %v1581, %v1579
  %v2080 = vpack.c.b16 %v1584, %v1582
  %v2081 = vpack.c.b16 %v1585, %v1583
  %v2082 = vpack.c.b16 %v1588, %v1586
  %v2083 = vpack.c.b16 %v1589, %v1587
  %v2084 = vpack.c.b16 %v1592, %v1590
  %v2085 = vpack.c.b16 %v1593, %v1591
  %v2086 = vpack.c.b16 %v1596, %v1594
  %v2087 = vpack.c.b16 %v1597, %v1595
  %v2088 = vpack.c.b16 %v1600, %v1598
  %v2089 = vpack.c.b16 %v1601, %v1599
  %v2090 = vpack.c.b16 %v1604, %v1602
  %v2091 = vpack.c.b16 %v1605, %v1603
  %v2092 = vpack.c.b16 %v1608, %v1606
  %v2093 = vpack.c.b16 %v1609, %v1607
  %v2094 = vpack.c.b16 %v1612, %v1610
  %v2095 = vpack.c.b16 %v1613, %v1611
  %v2096 = vpack.c.b16 %v1616, %v1614
  %v2097 = vpack.c.b16 %v1617, %v1615
  %v2098 = vpack.c.b16 %v1620, %v1618
  %v2099 = vpack.c.b16 %v1621, %v1619
  %v2100 = vpack.c.b16 %v1624, %v1622
  %v2101 = vpack.c.b16 %v1625, %v1623
  %v2102 = vpack.c.b16 %v1628, %v1626
  %v2103 = vpack.c.b16 %v1629, %v1627
  %v2104 = vpack.c.b16 %v1632, %v1630
  %v2105 = vpack.c.b16 %v1633, %v1631
  %v2106 = vpack.c.b16 %v1636, %v1634
  %v2107 = vpack.c.b16 %v1637, %v1635
  %v2108 = vpack.c.b16 %v1640, %v1638
  %v2109 = vpack.c.b16 %v1641, %v1639
  %v2110 = vpack.c.b16 %v1644, %v1642
  %v2111 = vpack.c.b16 %v1645, %v1643
  %v2112 = vpack.c.b16 %v1648, %v1646
  %v2113 = vpack.c.b16 %v1649, %v1647
  %v2114 = vpack.c.b16 %v1652, %v1650
  %v2115 = vpack.c.b16 %v1653, %v1651
  %v2116 = vpack.c.b16 %v1656, %v1654
  %v2117 = vpack.c.b16 %v1657, %v1655
  %v2118 = vpack.c.b16 %v1660, %v1658
  %v2119 = vpack.c.b16 %v1661, %v1659
  %v2120 = vpack.c.b16 %v1664, %v1662
  %v2121 = vpack.c.b16 %v1665, %v1663
  %v2122 = vpack.c.b16 %v1668, %v1666
  %v2123 = vpack.c.b16 %v1669, %v1667
  %v2124 = vpack.c.b16 %v1672, %v1670
  %v2125 = vpack.c.b16 %v1673, %v1671
  %v2126 = vpack.c.b16 %v1676, %v1674
  %v2127 = vpack.c.b16 %v1677, %v1675
  %v2128 = vpack.c.b16 %v1680, %v1678
  %v2129 = vpack.c.b16 %v1681, %v1679
  %v2130 = vpack.c.b16 %v1684, %v1682
  %v2131 = vpack.c.b16 %v1685, %v1683
  %v2132 = vpack.c.b16 %v1688, %v1686
  %v2133 = vpack.c.b16 %v1689, %v1687
  %v2134 = vpack.c.b16 %v1692, %v1690
  %v2135 = vpack.c.b16 %v1693, %v1691
  %v2136 = vpack.c.b16 %v1696, %v1694
  %v2137 = vpack.c.b16 %v1697, %v1695
  %v2138 = vpack.c.b16 %v1700, %v1698
  %v2139 = vpack.c.b16 %v1701, %v1699
  %v2140 = vpack.c.b16 %v1704, %v1702
  %v2141 = vpack.c.b16 %v1705, %v1703
  %v2142 = vpack.c.b16 %v1708, %v1706
  %v2143 = vpack.c.b16 %v1709, %v1707
  %v2144 = vpack.c.b16 %v1712, %v1710
  %v2145 = vpack.c.b16 %v1713, %v1711
  %v2146 = vpack.c.b16 %v1716, %v1714
  %v2147 = vpack.c.b16 %v1717, %v1715
  %v2148 = vpack.c.b16 %v1720, %v1718
  %v2149 = vpack.c.b16 %v1721, %v1719
  %v2150 = vpack.c.b16 %v1724, %v1722
  %v2151 = vpack.c.b16 %v1725, %v1723
  %v2152 = vpack.c.b16 %v1728, %v1726
  %v2153 = vpack.c.b16 %v1729, %v1727
  %v2154 = vpack.c.b16 %v1732, %v1730
  %v2155 = vpack.c.b16 %v1733, %v1731
  %v2156 = vpack.c.b16 %v1736, %v1734
  %v2157 = vpack.c.b16 %v1737, %v1735
  %v2158 = vpack.c.b16 %v1740, %v1738
  %v2159 = vpack.c.b16 %v1741, %v1739
  %v2160 = vpack.c.b16 %v1744, %v1742
  %v2161 = vpack.c.b16 %v1745, %v1743
  %v2162 = vpack.c.b16 %v1748, %v1746
  %v2163 = vpack.c.b16 %v1749, %v1747
  %v2164 = vpack.c.b16 %v1752, %v1750
  %v2165 = vpack.c.b16 %v1753, %v1751
  %v2166 = vpack.c.b16 %v1756, %v1754
  %v2167 = vpack.c.b16 %v1757, %v1755
  %v2168 = vpack.c.b16 %v1760, %v1758
  %v2169 = vpack.c.b16 %v1761, %v1759
  %v2170 = vpack.c.b16 %v1764, %v1762
  %v2171 = vpack.c.b16 %v1765, %v1763
  %v2172 = vpack.c.b16 %v1768, %v1766
  %v2173 = vpack.c.b16 %v1769, %v1767
  %v2174 = vpack.c.b16 %v1772, %v1770
  %v2175 = vpack.c.b16 %v1773, %v1771
  %v2176 = vpack.c.b16 %v1776, %v1774
  %v2177 = vpack.c.b16 %v1777, %v1775
  %v2178 = vpack.c.b16 %v1780, %v1778
  %v2179 = vpack.c.b16 %v1781, %v1779
  %v2180 = vpack.c.b16 %v1784, %v1782
  %v2181 = vpack.c.b16 %v1785, %v1783
  %v2182 = vpack.c.b16 %v1788, %v1786
  %v2183 = vpack.c.b16 %v1789, %v1787
  %v2184 = vpack.c.b16 %v1792, %v1790
  %v2185 = vpack.c.b16 %v1793, %v1791
  %vm2578 = vcmask 523264
  %v2580 = vsel %vm2578, %v593, 0
  %2582 = vmatprep.subr.bf16.mxu0 %v1809
  %2583 = vmatpush1.bf16.msra.mxu0 %v1808
  %2584 = vmatprep.subr.bf16.mxu0 %v1807
  %2585 = vmatpush1.bf16.msra.mxu0 %v1806
  %2586 = vmatprep.subr.bf16.mxu0 %v1805
  %2587 = vmatpush1.bf16.msra.mxu0 %v1804
  %2588 = vmatprep.subr.bf16.mxu0 %v1803
  %2589 = vmatpush1.bf16.msra.mxu0 %v1802
  %2590 = vmatprep.subr.bf16.mxu0 %v1801
  %2591 = vmatpush1.bf16.msra.mxu0 %v1800
  %2592 = vmatprep.subr.bf16.mxu0 %v1799
  %2593 = vmatpush1.bf16.msra.mxu0 %v1798
  %2594 = vmatprep.subr.bf16.mxu0 %v1797
  %2595 = vmatpush1.bf16.msra.mxu0 %v1796
  %2596 = vmatprep.subr.bf16.mxu0 %v1795
  %2597 = vmatpush1.bf16.msra.mxu0 %v1794
  %2598 = vmatprep.subr.bf16.mxu0 %v1825
  %2599 = vmatpush2.bf16.msra.mxu0 %v1824
  %2600 = vmatprep.subr.bf16.mxu0 %v1823
  %2601 = vmatpush2.bf16.msra.mxu0 %v1822
  %2602 = vmatprep.subr.bf16.mxu0 %v1821
  %2603 = vmatpush2.bf16.msra.mxu0 %v1820
  %2604 = vmatprep.subr.bf16.mxu0 %v1819
  %2605 = vmatpush2.bf16.msra.mxu0 %v1818
  %2606 = vmatprep.subr.bf16.mxu0 %v1817
  %2607 = vmatpush2.bf16.msra.mxu0 %v1816
  %2608 = vmatprep.subr.bf16.mxu0 %v1815
  %2609 = vmatpush2.bf16.msra.mxu0 %v1814
  %2610 = vmatprep.subr.bf16.mxu0 %v1813
  %2611 = vmatpush2.bf16.msra.mxu0 %v1812
  %2612 = vmatprep.subr.bf16.mxu0 %v1811
  %2613 = vmatpush2.bf16.msra.mxu0 %v1810
  %2614 = vmatprep.mubr.bf16.mxu0 %v470
  %2615 = vmatmul.mubr.bf16.gmra.mxu0 %v456
  %v2616 = vpop.f32.mrf.mxu0
  %v2617 = vadd.f32 %v422, %v2616
  %v2618 = vpop.f32.mrf.mxu0
  %v2619 = vadd.f32 %v426, %v2618
  %v2620 = vpop.f32.mrf.mxu0
  %v2621 = vpop.f32.mrf.mxu0
  %2622 = vdwg.mxu0
  %2623 = vmatprep.subr.bf16.mxu0 %v1841
  %2624 = vmatpush1.bf16.msra.mxu0 %v1840
  %2625 = vmatprep.subr.bf16.mxu0 %v1839
  %2626 = vmatpush1.bf16.msra.mxu0 %v1838
  %2627 = vmatprep.subr.bf16.mxu0 %v1837
  %2628 = vmatpush1.bf16.msra.mxu0 %v1836
  %2629 = vmatprep.subr.bf16.mxu0 %v1835
  %2630 = vmatpush1.bf16.msra.mxu0 %v1834
  %2631 = vmatprep.subr.bf16.mxu0 %v1833
  %2632 = vmatpush1.bf16.msra.mxu0 %v1832
  %2633 = vmatprep.subr.bf16.mxu0 %v1831
  %2634 = vmatpush1.bf16.msra.mxu0 %v1830
  %2635 = vmatprep.subr.bf16.mxu0 %v1829
  %2636 = vmatpush1.bf16.msra.mxu0 %v1828
  %2637 = vmatprep.subr.bf16.mxu0 %v1827
  %2638 = vmatpush1.bf16.msra.mxu0 %v1826
  %2639 = vmatprep.subr.bf16.mxu0 %v1857
  %2640 = vmatpush2.bf16.msra.mxu0 %v1856
  %2641 = vmatprep.subr.bf16.mxu0 %v1855
  %2642 = vmatpush2.bf16.msra.mxu0 %v1854
  %2643 = vmatprep.subr.bf16.mxu0 %v1853
  %2644 = vmatpush2.bf16.msra.mxu0 %v1852
  %2645 = vmatprep.subr.bf16.mxu0 %v1851
  %2646 = vmatpush2.bf16.msra.mxu0 %v1850
  %2647 = vmatprep.subr.bf16.mxu0 %v1849
  %2648 = vmatpush2.bf16.msra.mxu0 %v1848
  %2649 = vmatprep.subr.bf16.mxu0 %v1847
  %2650 = vmatpush2.bf16.msra.mxu0 %v1846
  %2651 = vmatprep.subr.bf16.mxu0 %v1845
  %2652 = vmatpush2.bf16.msra.mxu0 %v1844
  %2653 = vmatprep.subr.bf16.mxu0 %v1843
  %2654 = vmatpush2.bf16.msra.mxu0 %v1842
  %2655 = vmatprep.mubr.bf16.mxu0 %v480
  %2656 = vmatmul.mubr.bf16.gmra.mxu0 %v478
  %v2657 = vpop.f32.mrf.mxu0
  %v2658 = vadd.f32 %v2617, %v2657
  %v2659 = vpop.f32.mrf.mxu0
  %v2660 = vadd.f32 %v2619, %v2659
  %v2661 = vpop.f32.mrf.mxu0
  %v2662 = vpop.f32.mrf.mxu0
  %2663 = vdwg.mxu0
  %2664 = vmatprep.subr.bf16.mxu0 %v1873
  %2665 = vmatpush1.bf16.msra.mxu0 %v1872
  %2666 = vmatprep.subr.bf16.mxu0 %v1871
  %2667 = vmatpush1.bf16.msra.mxu0 %v1870
  %2668 = vmatprep.subr.bf16.mxu0 %v1869
  %2669 = vmatpush1.bf16.msra.mxu0 %v1868
  %2670 = vmatprep.subr.bf16.mxu0 %v1867
  %2671 = vmatpush1.bf16.msra.mxu0 %v1866
  %2672 = vmatprep.subr.bf16.mxu0 %v1865
  %2673 = vmatpush1.bf16.msra.mxu0 %v1864
  %2674 = vmatprep.subr.bf16.mxu0 %v1863
  %2675 = vmatpush1.bf16.msra.mxu0 %v1862
  %2676 = vmatprep.subr.bf16.mxu0 %v1861
  %2677 = vmatpush1.bf16.msra.mxu0 %v1860
  %2678 = vmatprep.subr.bf16.mxu0 %v1859
  %2679 = vmatpush1.bf16.msra.mxu0 %v1858
  %2680 = vmatprep.subr.bf16.mxu0 %v1889
  %2681 = vmatpush2.bf16.msra.mxu0 %v1888
  %2682 = vmatprep.subr.bf16.mxu0 %v1887
  %2683 = vmatpush2.bf16.msra.mxu0 %v1886
  %2684 = vmatprep.subr.bf16.mxu0 %v1885
  %2685 = vmatpush2.bf16.msra.mxu0 %v1884
  %2686 = vmatprep.subr.bf16.mxu0 %v1883
  %2687 = vmatpush2.bf16.msra.mxu0 %v1882
  %2688 = vmatprep.subr.bf16.mxu0 %v1881
  %2689 = vmatpush2.bf16.msra.mxu0 %v1880
  %2690 = vmatprep.subr.bf16.mxu0 %v1879
  %2691 = vmatpush2.bf16.msra.mxu0 %v1878
  %2692 = vmatprep.subr.bf16.mxu0 %v1877
  %2693 = vmatpush2.bf16.msra.mxu0 %v1876
  %2694 = vmatprep.subr.bf16.mxu0 %v1875
  %2695 = vmatpush2.bf16.msra.mxu0 %v1874
  %2696 = vmatprep.mubr.bf16.mxu0 %v477
  %2697 = vmatmul.mubr.bf16.gmra.mxu0 %v463
  %v2698 = vpop.f32.mrf.mxu0
  %v2699 = vadd.f32 %v2658, %v2698
  %v2700 = vpop.f32.mrf.mxu0
  %v2701 = vadd.f32 %v2660, %v2700
  %v2702 = vpop.f32.mrf.mxu0
  %v2703 = vpop.f32.mrf.mxu0
  %2704 = vdwg.mxu0
  %2705 = vmatprep.subr.bf16.mxu0 %v1905
  %2706 = vmatpush1.bf16.msra.mxu0 %v1904
  %2707 = vmatprep.subr.bf16.mxu0 %v1903
  %2708 = vmatpush1.bf16.msra.mxu0 %v1902
  %2709 = vmatprep.subr.bf16.mxu0 %v1901
  %2710 = vmatpush1.bf16.msra.mxu0 %v1900
  %2711 = vmatprep.subr.bf16.mxu0 %v1899
  %2712 = vmatpush1.bf16.msra.mxu0 %v1898
  %2713 = vmatprep.subr.bf16.mxu0 %v1897
  %2714 = vmatpush1.bf16.msra.mxu0 %v1896
  %2715 = vmatprep.subr.bf16.mxu0 %v1895
  %2716 = vmatpush1.bf16.msra.mxu0 %v1894
  %2717 = vmatprep.subr.bf16.mxu0 %v1893
  %2718 = vmatpush1.bf16.msra.mxu0 %v1892
  %2719 = vmatprep.subr.bf16.mxu0 %v1891
  %2720 = vmatpush1.bf16.msra.mxu0 %v1890
  %2721 = vmatprep.subr.bf16.mxu0 %v1921
  %2722 = vmatpush2.bf16.msra.mxu0 %v1920
  %2723 = vmatprep.subr.bf16.mxu0 %v1919
  %2724 = vmatpush2.bf16.msra.mxu0 %v1918
  %2725 = vmatprep.subr.bf16.mxu0 %v1917
  %2726 = vmatpush2.bf16.msra.mxu0 %v1916
  %2727 = vmatprep.subr.bf16.mxu0 %v1915
  %2728 = vmatpush2.bf16.msra.mxu0 %v1914
  %2729 = vmatprep.subr.bf16.mxu0 %v1913
  %2730 = vmatpush2.bf16.msra.mxu0 %v1912
  %2731 = vmatprep.subr.bf16.mxu0 %v1911
  %2732 = vmatpush2.bf16.msra.mxu0 %v1910
  %2733 = vmatprep.subr.bf16.mxu0 %v1909
  %2734 = vmatpush2.bf16.msra.mxu0 %v1908
  %2735 = vmatprep.subr.bf16.mxu0 %v1907
  %2736 = vmatpush2.bf16.msra.mxu0 %v1906
  %2737 = vmatprep.mubr.bf16.mxu0 %v481
  %2738 = vmatmul.mubr.bf16.gmra.mxu0 %v479
  %v2739 = vpop.f32.mrf.mxu0
  %v2740 = vadd.f32 %v2699, %v2739
  %v2741 = vpop.f32.mrf.mxu0
  %v2742 = vadd.f32 %v2701, %v2741
  %v2743 = vpop.f32.mrf.mxu0
  %v2744 = vpop.f32.mrf.mxu0
  %2745 = vdwg.mxu0
  %2746 = vmatprep.subr.bf16.mxu0 %v1937
  %2747 = vmatpush1.bf16.msra.mxu0 %v1936
  %2748 = vmatprep.subr.bf16.mxu0 %v1935
  %2749 = vmatpush1.bf16.msra.mxu0 %v1934
  %2750 = vmatprep.subr.bf16.mxu0 %v1933
  %2751 = vmatpush1.bf16.msra.mxu0 %v1932
  %2752 = vmatprep.subr.bf16.mxu0 %v1931
  %2753 = vmatpush1.bf16.msra.mxu0 %v1930
  %2754 = vmatprep.subr.bf16.mxu0 %v1929
  %2755 = vmatpush1.bf16.msra.mxu0 %v1928
  %2756 = vmatprep.subr.bf16.mxu0 %v1927
  %2757 = vmatpush1.bf16.msra.mxu0 %v1926
  %2758 = vmatprep.subr.bf16.mxu0 %v1925
  %2759 = vmatpush1.bf16.msra.mxu0 %v1924
  %2760 = vmatprep.subr.bf16.mxu0 %v1923
  %2761 = vmatpush1.bf16.msra.mxu0 %v1922
  %2762 = vmatprep.subr.bf16.mxu0 %v1953
  %2763 = vmatpush2.bf16.msra.mxu0 %v1952
  %2764 = vmatprep.subr.bf16.mxu0 %v1951
  %2765 = vmatpush2.bf16.msra.mxu0 %v1950
  %2766 = vmatprep.subr.bf16.mxu0 %v1949
  %2767 = vmatpush2.bf16.msra.mxu0 %v1948
  %2768 = vmatprep.subr.bf16.mxu0 %v1947
  %2769 = vmatpush2.bf16.msra.mxu0 %v1946
  %2770 = vmatprep.subr.bf16.mxu0 %v1945
  %2771 = vmatpush2.bf16.msra.mxu0 %v1944
  %2772 = vmatprep.subr.bf16.mxu0 %v1943
  %2773 = vmatpush2.bf16.msra.mxu0 %v1942
  %2774 = vmatprep.subr.bf16.mxu0 %v1941
  %2775 = vmatpush2.bf16.msra.mxu0 %v1940
  %2776 = vmatprep.subr.bf16.mxu0 %v1939
  %2777 = vmatpush2.bf16.msra.mxu0 %v1938
  %2778 = vmatprep.mubr.bf16.mxu0 %v519
  %2779 = vmatmul.mubr.bf16.gmra.mxu0 %v505
  %v2780 = vpop.f32.mrf.mxu0
  %v2781 = vadd.f32 %v2740, %v2780
  %v2782 = vpop.f32.mrf.mxu0
  %v2783 = vadd.f32 %v2742, %v2782
  %v2784 = vpop.f32.mrf.mxu0
  %v2785 = vpop.f32.mrf.mxu0
  %2786 = vdwg.mxu0
  %2787 = vmatprep.subr.bf16.mxu0 %v1969
  %2788 = vmatpush1.bf16.msra.mxu0 %v1968
  %2789 = vmatprep.subr.bf16.mxu0 %v1967
  %2790 = vmatpush1.bf16.msra.mxu0 %v1966
  %2791 = vmatprep.subr.bf16.mxu0 %v1965
  %2792 = vmatpush1.bf16.msra.mxu0 %v1964
  %2793 = vmatprep.subr.bf16.mxu0 %v1963
  %2794 = vmatpush1.bf16.msra.mxu0 %v1962
  %2795 = vmatprep.subr.bf16.mxu0 %v1961
  %2796 = vmatpush1.bf16.msra.mxu0 %v1960
  %2797 = vmatprep.subr.bf16.mxu0 %v1959
  %2798 = vmatpush1.bf16.msra.mxu0 %v1958
  %2799 = vmatprep.subr.bf16.mxu0 %v1957
  %2800 = vmatpush1.bf16.msra.mxu0 %v1956
  %2801 = vmatprep.subr.bf16.mxu0 %v1955
  %2802 = vmatpush1.bf16.msra.mxu0 %v1954
  %2803 = vmatprep.subr.bf16.mxu0 %v1985
  %2804 = vmatpush2.bf16.msra.mxu0 %v1984
  %2805 = vmatprep.subr.bf16.mxu0 %v1983
  %2806 = vmatpush2.bf16.msra.mxu0 %v1982
  %2807 = vmatprep.subr.bf16.mxu0 %v1981
  %2808 = vmatpush2.bf16.msra.mxu0 %v1980
  %2809 = vmatprep.subr.bf16.mxu0 %v1979
  %2810 = vmatpush2.bf16.msra.mxu0 %v1978
  %2811 = vmatprep.subr.bf16.mxu0 %v1977
  %2812 = vmatpush2.bf16.msra.mxu0 %v1976
  %2813 = vmatprep.subr.bf16.mxu0 %v1975
  %2814 = vmatpush2.bf16.msra.mxu0 %v1974
  %2815 = vmatprep.subr.bf16.mxu0 %v1973
  %2816 = vmatpush2.bf16.msra.mxu0 %v1972
  %2817 = vmatprep.subr.bf16.mxu0 %v1971
  %2818 = vmatpush2.bf16.msra.mxu0 %v1970
  %2819 = vmatprep.mubr.bf16.mxu0 %v529
  %2820 = vmatmul.mubr.bf16.gmra.mxu0 %v527
  %v2821 = vpop.f32.mrf.mxu0
  %v2822 = vadd.f32 %v2781, %v2821
  %v2823 = vpop.f32.mrf.mxu0
  %v2824 = vadd.f32 %v2783, %v2823
  %v2825 = vpop.f32.mrf.mxu0
  %v2826 = vpop.f32.mrf.mxu0
  %2827 = vdwg.mxu0
  %2828 = vmatprep.subr.bf16.mxu0 %v2001
  %2829 = vmatpush1.bf16.msra.mxu0 %v2000
  %2830 = vmatprep.subr.bf16.mxu0 %v1999
  %2831 = vmatpush1.bf16.msra.mxu0 %v1998
  %2832 = vmatprep.subr.bf16.mxu0 %v1997
  %2833 = vmatpush1.bf16.msra.mxu0 %v1996
  %2834 = vmatprep.subr.bf16.mxu0 %v1995
  %2835 = vmatpush1.bf16.msra.mxu0 %v1994
  %2836 = vmatprep.subr.bf16.mxu0 %v1993
  %2837 = vmatpush1.bf16.msra.mxu0 %v1992
  %2838 = vmatprep.subr.bf16.mxu0 %v1991
  %2839 = vmatpush1.bf16.msra.mxu0 %v1990
  %2840 = vmatprep.subr.bf16.mxu0 %v1989
  %2841 = vmatpush1.bf16.msra.mxu0 %v1988
  %2842 = vmatprep.subr.bf16.mxu0 %v1987
  %2843 = vmatpush1.bf16.msra.mxu0 %v1986
  %2844 = vmatprep.subr.bf16.mxu0 %v2017
  %2845 = vmatpush2.bf16.msra.mxu0 %v2016
  %2846 = vmatprep.subr.bf16.mxu0 %v2015
  %2847 = vmatpush2.bf16.msra.mxu0 %v2014
  %2848 = vmatprep.subr.bf16.mxu0 %v2013
  %2849 = vmatpush2.bf16.msra.mxu0 %v2012
  %2850 = vmatprep.subr.bf16.mxu0 %v2011
  %2851 = vmatpush2.bf16.msra.mxu0 %v2010
  %2852 = vmatprep.subr.bf16.mxu0 %v2009
  %2853 = vmatpush2.bf16.msra.mxu0 %v2008
  %2854 = vmatprep.subr.bf16.mxu0 %v2007
  %2855 = vmatpush2.bf16.msra.mxu0 %v2006
  %2856 = vmatprep.subr.bf16.mxu0 %v2005
  %2857 = vmatpush2.bf16.msra.mxu0 %v2004
  %2858 = vmatprep.subr.bf16.mxu0 %v2003
  %2859 = vmatpush2.bf16.msra.mxu0 %v2002
  %2860 = vmatprep.mubr.bf16.mxu0 %v526
  %2861 = vmatmul.mubr.bf16.gmra.mxu0 %v512
  %v2862 = vpop.f32.mrf.mxu0
  %v2863 = vadd.f32 %v2822, %v2862
  %v2864 = vpop.f32.mrf.mxu0
  %v2865 = vadd.f32 %v2824, %v2864
  %v2866 = vpop.f32.mrf.mxu0
  %v2867 = vpop.f32.mrf.mxu0
  %2868 = vdwg.mxu0
  %2869 = vmatprep.subr.bf16.mxu0 %v2033
  %2870 = vmatpush1.bf16.msra.mxu0 %v2032
  %2871 = vmatprep.subr.bf16.mxu0 %v2031
  %2872 = vmatpush1.bf16.msra.mxu0 %v2030
  %2873 = vmatprep.subr.bf16.mxu0 %v2029
  %2874 = vmatpush1.bf16.msra.mxu0 %v2028
  %2875 = vmatprep.subr.bf16.mxu0 %v2027
  %2876 = vmatpush1.bf16.msra.mxu0 %v2026
  %2877 = vmatprep.subr.bf16.mxu0 %v2025
  %2878 = vmatpush1.bf16.msra.mxu0 %v2024
  %2879 = vmatprep.subr.bf16.mxu0 %v2023
  %2880 = vmatpush1.bf16.msra.mxu0 %v2022
  %2881 = vmatprep.subr.bf16.mxu0 %v2021
  %2882 = vmatpush1.bf16.msra.mxu0 %v2020
  %2883 = vmatprep.subr.bf16.mxu0 %v2019
  %2884 = vmatpush1.bf16.msra.mxu0 %v2018
  %2885 = vmatprep.subr.bf16.mxu0 %v2049
  %2886 = vmatpush2.bf16.msra.mxu0 %v2048
  %2887 = vmatprep.subr.bf16.mxu0 %v2047
  %2888 = vmatpush2.bf16.msra.mxu0 %v2046
  %2889 = vmatprep.subr.bf16.mxu0 %v2045
  %2890 = vmatpush2.bf16.msra.mxu0 %v2044
  %2891 = vmatprep.subr.bf16.mxu0 %v2043
  %2892 = vmatpush2.bf16.msra.mxu0 %v2042
  %2893 = vmatprep.subr.bf16.mxu0 %v2041
  %2894 = vmatpush2.bf16.msra.mxu0 %v2040
  %2895 = vmatprep.subr.bf16.mxu0 %v2039
  %2896 = vmatpush2.bf16.msra.mxu0 %v2038
  %2897 = vmatprep.subr.bf16.mxu0 %v2037
  %2898 = vmatpush2.bf16.msra.mxu0 %v2036
  %2899 = vmatprep.subr.bf16.mxu0 %v2035
  %2900 = vmatpush2.bf16.msra.mxu0 %v2034
  %2901 = vmatprep.mubr.bf16.mxu0 %v530
  %2902 = vmatmul.mubr.bf16.gmra.mxu0 %v528
  %v2903 = vpop.f32.mrf.mxu0
  %v2904 = vadd.f32 %v2863, %v2903
  %v2905 = vpop.f32.mrf.mxu0
  %v2906 = vadd.f32 %v2865, %v2905
  %v2907 = vpop.f32.mrf.mxu0
  %v2908 = vpop.f32.mrf.mxu0
  %2909 = vdwg.mxu0
  %2910 = vmatprep.subr.bf16.mxu0 %v2065
  %2911 = vmatpush1.bf16.msra.mxu0 %v2064
  %2912 = vmatprep.subr.bf16.mxu0 %v2063
  %2913 = vmatpush1.bf16.msra.mxu0 %v2062
  %2914 = vmatprep.subr.bf16.mxu0 %v2061
  %2915 = vmatpush1.bf16.msra.mxu0 %v2060
  %2916 = vmatprep.subr.bf16.mxu0 %v2059
  %2917 = vmatpush1.bf16.msra.mxu0 %v2058
  %2918 = vmatprep.subr.bf16.mxu0 %v2057
  %2919 = vmatpush1.bf16.msra.mxu0 %v2056
  %2920 = vmatprep.subr.bf16.mxu0 %v2055
  %2921 = vmatpush1.bf16.msra.mxu0 %v2054
  %2922 = vmatprep.subr.bf16.mxu0 %v2053
  %2923 = vmatpush1.bf16.msra.mxu0 %v2052
  %2924 = vmatprep.subr.bf16.mxu0 %v2051
  %2925 = vmatpush1.bf16.msra.mxu0 %v2050
  %2926 = vmatprep.subr.bf16.mxu0 %v2081
  %2927 = vmatpush2.bf16.msra.mxu0 %v2080
  %2928 = vmatprep.subr.bf16.mxu0 %v2079
  %2929 = vmatpush2.bf16.msra.mxu0 %v2078
  %2930 = vmatprep.subr.bf16.mxu0 %v2077
  %2931 = vmatpush2.bf16.msra.mxu0 %v2076
  %2932 = vmatprep.subr.bf16.mxu0 %v2075
  %2933 = vmatpush2.bf16.msra.mxu0 %v2074
  %2934 = vmatprep.subr.bf16.mxu0 %v2073
  %2935 = vmatpush2.bf16.msra.mxu0 %v2072
  %2936 = vmatprep.subr.bf16.mxu0 %v2071
  %2937 = vmatpush2.bf16.msra.mxu0 %v2070
  %2938 = vmatprep.subr.bf16.mxu0 %v2069
  %2939 = vmatpush2.bf16.msra.mxu0 %v2068
  %2940 = vmatprep.subr.bf16.mxu0 %v2067
  %2941 = vmatpush2.bf16.msra.mxu0 %v2066
  %2942 = vmatprep.mubr.bf16.mxu0 %v568
  %2943 = vmatmul.mubr.bf16.gmra.mxu0 %v554
  %v2944 = vpop.f32.mrf.mxu0
  %v2945 = vadd.f32 %v2904, %v2944
  %v2946 = vpop.f32.mrf.mxu0
  %v2947 = vadd.f32 %v2906, %v2946
  %v2948 = vpop.f32.mrf.mxu0
  %v2949 = vpop.f32.mrf.mxu0
  %2950 = vdwg.mxu0
  %2951 = vmatprep.subr.bf16.mxu0 %v2097
  %2952 = vmatpush1.bf16.msra.mxu0 %v2096
  %2953 = vmatprep.subr.bf16.mxu0 %v2095
  %2954 = vmatpush1.bf16.msra.mxu0 %v2094
  %2955 = vmatprep.subr.bf16.mxu0 %v2093
  %2956 = vmatpush1.bf16.msra.mxu0 %v2092
  %2957 = vmatprep.subr.bf16.mxu0 %v2091
  %2958 = vmatpush1.bf16.msra.mxu0 %v2090
  %2959 = vmatprep.subr.bf16.mxu0 %v2089
  %2960 = vmatpush1.bf16.msra.mxu0 %v2088
  %2961 = vmatprep.subr.bf16.mxu0 %v2087
  %2962 = vmatpush1.bf16.msra.mxu0 %v2086
  %2963 = vmatprep.subr.bf16.mxu0 %v2085
  %2964 = vmatpush1.bf16.msra.mxu0 %v2084
  %2965 = vmatprep.subr.bf16.mxu0 %v2083
  %2966 = vmatpush1.bf16.msra.mxu0 %v2082
  %2967 = vmatprep.subr.bf16.mxu0 %v2113
  %2968 = vmatpush2.bf16.msra.mxu0 %v2112
  %2969 = vmatprep.subr.bf16.mxu0 %v2111
  %2970 = vmatpush2.bf16.msra.mxu0 %v2110
  %2971 = vmatprep.subr.bf16.mxu0 %v2109
  %2972 = vmatpush2.bf16.msra.mxu0 %v2108
  %2973 = vmatprep.subr.bf16.mxu0 %v2107
  %2974 = vmatpush2.bf16.msra.mxu0 %v2106
  %2975 = vmatprep.subr.bf16.mxu0 %v2105
  %2976 = vmatpush2.bf16.msra.mxu0 %v2104
  %2977 = vmatprep.subr.bf16.mxu0 %v2103
  %2978 = vmatpush2.bf16.msra.mxu0 %v2102
  %2979 = vmatprep.subr.bf16.mxu0 %v2101
  %2980 = vmatpush2.bf16.msra.mxu0 %v2100
  %2981 = vmatprep.subr.bf16.mxu0 %v2099
  %2982 = vmatpush2.bf16.msra.mxu0 %v2098
  %2983 = vmatprep.mubr.bf16.mxu0 %v578
  %2984 = vmatmul.mubr.bf16.gmra.mxu0 %v576
  %v2985 = vpop.f32.mrf.mxu0
  %v2986 = vadd.f32 %v2945, %v2985
  %v2987 = vpop.f32.mrf.mxu0
  %v2988 = vadd.f32 %v2947, %v2987
  %v2989 = vpop.f32.mrf.mxu0
  %v2990 = vpop.f32.mrf.mxu0
  %2991 = vdwg.mxu0
  %2992 = vmatprep.subr.bf16.mxu0 %v2129
  %2993 = vmatpush1.bf16.msra.mxu0 %v2128
  %2994 = vmatprep.subr.bf16.mxu0 %v2127
  %2995 = vmatpush1.bf16.msra.mxu0 %v2126
  %2996 = vmatprep.subr.bf16.mxu0 %v2125
  %2997 = vmatpush1.bf16.msra.mxu0 %v2124
  %2998 = vmatprep.subr.bf16.mxu0 %v2123
  %2999 = vmatpush1.bf16.msra.mxu0 %v2122
  %3000 = vmatprep.subr.bf16.mxu0 %v2121
  %3001 = vmatpush1.bf16.msra.mxu0 %v2120
  %3002 = vmatprep.subr.bf16.mxu0 %v2119
  %3003 = vmatpush1.bf16.msra.mxu0 %v2118
  %3004 = vmatprep.subr.bf16.mxu0 %v2117
  %3005 = vmatpush1.bf16.msra.mxu0 %v2116
  %3006 = vmatprep.subr.bf16.mxu0 %v2115
  %3007 = vmatpush1.bf16.msra.mxu0 %v2114
  %3008 = vmatprep.subr.bf16.mxu0 %v2145
  %3009 = vmatpush2.bf16.msra.mxu0 %v2144
  %3010 = vmatprep.subr.bf16.mxu0 %v2143
  %3011 = vmatpush2.bf16.msra.mxu0 %v2142
  %3012 = vmatprep.subr.bf16.mxu0 %v2141
  %3013 = vmatpush2.bf16.msra.mxu0 %v2140
  %3014 = vmatprep.subr.bf16.mxu0 %v2139
  %3015 = vmatpush2.bf16.msra.mxu0 %v2138
  %3016 = vmatprep.subr.bf16.mxu0 %v2137
  %3017 = vmatpush2.bf16.msra.mxu0 %v2136
  %3018 = vmatprep.subr.bf16.mxu0 %v2135
  %3019 = vmatpush2.bf16.msra.mxu0 %v2134
  %3020 = vmatprep.subr.bf16.mxu0 %v2133
  %3021 = vmatpush2.bf16.msra.mxu0 %v2132
  %3022 = vmatprep.subr.bf16.mxu0 %v2131
  %3023 = vmatpush2.bf16.msra.mxu0 %v2130
  %3024 = vmatprep.mubr.bf16.mxu0 %v575
  %3025 = vmatmul.mubr.bf16.gmra.mxu0 %v561
  %v3026 = vpop.f32.mrf.mxu0
  %v3027 = vadd.f32 %v2986, %v3026
  %v3028 = vpop.f32.mrf.mxu0
  %v3029 = vadd.f32 %v2988, %v3028
  %v3030 = vpop.f32.mrf.mxu0
  %v3031 = vpop.f32.mrf.mxu0
  %3032 = vdwg.mxu0
  %3033 = vmatprep.subr.bf16.mxu0 %v2161
  %3034 = vmatpush1.bf16.msra.mxu0 %v2160
  %3035 = vmatprep.subr.bf16.mxu0 %v2159
  %3036 = vmatpush1.bf16.msra.mxu0 %v2158
  %3037 = vmatprep.subr.bf16.mxu0 %v2157
  %3038 = vmatpush1.bf16.msra.mxu0 %v2156
  %3039 = vmatprep.subr.bf16.mxu0 %v2155
  %3040 = vmatpush1.bf16.msra.mxu0 %v2154
  %3041 = vmatprep.subr.bf16.mxu0 %v2153
  %3042 = vmatpush1.bf16.msra.mxu0 %v2152
  %3043 = vmatprep.subr.bf16.mxu0 %v2151
  %3044 = vmatpush1.bf16.msra.mxu0 %v2150
  %3045 = vmatprep.subr.bf16.mxu0 %v2149
  %3046 = vmatpush1.bf16.msra.mxu0 %v2148
  %3047 = vmatprep.subr.bf16.mxu0 %v2147
  %3048 = vmatpush1.bf16.msra.mxu0 %v2146
  %3049 = vmatprep.subr.bf16.mxu0 %v2177
  %3050 = vmatpush2.bf16.msra.mxu0 %v2176
  %3051 = vmatprep.subr.bf16.mxu0 %v2175
  %3052 = vmatpush2.bf16.msra.mxu0 %v2174
  %3053 = vmatprep.subr.bf16.mxu0 %v2173
  %3054 = vmatpush2.bf16.msra.mxu0 %v2172
  %3055 = vmatprep.subr.bf16.mxu0 %v2171
  %3056 = vmatpush2.bf16.msra.mxu0 %v2170
  %3057 = vmatprep.subr.bf16.mxu0 %v2169
  %3058 = vmatpush2.bf16.msra.mxu0 %v2168
  %3059 = vmatprep.subr.bf16.mxu0 %v2167
  %3060 = vmatpush2.bf16.msra.mxu0 %v2166
  %3061 = vmatprep.subr.bf16.mxu0 %v2165
  %3062 = vmatpush2.bf16.msra.mxu0 %v2164
  %3063 = vmatprep.subr.bf16.mxu0 %v2163
  %3064 = vmatpush2.bf16.msra.mxu0 %v2162
  %3065 = vmatprep.mubr.bf16.mxu0 %v579
  %3066 = vmatmul.mubr.bf16.gmra.mxu0 %v577
  %v3067 = vpop.f32.mrf.mxu0
  %v3068 = vadd.f32 %v3027, %v3067
  %v3069 = vpop.f32.mrf.mxu0
  %v3070 = vadd.f32 %v3029, %v3069
  %v3071 = vpop.f32.mrf.mxu0
  %v3072 = vpop.f32.mrf.mxu0
  %3073 = vdwg.mxu0
  %3074 = vmatprep.subr.bf16.mxu0 0
  %3075 = vmatpush1.bf16.msra.mxu0 0
  %3076 = vmatprep.subr.bf16.mxu0 0
  %3077 = vmatpush1.bf16.msra.mxu0 0
  %3078 = vmatprep.subr.bf16.mxu0 0
  %3079 = vmatpush1.bf16.msra.mxu0 0
  %3080 = vmatprep.subr.bf16.mxu0 0
  %3081 = vmatpush1.bf16.msra.mxu0 0
  %3082 = vmatprep.subr.bf16.mxu0 %v2185
  %3083 = vmatpush1.bf16.msra.mxu0 %v2184
  %3084 = vmatprep.subr.bf16.mxu0 %v2183
  %3085 = vmatpush1.bf16.msra.mxu0 %v2182
  %3086 = vmatprep.subr.bf16.mxu0 %v2181
  %3087 = vmatpush1.bf16.msra.mxu0 %v2180
  %3088 = vmatprep.subr.bf16.mxu0 %v2179
  %3089 = vmatpush1.bf16.msra.mxu0 %v2178
  %3090 = vmatprep.subr.bf16.mxu0 0
  %3091 = vmatpush2.bf16.msra.mxu0 0
  %3092 = vmatprep.subr.bf16.mxu0 0
  %3093 = vmatpush2.bf16.msra.mxu0 0
  %3094 = vmatprep.subr.bf16.mxu0 0
  %3095 = vmatpush2.bf16.msra.mxu0 0
  %3096 = vmatprep.subr.bf16.mxu0 0
  %3097 = vmatpush2.bf16.msra.mxu0 0
  %3098 = vmatprep.subr.bf16.mxu0 0
  %3099 = vmatpush2.bf16.msra.mxu0 0
  %3100 = vmatprep.subr.bf16.mxu0 0
  %3101 = vmatpush2.bf16.msra.mxu0 0
  %3102 = vmatprep.subr.bf16.mxu0 0
  %3103 = vmatpush2.bf16.msra.mxu0 0
  %3104 = vmatprep.subr.bf16.mxu0 0
  %3105 = vmatpush2.bf16.msra.mxu0 0
  %3106 = vmatprep.mubr.bf16.mxu0 0
  %3107 = vmatmul.mubr.bf16.gmra.mxu0 %v2580
  %v3108 = vpop.f32.mrf.mxu0
  %v3109 = vadd.f32 %v3068, %v3108
  %v3110 = vpop.f32.mrf.mxu0
  %v3111 = vadd.f32 %v3070, %v3110
  %v3112 = vpop.f32.mrf.mxu0
  %v3113 = vpop.f32.mrf.mxu0
  %3114 = vdwg.mxu0
  %v3115 = vmax.f32 %v3109, 0.0
  %v3116 = vmax.f32 %v3111, 0.0
  %v3117 = vpack.c.bf16 %v3115, %v3115
  %v3118 = vpack.c.bf16 %v3116, %v3116
  %v3119 = vld [vmem:[%s3] sm:$0xf]
  %v3120 = vld [vmem:[%s3 + $0x4] sm:$0xf]
  %v3121 = vld [vmem:[%s3 + $0x8] sm:$0xf]
  %v3122 = vld [vmem:[%s3 + $0xc] sm:$0xf]
  %v3123 = vld [vmem:[%s3 + $0x10] sm:$0xf]
  %v3124 = vld [vmem:[%s3 + $0x14] sm:$0xf]
  %v3125 = vld [vmem:[%s3 + $0x18] sm:$0xf]
  %v3126 = vld [vmem:[%s3 + $0x1c] sm:$0xf]
  %v3127 = vld [vmem:[%s3 + $0x20] sm:$0xf]
  %v3128 = vld [vmem:[%s3 + $0x24] sm:$0xf]
  %v3129 = vld [vmem:[%s3 + $0x28] sm:$0xf]
  %v3130 = vld [vmem:[%s3 + $0x2c] sm:$0xf]
  %v3131 = vld [vmem:[%s3 + $0x30] sm:$0xf]
  %v3132 = vld [vmem:[%s3 + $0x34] sm:$0xf]
  %v3133 = vld [vmem:[%s3 + $0x38] sm:$0xf]
  %v3134 = vld [vmem:[%s3 + $0x3c] sm:$0xf]
  %v3135 = vld [vmem:[%s3 + $0x40] sm:$0xf]
  %v3136 = vld [vmem:[%s3 + $0x44] sm:$0xf]
  %v3137 = vld [vmem:[%s3 + $0x48] sm:$0xf]
  %v3138 = vld [vmem:[%s3 + $0x4c] sm:$0xf]
  %v3139 = vld [vmem:[%s3 + $0x50] sm:$0xf]
  %v3140 = vld [vmem:[%s3 + $0x54] sm:$0xf]
  %v3141 = vld [vmem:[%s3 + $0x58] sm:$0xf]
  %v3142 = vld [vmem:[%s3 + $0x5c] sm:$0xf]
  %v3143 = vld [vmem:[%s3 + $0x60] sm:$0xf]
  %v3144 = vld [vmem:[%s3 + $0x64] sm:$0xf]
  %v3145 = vld [vmem:[%s3 + $0x68] sm:$0xf]
  %v3146 = vld [vmem:[%s3 + $0x6c] sm:$0xf]
  %v3147 = vld [vmem:[%s3 + $0x70] sm:$0xf]
  %v3148 = vld [vmem:[%s3 + $0x74] sm:$0xf]
  %v3149 = vld [vmem:[%s3 + $0x78] sm:$0xf]
  %v3150 = vld [vmem:[%s3 + $0x7c] sm:$0xf]
  %v3151 = vld [vmem:[%s4] sm:$0x1]
  %v3153 = vlaneseq
  %v3154 = vshrl.u32 %v3153, 7
  %v3155 = vsub.s32 0, %v3154
  %v3156 = vrot.slane %v3151, %v3155
  %v3190 = vunpack.c.l.b16 %v3119
  %v3191 = vunpack.c.l.b16 %v3120
  %v3192 = vunpack.c.l.b16 %v3121
  %v3193 = vunpack.c.l.b16 %v3122
  %v3194 = vunpack.c.l.b16 %v3123
  %v3195 = vunpack.c.l.b16 %v3124
  %v3196 = vunpack.c.l.b16 %v3125
  %v3197 = vunpack.c.l.b16 %v3126
  %v3198 = vunpack.c.l.b16 %v3127
  %v3199 = vunpack.c.l.b16 %v3128
  %v3200 = vunpack.c.l.b16 %v3129
  %v3201 = vunpack.c.l.b16 %v3130
  %v3202 = vunpack.c.l.b16 %v3131
  %v3203 = vunpack.c.l.b16 %v3132
  %v3204 = vunpack.c.l.b16 %v3133
  %v3205 = vunpack.c.l.b16 %v3134
  %v3206 = vunpack.c.l.b16 %v3135
  %v3207 = vunpack.c.l.b16 %v3136
  %v3208 = vunpack.c.l.b16 %v3137
  %v3209 = vunpack.c.l.b16 %v3138
  %v3210 = vunpack.c.l.b16 %v3139
  %v3211 = vunpack.c.l.b16 %v3140
  %v3212 = vunpack.c.l.b16 %v3141
  %v3213 = vunpack.c.l.b16 %v3142
  %v3214 = vunpack.c.l.b16 %v3143
  %v3215 = vunpack.c.l.b16 %v3144
  %v3216 = vunpack.c.l.b16 %v3145
  %v3217 = vunpack.c.l.b16 %v3146
  %v3218 = vunpack.c.l.b16 %v3147
  %v3219 = vunpack.c.l.b16 %v3148
  %v3220 = vunpack.c.l.b16 %v3149
  %v3221 = vunpack.c.l.b16 %v3150
  %v3222 = vpack.c.b16 %v3191, %v3190
  %v3223 = vpack.c.b16 %v3193, %v3192
  %v3224 = vpack.c.b16 %v3195, %v3194
  %v3225 = vpack.c.b16 %v3197, %v3196
  %v3226 = vpack.c.b16 %v3199, %v3198
  %v3227 = vpack.c.b16 %v3201, %v3200
  %v3228 = vpack.c.b16 %v3203, %v3202
  %v3229 = vpack.c.b16 %v3205, %v3204
  %v3230 = vpack.c.b16 %v3207, %v3206
  %v3231 = vpack.c.b16 %v3209, %v3208
  %v3232 = vpack.c.b16 %v3211, %v3210
  %v3233 = vpack.c.b16 %v3213, %v3212
  %v3234 = vpack.c.b16 %v3215, %v3214
  %v3235 = vpack.c.b16 %v3217, %v3216
  %v3236 = vpack.c.b16 %v3219, %v3218
  %v3237 = vpack.c.b16 %v3221, %v3220
  %3254 = vmatprep.subr.bf16.mxu0 0
  %3255 = vmatpush1.bf16.msra.mxu0 %v3229
  %3256 = vmatprep.subr.bf16.mxu0 0
  %3257 = vmatpush1.bf16.msra.mxu0 %v3228
  %3258 = vmatprep.subr.bf16.mxu0 0
  %3259 = vmatpush1.bf16.msra.mxu0 %v3227
  %3260 = vmatprep.subr.bf16.mxu0 0
  %3261 = vmatpush1.bf16.msra.mxu0 %v3226
  %3262 = vmatprep.subr.bf16.mxu0 0
  %3263 = vmatpush1.bf16.msra.mxu0 %v3225
  %3264 = vmatprep.subr.bf16.mxu0 0
  %3265 = vmatpush1.bf16.msra.mxu0 %v3224
  %3266 = vmatprep.subr.bf16.mxu0 0
  %3267 = vmatpush1.bf16.msra.mxu0 %v3223
  %3268 = vmatprep.subr.bf16.mxu0 0
  %3269 = vmatpush1.bf16.msra.mxu0 %v3222
  %3270 = vmatprep.subr.bf16.mxu0 0
  %3271 = vmatpush2.bf16.msra.mxu0 %v3237
  %3272 = vmatprep.subr.bf16.mxu0 0
  %3273 = vmatpush2.bf16.msra.mxu0 %v3236
  %3274 = vmatprep.subr.bf16.mxu0 0
  %3275 = vmatpush2.bf16.msra.mxu0 %v3235
  %3276 = vmatprep.subr.bf16.mxu0 0
  %3277 = vmatpush2.bf16.msra.mxu0 %v3234
  %3278 = vmatprep.subr.bf16.mxu0 0
  %3279 = vmatpush2.bf16.msra.mxu0 %v3233
  %3280 = vmatprep.subr.bf16.mxu0 0
  %3281 = vmatpush2.bf16.msra.mxu0 %v3232
  %3282 = vmatprep.subr.bf16.mxu0 0
  %3283 = vmatpush2.bf16.msra.mxu0 %v3231
  %3284 = vmatprep.subr.bf16.mxu0 0
  %3285 = vmatpush2.bf16.msra.mxu0 %v3230
  %3286 = vmatprep.mubr.bf16.mxu0 %v3118
  %3287 = vmatmul.mubr.bf16.gmra.mxu0 %v3117
  %v3288 = vpop.f32.mrf.mxu0
  %v3289 = vadd.f32 %v3156, %v3288
  %v3290 = vpop.f32.mrf.mxu0
  %v3291 = vpop.f32.mrf.mxu0
  %v3292 = vpop.f32.mrf.mxu0
  %3293 = vdwg.mxu0
  %v3294 = vlaneseq
  %v3295 = vand.u32 %v3294, 127
  %vm3296 = vcmp.lt.s32.totalorder %v3295, 4
  %vm3297 = vcmp.ge.s32.totalorder %v3295, 4
  %vm3298 = vcmp.lt.s32.totalorder %v3295, 6
  %vm3299 = vmand %vm3297, %vm3298
  %vm3300 = vcmp.eq.s32.totalorder %v3295, 6
  %v3301 = vsel %vm3296, %v3289, -1e+30
  %vm3302 = vcmask 58368
  %v3303 = vsel %vm3302, %v3301, -inf
  %3304 = vmax.xlane.f32.xlu0 %v3303
  %v3305 = vpop.xlane.xlu0 %3304
  %v3306 = vsub.f32 %v3301, %v3305
  %v3307 = vmul.f32 %v3306, 1.442695
  %v3308 = vpow.pop %v3307
  %v3309 = vsel %vm3296, %v3308, 0.0
  %v3310 = vsel %vm3302, %v3309, 0.0
  %3311 = vadd.xlane.f32.xlu0 %v3310
  %v3312 = vpop.xlane.xlu0 %3311
  %v3313 = vrcp.pop %v3312
  %v3314 = vmul.f32 %v3309, %v3313
  %v3315 = vsel %vm3299, %v3289, -1e+30
  %v3316 = vsel %vm3302, %v3315, -inf
  %3317 = vmax.xlane.f32.xlu0 %v3316
  %v3318 = vpop.xlane.xlu0 %3317
  %v3319 = vsub.f32 %v3315, %v3318
  %v3320 = vmul.f32 %v3319, 1.442695
  %v3321 = vpow.pop %v3320
  %v3322 = vsel %vm3299, %v3321, 0.0
  %v3323 = vsel %vm3302, %v3322, 0.0
  %3324 = vadd.xlane.f32.xlu0 %v3323
  %v3325 = vpop.xlane.xlu0 %3324
  %v3326 = vrcp.pop %v3325
  %v3327 = vmul.f32 %v3322, %v3326
  %v3328 = vsel %vm3300, %v3289, 0.0
  %v3329 = vsel %vm3299, %v3327, %v3328
  %v3330 = vsel %vm3296, %v3314, %v3329
  %3331 = vst.msk [vmem:[%s5] sm:$0x3] %vm3302, %v3330
  // Predicated region
  $region22: #{actor_critic_forward.7} parent=0 // pred_check
    _
  $region23: #{actor_critic_forward.7} parent=0 // pred_check_branch
    %3333 = sbr.rel (0) target = $region25
  $region24: #{actor_critic_forward.7} parent=0 // pred_region
    _
  $region25: #{actor_critic_forward.7} parent=0 // pred_fallthru
    _
  // Predicated region
  $region26: #{actor_critic_forward.7} parent=0 // pred_check
    _
  $region27: #{actor_critic_forward.7} parent=0 // pred_check_branch
    %3335 = sbr.rel (0) target = $region29
  $region28: #{actor_critic_forward.7} parent=0 // pred_region
    _
  $region29: #{actor_critic_forward.7} parent=0 // pred_fallthru
    _

</llo_original>
